<compile_context>
chip_gen: v7x
topology: tpu7x:2x2x1
jax: 0.10.0
libtpu: 0.0.40
codegen_flags: <defaults>
</compile_context>

<pallas_src>
import functools

import jax
import jax.numpy as jnp
from jax.experimental import pallas as pl
from jax.experimental.pallas import tpu as pltpu


def resnet_block_kernel(x_ref, w1_ref, w2_ref, wsc_ref, s1_ref, b1_ref,
                        b2_ref, out_ref, h1s_ref, *, K, P, TR,
                        use_shortcut_conv):
    """One (1, Cin, TH, W) NCHW block -> (1, Cout, TH, W) block.

    x_ref   : (1, Cin, TH, W)   VMEM   input block
    w1_ref  : (K*Cin*Cout,)     SMEM   conv1 weights (bn2 scale folded in)
    w2_ref  : (K*Cout*Cout,)    SMEM   conv2 weights
    wsc_ref : (Cin*Cout,)       SMEM   1x1 shortcut weights (dummy if unused)
    s1/b1   : (Cin,)            SMEM   folded bn1 scale / bias
    b2      : (Cout,)           SMEM   folded bn2 bias (scale folded into w1)
    h1s_ref : (Cin, TH, W)      VMEM scratch  bn1+relu planes (no K copies)
    """
    _, Cin, TH, W = x_ref.shape
    Cout = out_ref.shape[1]

    # ---- hoisted halo masks: one per nonzero shift, at sub-tile shape -------
    lane = jax.lax.broadcasted_iota(jnp.int32, (TR, W), 1)
    masks = {}
    for k in range(K):
        s = k - P
        if s != 0:
            masks[s] = jnp.logical_and(lane + s >= 0, lane + s < W)

    def tap(h, s):
        # tap(h, s)[.., w] == h[.., w + s] for 0 <= w + s < W, else 0.
        if s == 0:
            return h
        rolled = pltpu.roll(h, (-s) % W, axis=1)           # XLU lane rotate
        return jnp.where(masks[s], rolled, 0.0)

    # ---- stage 1: bn1 + relu, one full-height plane per input channel ------
    for ci in range(Cin):
        h1s_ref[ci] = jnp.maximum(x_ref[0, ci] * s1_ref[ci] + b1_ref[ci], 0.0)

    # ---- fused stages 2+3, row-sub-tiled so the Cout output accumulators ---
    # ---- stay register resident ---------------------------------------------
    for r0 in range(0, TH, TR):
        rows = pl.ds(r0, TR)

        # Initialize accumulators with the shortcut term.
        acc = []
        if use_shortcut_conv:
            xs = [x_ref[0, ci, rows, :] for ci in range(Cin)]
            for co in range(Cout):
                a = wsc_ref[0 * Cout + co] * xs[0]
                for ci in range(1, Cin):
                    a = a + wsc_ref[ci * Cout + co] * xs[ci]
                acc.append(a)
        else:
            for co in range(Cout):
                acc.append(x_ref[0, co, rows, :])   # identity (Cin == Cout)

        for cm in range(Cout):
            # conv1 (bn2 scale pre-folded) + bn2 bias + relu.
            h2 = None
            for ci in range(Cin):
                h1 = h1s_ref[ci, rows, :]
                for k in range(K):
                    w = w1_ref[(k * Cin + ci) * Cout + cm]   # scalar from SMEM
                    t = w * tap(h1, k - P)
                    h2 = t if h2 is None else h2 + t
            h2 = jnp.maximum(h2 + b2_ref[cm], 0.0)
            # dropout(p=0.2) is identity in eval mode.

            # conv2: K taps of h2 in registers, accumulate into all Cout accs.
            taps2 = [tap(h2, k - P) for k in range(K)]
            for co in range(Cout):
                a = acc[co]
                for k in range(K):
                    a = a + w2_ref[(k * Cout + cm) * Cout + co] * taps2[k]
                acc[co] = a

        for co in range(Cout):
            out_ref[0, co, rows, :] = acc[co].astype(out_ref.dtype)


def _vmem_block_bytes(Cin, Cout, TH, W):
    # double-buffered in/out blocks + h1 scratch, all f32.
    return 4 * TH * W * (2 * Cin + 2 * Cout + Cin)


def _pick_tile_h(H, Cin, Cout, W, budget_bytes=24 << 20, cap=1024):
    """Largest multiple-of-8 divisor of H (<= cap) that fits the VMEM budget."""
    best = None
    for t in range(8, min(H, cap) + 1, 8):
        if H % t == 0 and _vmem_block_bytes(Cin, Cout, t, W) <= budget_bytes:
            best = t
    if best is None:
        best = 8 if H % 8 == 0 else H
    return best


def resnet_block_pallas(x, w1, w2, wsc, s1, b1, s2, b2, *, padding,
                        stride=1, TH=None):
    """x: (N, Cin, H, W) f32 NCHW.
    w1: (Cout, Cin, 1, K), w2: (Cout, Cout, 1, K) PyTorch conv weights.
    wsc: (Cout, Cin, 1, 1) or None (identity shortcut, requires Cin == Cout).
    s*, b*: folded eval-mode BatchNorm scale / bias per channel.
    """
    N, Cin, H, W = x.shape
    Cout = w1.shape[0]
    K = w1.shape[3]
    P = padding
    assert stride == 1, "TODO(synk): stride > 1 not supported"
    assert 2 * P == K - 1, "TODO(synk): only 'same' padding supported"

    use_shortcut_conv = wsc is not None
    if use_shortcut_conv:
        # (Cout, Cin, 1, 1) -> flat (Cin, Cout)
        wsc_flat = jnp.transpose(wsc[:, :, 0, 0], (1, 0)).reshape(-1)
        wsc_flat = wsc_flat.astype(jnp.float32)
    else:
        assert Cin == Cout
        wsc_flat = jnp.zeros((1,), jnp.float32)            # unused dummy

    # (Cout, Cin, 1, K) -> (K, Cin, Cout); fold bn2 scale into conv1 weights.
    w1_k = jnp.transpose(w1[:, :, 0, :], (2, 1, 0)) * s2.reshape(1, 1, Cout)
    w1_flat = w1_k.reshape(-1).astype(jnp.float32)
    w2_flat = jnp.transpose(w2[:, :, 0, :], (2, 1, 0)).reshape(-1)
    w2_flat = w2_flat.astype(jnp.float32)

    if TH is None:
        TH = _pick_tile_h(H, Cin, Cout, W)
        # Keep >= 2 grid steps so a v7x chip can use both TensorCores.
        if N * (H // TH) < 2:
            for t in range(TH - 8, 7, -8):
                if H % t == 0:
                    TH = t
                    break
    assert H % TH == 0, "TODO(synk): no remainder handling; pick TH | H"

    # Row sub-tile for register-resident output accumulators.
    TR = 16 if TH % 16 == 0 else (8 if TH % 8 == 0 else TH)

    est = _vmem_block_bytes(Cin, Cout, TH, W)
    vmem_limit = int(max(32 << 20, min(2 * est + (2 << 20), 48 << 20)))

    kern = functools.partial(resnet_block_kernel, K=K, P=P, TR=TR,
                             use_shortcut_conv=use_shortcut_conv)
    smem = pl.BlockSpec(memory_space=pltpu.MemorySpace.SMEM)

    return pl.pallas_call(
        kern,
        out_shape=jax.ShapeDtypeStruct((N, Cout, H, W), jnp.float32),
        grid_spec=pltpu.PrefetchScalarGridSpec(
            num_scalar_prefetch=0,
            grid=(N, H // TH),
            in_specs=[
                pl.BlockSpec((1, Cin, TH, W), lambda n, h: (n, 0, h, 0)),
                smem,   # w1 (folded)
                smem,   # w2
                smem,   # wsc
                smem,   # s1
                smem,   # b1
                smem,   # b2
            ],
            out_specs=pl.BlockSpec((1, Cout, TH, W), lambda n, h: (n, 0, h, 0)),
            scratch_shapes=[
                pltpu.VMEM((Cin, TH, W), jnp.float32),     # bn1+relu planes
            ]),
        compiler_params=pltpu.CompilerParams(
            dimension_semantics=("parallel", "parallel"),
            vmem_limit_bytes=vmem_limit),
    )(x.astype(jnp.float32), w1_flat, w2_flat, wsc_flat,
      s1.astype(jnp.float32), b1.astype(jnp.float32),
      b2.astype(jnp.float32))


def resnet_block_reference(x, w1, w2, wsc, s1, b1, s2, b2, *, P):
    """Pure-JAX NCHW reference mirroring the PyTorch module (eval mode)."""
    dn = ('NCHW', 'OIHW', 'NCHW')
    hp = jax.lax.Precision.HIGHEST

    def bn(h, scale, bias):
        return h * scale.reshape(1, -1, 1, 1) + bias.reshape(1, -1, 1, 1)

    h = jax.nn.relu(bn(x, s1, b1))
    h = jax.lax.conv_general_dilated(h, w1, (1, 1), ((0, 0), (P, P)),
                                     dimension_numbers=dn, precision=hp)
    h = jax.nn.relu(bn(h, s2, b2))
    # dropout: identity in eval
    h = jax.lax.conv_general_dilated(h, w2, (1, 1), ((0, 0), (P, P)),
                                     dimension_numbers=dn, precision=hp)
    if wsc is None:
        identity = x
    else:
        identity = jax.lax.conv_general_dilated(x, wsc, (1, 1),
                                                ((0, 0), (0, 0)),
                                                dimension_numbers=dn,
                                                precision=hp)
    return h + identity


if __name__ == "__main__":
    eps = 1e-5
    key = jax.random.PRNGKey(0)

    def run_case(case_key, N, Cin, Cout, H, W, K, P, TH):
        ks = jax.random.split(case_key, 12)
        x = jax.random.normal(ks[0], (N, Cin, H, W), jnp.float32)

        # conv weights in PyTorch layout (Cout, Cin, 1, K), no bias.
        w1 = jax.random.normal(ks[1], (Cout, Cin, 1, K), jnp.float32) * 0.1
        w2 = jax.random.normal(ks[2], (Cout, Cout, 1, K), jnp.float32) * 0.1
        if Cin != Cout:
            wsc = jax.random.normal(ks[3], (Cout, Cin, 1, 1), jnp.float32) * 0.1
        else:
            wsc = None   # PyTorch identity shortcut

        # BatchNorm parameters (eval mode: running stats).
        gamma1 = 1.0 + 0.1 * jax.random.normal(ks[4], (Cin,), jnp.float32)
        beta1 = 0.1 * jax.random.normal(ks[5], (Cin,), jnp.float32)
        mean1 = 0.1 * jax.random.normal(ks[6], (Cin,), jnp.float32)
        var1 = jax.random.uniform(ks[7], (Cin,), jnp.float32, 0.5, 1.5)
        gamma2 = 1.0 + 0.1 * jax.random.normal(ks[8], (Cout,), jnp.float32)
        beta2 = 0.1 * jax.random.normal(ks[9], (Cout,), jnp.float32)
        mean2 = 0.1 * jax.random.normal(ks[10], (Cout,), jnp.float32)
        var2 = jax.random.uniform(ks[11], (Cout,), jnp.float32, 0.5, 1.5)

        # Fold BN into per-channel scale/bias.
        s1 = gamma1 / jnp.sqrt(var1 + eps)
        b1 = beta1 - mean1 * s1
        s2 = gamma2 / jnp.sqrt(var2 + eps)
        b2 = beta2 - mean2 * s2

        out = resnet_block_pallas(x, w1, w2, wsc, s1, b1, s2, b2,
                                  padding=P, stride=1, TH=TH)
        out = jax.block_until_ready(out)

        ref = resnet_block_reference(x, w1, w2, wsc, s1, b1, s2, b2, P=P)
        ref = jax.block_until_ready(ref)

        assert out.shape == (N, Cout, H, W), out.shape
        err = float(jnp.max(jnp.abs(out - ref)))
        assert jnp.allclose(out, ref, atol=1e-4, rtol=1e-4), err

    k1, k2, k3 = jax.random.split(key, 3)
    # ResnetBlock(in_channels=4, out_channels=8, kernel_size=3, stride=1,
    #             padding=1): 1x1-conv shortcut path.  Auto TH folds the whole
    #             H into one block -> grid = (N, 1) = 2 parallel steps.
    run_case(k1, N=2, Cin=4, Cout=8, H=16, W=128, K=3, P=1, TH=None)
    # Cin == Cout: identity-shortcut path (no 1x1 conv).
    run_case(k2, N=2, Cin=8, Cout=8, H=16, W=128, K=3, P=1, TH=None)
    # Larger block with two row sub-tiles per step (exercises TR < TH path).
    run_case(k3, N=2, Cin=4, Cout=8, H=32, W=128, K=3, P=1, TH=32)

    print("KERNEL_OK")
</pallas_src>

<mosaic_0001>
module attributes {stable_mosaic.version = 11 : i64} {
  func.func @resnet_block_kernel(%arg0: i32, %arg1: i32, %arg2: memref<1x4x16x128xf32, #tpu.memory_space<vmem>>, %arg3: memref<96xf32, #tpu.memory_space<smem>>, %arg4: memref<192xf32, #tpu.memory_space<smem>>, %arg5: memref<32xf32, #tpu.memory_space<smem>>, %arg6: memref<4xf32, #tpu.memory_space<smem>>, %arg7: memref<4xf32, #tpu.memory_space<smem>>, %arg8: memref<8xf32, #tpu.memory_space<smem>>, %arg9: memref<1x8x16x128xf32, #tpu.memory_space<vmem>>, %arg10: memref<4x16x128xf32, #tpu.memory_space<vmem>>) attributes {dimension_semantics = [#tpu.dimension_semantics<parallel>, #tpu.dimension_semantics<parallel>], iteration_bounds = array<i64: 2, 1>, scalar_prefetch = 0 : i64, scratch_operands = 1 : i64, tpu.core_type = #tpu.core_type<tc>, window_params = [{transform_indices = @transform_0, window_bounds = array<i64: 1, 4, 16, 128>}, {transform_indices = @transform_1, window_bounds = array<i64: 96>}, {transform_indices = @transform_2, window_bounds = array<i64: 192>}, {transform_indices = @transform_3, window_bounds = array<i64: 32>}, {transform_indices = @transform_4, window_bounds = array<i64: 4>}, {transform_indices = @transform_5, window_bounds = array<i64: 4>}, {transform_indices = @transform_6, window_bounds = array<i64: 8>}, {transform_indices = @transform_7, window_bounds = array<i64: 1, 8, 16, 128>}]} {
    %0 = tpu.iota {dimensions = array<i32: 1>} : vector<16x128xi32>
    %c-1_i32 = arith.constant -1 : i32
    %1 = vector.broadcast %c-1_i32 : i32 to vector<16x128xi32>
    %2 = arith.addi %0, %1 : vector<16x128xi32>
    %c0_i32 = arith.constant 0 : i32
    %3 = vector.broadcast %c0_i32 : i32 to vector<16x128xi32>
    %4 = arith.cmpi sge, %2, %3 : vector<16x128xi32>
    %c-1_i32_0 = arith.constant -1 : i32
    %5 = vector.broadcast %c-1_i32_0 : i32 to vector<16x128xi32>
    %6 = arith.addi %0, %5 : vector<16x128xi32>
    %c128_i32 = arith.constant 128 : i32
    %7 = vector.broadcast %c128_i32 : i32 to vector<16x128xi32>
    %8 = arith.cmpi slt, %6, %7 : vector<16x128xi32>
    %9 = arith.andi %4, %8 : vector<16x128xi1>
    %c1_i32 = arith.constant 1 : i32
    %10 = vector.broadcast %c1_i32 : i32 to vector<16x128xi32>
    %11 = arith.addi %0, %10 : vector<16x128xi32>
    %c0_i32_1 = arith.constant 0 : i32
    %12 = vector.broadcast %c0_i32_1 : i32 to vector<16x128xi32>
    %13 = arith.cmpi sge, %11, %12 : vector<16x128xi32>
    %c1_i32_2 = arith.constant 1 : i32
    %14 = vector.broadcast %c1_i32_2 : i32 to vector<16x128xi32>
    %15 = arith.addi %0, %14 : vector<16x128xi32>
    %c128_i32_3 = arith.constant 128 : i32
    %16 = vector.broadcast %c128_i32_3 : i32 to vector<16x128xi32>
    %17 = arith.cmpi slt, %15, %16 : vector<16x128xi32>
    %18 = arith.andi %13, %17 : vector<16x128xi1>
    %c0 = arith.constant 0 : index
    %c0_4 = arith.constant 0 : index
    %c0_5 = arith.constant 0 : index
    %c0_6 = arith.constant 0 : index
    %19 = vector.load %arg2[%c0, %c0_4, %c0_5, %c0_6] : memref<1x4x16x128xf32, #tpu.memory_space<vmem>>, vector<1x1x16x128xf32>
    %20 = vector.shape_cast %19 : vector<1x1x16x128xf32> to vector<16x128xf32>
    %c0_7 = arith.constant 0 : index
    %21 = memref.load %arg6[%c0_7] : memref<4xf32, #tpu.memory_space<smem>>
    %22 = vector.broadcast %21 : f32 to vector<16x128xf32>
    %23 = arith.mulf %20, %22 : vector<16x128xf32>
    %c0_8 = arith.constant 0 : index
    %24 = memref.load %arg7[%c0_8] : memref<4xf32, #tpu.memory_space<smem>>
    %25 = vector.broadcast %24 : f32 to vector<16x128xf32>
    %26 = arith.addf %23, %25 : vector<16x128xf32>
    %cst = arith.constant 0.000000e+00 : f32
    %27 = vector.broadcast %cst : f32 to vector<16x128xf32>
    %28 = arith.maximumf %26, %27 : vector<16x128xf32>
    %c0_9 = arith.constant 0 : index
    %c0_10 = arith.constant 0 : index
    %c0_11 = arith.constant 0 : index
    %29 = vector.load %arg10[%c0_9, %c0_10, %c0_11] : memref<4x16x128xf32, #tpu.memory_space<vmem>>, vector<1x16x128xf32>
    %30 = vector.shape_cast %29 : vector<1x16x128xf32> to vector<16x128xf32>
    %31 = vector.shape_cast %28 : vector<16x128xf32> to vector<1x16x128xf32>
    tpu.vector_store %arg10[%c0_9, %c0_10, %c0_11], %31 {strides = array<i32>} : memref<4x16x128xf32, #tpu.memory_space<vmem>>, vector<1x16x128xf32>,
    %c0_12 = arith.constant 0 : index
    %c1 = arith.constant 1 : index
    %c0_13 = arith.constant 0 : index
    %c0_14 = arith.constant 0 : index
    %32 = vector.load %arg2[%c0_12, %c1, %c0_13, %c0_14] : memref<1x4x16x128xf32, #tpu.memory_space<vmem>>, vector<1x1x16x128xf32>
    %33 = vector.shape_cast %32 : vector<1x1x16x128xf32> to vector<16x128xf32>
    %c1_15 = arith.constant 1 : index
    %34 = memref.load %arg6[%c1_15] : memref<4xf32, #tpu.memory_space<smem>>
    %35 = vector.broadcast %34 : f32 to vector<16x128xf32>
    %36 = arith.mulf %33, %35 : vector<16x128xf32>
    %c1_16 = arith.constant 1 : index
    %37 = memref.load %arg7[%c1_16] : memref<4xf32, #tpu.memory_space<smem>>
    %38 = vector.broadcast %37 : f32 to vector<16x128xf32>
    %39 = arith.addf %36, %38 : vector<16x128xf32>
    %cst_17 = arith.constant 0.000000e+00 : f32
    %40 = vector.broadcast %cst_17 : f32 to vector<16x128xf32>
    %41 = arith.maximumf %39, %40 : vector<16x128xf32>
    %c1_18 = arith.constant 1 : index
    %c0_19 = arith.constant 0 : index
    %c0_20 = arith.constant 0 : index
    %42 = vector.load %arg10[%c1_18, %c0_19, %c0_20] : memref<4x16x128xf32, #tpu.memory_space<vmem>>, vector<1x16x128xf32>
    %43 = vector.shape_cast %42 : vector<1x16x128xf32> to vector<16x128xf32>
    %44 = vector.shape_cast %41 : vector<16x128xf32> to vector<1x16x128xf32>
    tpu.vector_store %arg10[%c1_18, %c0_19, %c0_20], %44 {strides = array<i32>} : memref<4x16x128xf32, #tpu.memory_space<vmem>>, vector<1x16x128xf32>,
    %c0_21 = arith.constant 0 : index
    %c2 = arith.constant 2 : index
    %c0_22 = arith.constant 0 : index
    %c0_23 = arith.constant 0 : index
    %45 = vector.load %arg2[%c0_21, %c2, %c0_22, %c0_23] : memref<1x4x16x128xf32, #tpu.memory_space<vmem>>, vector<1x1x16x128xf32>
    %46 = vector.shape_cast %45 : vector<1x1x16x128xf32> to vector<16x128xf32>
    %c2_24 = arith.constant 2 : index
    %47 = memref.load %arg6[%c2_24] : memref<4xf32, #tpu.memory_space<smem>>
    %48 = vector.broadcast %47 : f32 to vector<16x128xf32>
    %49 = arith.mulf %46, %48 : vector<16x128xf32>
    %c2_25 = arith.constant 2 : index
    %50 = memref.load %arg7[%c2_25] : memref<4xf32, #tpu.memory_space<smem>>
    %51 = vector.broadcast %50 : f32 to vector<16x128xf32>
    %52 = arith.addf %49, %51 : vector<16x128xf32>
    %cst_26 = arith.constant 0.000000e+00 : f32
    %53 = vector.broadcast %cst_26 : f32 to vector<16x128xf32>
    %54 = arith.maximumf %52, %53 : vector<16x128xf32>
    %c2_27 = arith.constant 2 : index
    %c0_28 = arith.constant 0 : index
    %c0_29 = arith.constant 0 : index
    %55 = vector.load %arg10[%c2_27, %c0_28, %c0_29] : memref<4x16x128xf32, #tpu.memory_space<vmem>>, vector<1x16x128xf32>
    %56 = vector.shape_cast %55 : vector<1x16x128xf32> to vector<16x128xf32>
    %57 = vector.shape_cast %54 : vector<16x128xf32> to vector<1x16x128xf32>
    tpu.vector_store %arg10[%c2_27, %c0_28, %c0_29], %57 {strides = array<i32>} : memref<4x16x128xf32, #tpu.memory_space<vmem>>, vector<1x16x128xf32>,
    %c0_30 = arith.constant 0 : index
    %c3 = arith.constant 3 : index
    %c0_31 = arith.constant 0 : index
    %c0_32 = arith.constant 0 : index
    %58 = vector.load %arg2[%c0_30, %c3, %c0_31, %c0_32] : memref<1x4x16x128xf32, #tpu.memory_space<vmem>>, vector<1x1x16x128xf32>
    %59 = vector.shape_cast %58 : vector<1x1x16x128xf32> to vector<16x128xf32>
    %c3_33 = arith.constant 3 : index
    %60 = memref.load %arg6[%c3_33] : memref<4xf32, #tpu.memory_space<smem>>
    %61 = vector.broadcast %60 : f32 to vector<16x128xf32>
    %62 = arith.mulf %59, %61 : vector<16x128xf32>
    %c3_34 = arith.constant 3 : index
    %63 = memref.load %arg7[%c3_34] : memref<4xf32, #tpu.memory_space<smem>>
    %64 = vector.broadcast %63 : f32 to vector<16x128xf32>
    %65 = arith.addf %62, %64 : vector<16x128xf32>
    %cst_35 = arith.constant 0.000000e+00 : f32
    %66 = vector.broadcast %cst_35 : f32 to vector<16x128xf32>
    %67 = arith.maximumf %65, %66 : vector<16x128xf32>
    %c3_36 = arith.constant 3 : index
    %c0_37 = arith.constant 0 : index
    %c0_38 = arith.constant 0 : index
    %68 = vector.load %arg10[%c3_36, %c0_37, %c0_38] : memref<4x16x128xf32, #tpu.memory_space<vmem>>, vector<1x16x128xf32>
    %69 = vector.shape_cast %68 : vector<1x16x128xf32> to vector<16x128xf32>
    %70 = vector.shape_cast %67 : vector<16x128xf32> to vector<1x16x128xf32>
    tpu.vector_store %arg10[%c3_36, %c0_37, %c0_38], %70 {strides = array<i32>} : memref<4x16x128xf32, #tpu.memory_space<vmem>>, vector<1x16x128xf32>,
    %c0_39 = arith.constant 0 : index
    %c0_40 = arith.constant 0 : index
    %c0_41 = arith.constant 0 : index
    %c0_42 = arith.constant 0 : index
    %71 = vector.load %arg2[%c0_39, %c0_40, %c0_41, %c0_42] : memref<1x4x16x128xf32, #tpu.memory_space<vmem>>, vector<1x1x16x128xf32>
    %72 = vector.shape_cast %71 : vector<1x1x16x128xf32> to vector<16x128xf32>
    %c0_43 = arith.constant 0 : index
    %c1_44 = arith.constant 1 : index
    %c0_45 = arith.constant 0 : index
    %c0_46 = arith.constant 0 : index
    %73 = vector.load %arg2[%c0_43, %c1_44, %c0_45, %c0_46] : memref<1x4x16x128xf32, #tpu.memory_space<vmem>>, vector<1x1x16x128xf32>
    %74 = vector.shape_cast %73 : vector<1x1x16x128xf32> to vector<16x128xf32>
    %c0_47 = arith.constant 0 : index
    %c2_48 = arith.constant 2 : index
    %c0_49 = arith.constant 0 : index
    %c0_50 = arith.constant 0 : index
    %75 = vector.load %arg2[%c0_47, %c2_48, %c0_49, %c0_50] : memref<1x4x16x128xf32, #tpu.memory_space<vmem>>, vector<1x1x16x128xf32>
    %76 = vector.shape_cast %75 : vector<1x1x16x128xf32> to vector<16x128xf32>
    %c0_51 = arith.constant 0 : index
    %c3_52 = arith.constant 3 : index
    %c0_53 = arith.constant 0 : index
    %c0_54 = arith.constant 0 : index
    %77 = vector.load %arg2[%c0_51, %c3_52, %c0_53, %c0_54] : memref<1x4x16x128xf32, #tpu.memory_space<vmem>>, vector<1x1x16x128xf32>
    %78 = vector.shape_cast %77 : vector<1x1x16x128xf32> to vector<16x128xf32>
    %c0_55 = arith.constant 0 : index
    %79 = memref.load %arg5[%c0_55] : memref<32xf32, #tpu.memory_space<smem>>
    %80 = vector.broadcast %79 : f32 to vector<16x128xf32>
    %81 = arith.mulf %80, %72 : vector<16x128xf32>
    %c8 = arith.constant 8 : index
    %82 = memref.load %arg5[%c8] : memref<32xf32, #tpu.memory_space<smem>>
    %83 = vector.broadcast %82 : f32 to vector<16x128xf32>
    %84 = arith.mulf %83, %74 : vector<16x128xf32>
    %85 = arith.addf %81, %84 : vector<16x128xf32>
    %c16 = arith.constant 16 : index
    %86 = memref.load %arg5[%c16] : memref<32xf32, #tpu.memory_space<smem>>
    %87 = vector.broadcast %86 : f32 to vector<16x128xf32>
    %88 = arith.mulf %87, %76 : vector<16x128xf32>
    %89 = arith.addf %85, %88 : vector<16x128xf32>
    %c24 = arith.constant 24 : index
    %90 = memref.load %arg5[%c24] : memref<32xf32, #tpu.memory_space<smem>>
    %91 = vector.broadcast %90 : f32 to vector<16x128xf32>
    %92 = arith.mulf %91, %78 : vector<16x128xf32>
    %93 = arith.addf %89, %92 : vector<16x128xf32>
    %c1_56 = arith.constant 1 : index
    %94 = memref.load %arg5[%c1_56] : memref<32xf32, #tpu.memory_space<smem>>
    %95 = vector.broadcast %94 : f32 to vector<16x128xf32>
    %96 = arith.mulf %95, %72 : vector<16x128xf32>
    %c9 = arith.constant 9 : index
    %97 = memref.load %arg5[%c9] : memref<32xf32, #tpu.memory_space<smem>>
    %98 = vector.broadcast %97 : f32 to vector<16x128xf32>
    %99 = arith.mulf %98, %74 : vector<16x128xf32>
    %100 = arith.addf %96, %99 : vector<16x128xf32>
    %c17 = arith.constant 17 : index
    %101 = memref.load %arg5[%c17] : memref<32xf32, #tpu.memory_space<smem>>
    %102 = vector.broadcast %101 : f32 to vector<16x128xf32>
    %103 = arith.mulf %102, %76 : vector<16x128xf32>
    %104 = arith.addf %100, %103 : vector<16x128xf32>
    %c25 = arith.constant 25 : index
    %105 = memref.load %arg5[%c25] : memref<32xf32, #tpu.memory_space<smem>>
    %106 = vector.broadcast %105 : f32 to vector<16x128xf32>
    %107 = arith.mulf %106, %78 : vector<16x128xf32>
    %108 = arith.addf %104, %107 : vector<16x128xf32>
    %c2_57 = arith.constant 2 : index
    %109 = memref.load %arg5[%c2_57] : memref<32xf32, #tpu.memory_space<smem>>
    %110 = vector.broadcast %109 : f32 to vector<16x128xf32>
    %111 = arith.mulf %110, %72 : vector<16x128xf32>
    %c10 = arith.constant 10 : index
    %112 = memref.load %arg5[%c10] : memref<32xf32, #tpu.memory_space<smem>>
    %113 = vector.broadcast %112 : f32 to vector<16x128xf32>
    %114 = arith.mulf %113, %74 : vector<16x128xf32>
    %115 = arith.addf %111, %114 : vector<16x128xf32>
    %c18 = arith.constant 18 : index
    %116 = memref.load %arg5[%c18] : memref<32xf32, #tpu.memory_space<smem>>
    %117 = vector.broadcast %116 : f32 to vector<16x128xf32>
    %118 = arith.mulf %117, %76 : vector<16x128xf32>
    %119 = arith.addf %115, %118 : vector<16x128xf32>
    %c26 = arith.constant 26 : index
    %120 = memref.load %arg5[%c26] : memref<32xf32, #tpu.memory_space<smem>>
    %121 = vector.broadcast %120 : f32 to vector<16x128xf32>
    %122 = arith.mulf %121, %78 : vector<16x128xf32>
    %123 = arith.addf %119, %122 : vector<16x128xf32>
    %c3_58 = arith.constant 3 : index
    %124 = memref.load %arg5[%c3_58] : memref<32xf32, #tpu.memory_space<smem>>
    %125 = vector.broadcast %124 : f32 to vector<16x128xf32>
    %126 = arith.mulf %125, %72 : vector<16x128xf32>
    %c11 = arith.constant 11 : index
    %127 = memref.load %arg5[%c11] : memref<32xf32, #tpu.memory_space<smem>>
    %128 = vector.broadcast %127 : f32 to vector<16x128xf32>
    %129 = arith.mulf %128, %74 : vector<16x128xf32>
    %130 = arith.addf %126, %129 : vector<16x128xf32>
    %c19 = arith.constant 19 : index
    %131 = memref.load %arg5[%c19] : memref<32xf32, #tpu.memory_space<smem>>
    %132 = vector.broadcast %131 : f32 to vector<16x128xf32>
    %133 = arith.mulf %132, %76 : vector<16x128xf32>
    %134 = arith.addf %130, %133 : vector<16x128xf32>
    %c27 = arith.constant 27 : index
    %135 = memref.load %arg5[%c27] : memref<32xf32, #tpu.memory_space<smem>>
    %136 = vector.broadcast %135 : f32 to vector<16x128xf32>
    %137 = arith.mulf %136, %78 : vector<16x128xf32>
    %138 = arith.addf %134, %137 : vector<16x128xf32>
    %c4 = arith.constant 4 : index
    %139 = memref.load %arg5[%c4] : memref<32xf32, #tpu.memory_space<smem>>
    %140 = vector.broadcast %139 : f32 to vector<16x128xf32>
    %141 = arith.mulf %140, %72 : vector<16x128xf32>
    %c12 = arith.constant 12 : index
    %142 = memref.load %arg5[%c12] : memref<32xf32, #tpu.memory_space<smem>>
    %143 = vector.broadcast %142 : f32 to vector<16x128xf32>
    %144 = arith.mulf %143, %74 : vector<16x128xf32>
    %145 = arith.addf %141, %144 : vector<16x128xf32>
    %c20 = arith.constant 20 : index
    %146 = memref.load %arg5[%c20] : memref<32xf32, #tpu.memory_space<smem>>
    %147 = vector.broadcast %146 : f32 to vector<16x128xf32>
    %148 = arith.mulf %147, %76 : vector<16x128xf32>
    %149 = arith.addf %145, %148 : vector<16x128xf32>
    %c28 = arith.constant 28 : index
    %150 = memref.load %arg5[%c28] : memref<32xf32, #tpu.memory_space<smem>>
    %151 = vector.broadcast %150 : f32 to vector<16x128xf32>
    %152 = arith.mulf %151, %78 : vector<16x128xf32>
    %153 = arith.addf %149, %152 : vector<16x128xf32>
    %c5 = arith.constant 5 : index
    %154 = memref.load %arg5[%c5] : memref<32xf32, #tpu.memory_space<smem>>
    %155 = vector.broadcast %154 : f32 to vector<16x128xf32>
    %156 = arith.mulf %155, %72 : vector<16x128xf32>
    %c13 = arith.constant 13 : index
    %157 = memref.load %arg5[%c13] : memref<32xf32, #tpu.memory_space<smem>>
    %158 = vector.broadcast %157 : f32 to vector<16x128xf32>
    %159 = arith.mulf %158, %74 : vector<16x128xf32>
    %160 = arith.addf %156, %159 : vector<16x128xf32>
    %c21 = arith.constant 21 : index
    %161 = memref.load %arg5[%c21] : memref<32xf32, #tpu.memory_space<smem>>
    %162 = vector.broadcast %161 : f32 to vector<16x128xf32>
    %163 = arith.mulf %162, %76 : vector<16x128xf32>
    %164 = arith.addf %160, %163 : vector<16x128xf32>
    %c29 = arith.constant 29 : index
    %165 = memref.load %arg5[%c29] : memref<32xf32, #tpu.memory_space<smem>>
    %166 = vector.broadcast %165 : f32 to vector<16x128xf32>
    %167 = arith.mulf %166, %78 : vector<16x128xf32>
    %168 = arith.addf %164, %167 : vector<16x128xf32>
    %c6 = arith.constant 6 : index
    %169 = memref.load %arg5[%c6] : memref<32xf32, #tpu.memory_space<smem>>
    %170 = vector.broadcast %169 : f32 to vector<16x128xf32>
    %171 = arith.mulf %170, %72 : vector<16x128xf32>
    %c14 = arith.constant 14 : index
    %172 = memref.load %arg5[%c14] : memref<32xf32, #tpu.memory_space<smem>>
    %173 = vector.broadcast %172 : f32 to vector<16x128xf32>
    %174 = arith.mulf %173, %74 : vector<16x128xf32>
    %175 = arith.addf %171, %174 : vector<16x128xf32>
    %c22 = arith.constant 22 : index
    %176 = memref.load %arg5[%c22] : memref<32xf32, #tpu.memory_space<smem>>
    %177 = vector.broadcast %176 : f32 to vector<16x128xf32>
    %178 = arith.mulf %177, %76 : vector<16x128xf32>
    %179 = arith.addf %175, %178 : vector<16x128xf32>
    %c30 = arith.constant 30 : index
    %180 = memref.load %arg5[%c30] : memref<32xf32, #tpu.memory_space<smem>>
    %181 = vector.broadcast %180 : f32 to vector<16x128xf32>
    %182 = arith.mulf %181, %78 : vector<16x128xf32>
    %183 = arith.addf %179, %182 : vector<16x128xf32>
    %c7 = arith.constant 7 : index
    %184 = memref.load %arg5[%c7] : memref<32xf32, #tpu.memory_space<smem>>
    %185 = vector.broadcast %184 : f32 to vector<16x128xf32>
    %186 = arith.mulf %185, %72 : vector<16x128xf32>
    %c15 = arith.constant 15 : index
    %187 = memref.load %arg5[%c15] : memref<32xf32, #tpu.memory_space<smem>>
    %188 = vector.broadcast %187 : f32 to vector<16x128xf32>
    %189 = arith.mulf %188, %74 : vector<16x128xf32>
    %190 = arith.addf %186, %189 : vector<16x128xf32>
    %c23 = arith.constant 23 : index
    %191 = memref.load %arg5[%c23] : memref<32xf32, #tpu.memory_space<smem>>
    %192 = vector.broadcast %191 : f32 to vector<16x128xf32>
    %193 = arith.mulf %192, %76 : vector<16x128xf32>
    %194 = arith.addf %190, %193 : vector<16x128xf32>
    %c31 = arith.constant 31 : index
    %195 = memref.load %arg5[%c31] : memref<32xf32, #tpu.memory_space<smem>>
    %196 = vector.broadcast %195 : f32 to vector<16x128xf32>
    %197 = arith.mulf %196, %78 : vector<16x128xf32>
    %198 = arith.addf %194, %197 : vector<16x128xf32>
    %c0_59 = arith.constant 0 : index
    %c0_60 = arith.constant 0 : index
    %c0_61 = arith.constant 0 : index
    %199 = vector.load %arg10[%c0_59, %c0_60, %c0_61] : memref<4x16x128xf32, #tpu.memory_space<vmem>>, vector<1x16x128xf32>
    %200 = vector.shape_cast %199 : vector<1x16x128xf32> to vector<16x128xf32>
    %c0_62 = arith.constant 0 : index
    %201 = memref.load %arg3[%c0_62] : memref<96xf32, #tpu.memory_space<smem>>
    %c1_i32_63 = arith.constant 1 : i32
    %202 = tpu.dynamic_rotate %200 by %c1_i32_63 dim 1 : vector<16x128xf32>, i32 -> vector<16x128xf32>
    %cst_64 = arith.constant 0.000000e+00 : f32
    %203 = vector.broadcast %cst_64 : f32 to vector<16x128xf32>
    %204 = arith.select %9, %202, %203 : vector<16x128xi1>, vector<16x128xf32>
    %205 = vector.broadcast %201 : f32 to vector<16x128xf32>
    %206 = arith.mulf %205, %204 : vector<16x128xf32>
    %c32 = arith.constant 32 : index
    %207 = memref.load %arg3[%c32] : memref<96xf32, #tpu.memory_space<smem>>
    %208 = vector.broadcast %207 : f32 to vector<16x128xf32>
    %209 = arith.mulf %208, %200 : vector<16x128xf32>
    %210 = arith.addf %206, %209 : vector<16x128xf32>
    %c64 = arith.constant 64 : index
    %211 = memref.load %arg3[%c64] : memref<96xf32, #tpu.memory_space<smem>>
    %c127_i32 = arith.constant 127 : i32
    %212 = tpu.dynamic_rotate %200 by %c127_i32 dim 1 : vector<16x128xf32>, i32 -> vector<16x128xf32>
    %cst_65 = arith.constant 0.000000e+00 : f32
    %213 = vector.broadcast %cst_65 : f32 to vector<16x128xf32>
    %214 = arith.select %18, %212, %213 : vector<16x128xi1>, vector<16x128xf32>
    %215 = vector.broadcast %211 : f32 to vector<16x128xf32>
    %216 = arith.mulf %215, %214 : vector<16x128xf32>
    %217 = arith.addf %210, %216 : vector<16x128xf32>
    %c1_66 = arith.constant 1 : index
    %c0_67 = arith.constant 0 : index
    %c0_68 = arith.constant 0 : index
    %218 = vector.load %arg10[%c1_66, %c0_67, %c0_68] : memref<4x16x128xf32, #tpu.memory_space<vmem>>, vector<1x16x128xf32>
    %219 = vector.shape_cast %218 : vector<1x16x128xf32> to vector<16x128xf32>
    %c8_69 = arith.constant 8 : index
    %220 = memref.load %arg3[%c8_69] : memref<96xf32, #tpu.memory_space<smem>>
    %c1_i32_70 = arith.constant 1 : i32
    %221 = tpu.dynamic_rotate %219 by %c1_i32_70 dim 1 : vector<16x128xf32>, i32 -> vector<16x128xf32>
    %cst_71 = arith.constant 0.000000e+00 : f32
    %222 = vector.broadcast %cst_71 : f32 to vector<16x128xf32>
    %223 = arith.select %9, %221, %222 : vector<16x128xi1>, vector<16x128xf32>
    %224 = vector.broadcast %220 : f32 to vector<16x128xf32>
    %225 = arith.mulf %224, %223 : vector<16x128xf32>
    %226 = arith.addf %217, %225 : vector<16x128xf32>
    %c40 = arith.constant 40 : index
    %227 = memref.load %arg3[%c40] : memref<96xf32, #tpu.memory_space<smem>>
    %228 = vector.broadcast %227 : f32 to vector<16x128xf32>
    %229 = arith.mulf %228, %219 : vector<16x128xf32>
    %230 = arith.addf %226, %229 : vector<16x128xf32>
    %c72 = arith.constant 72 : index
    %231 = memref.load %arg3[%c72] : memref<96xf32, #tpu.memory_space<smem>>
    %c127_i32_72 = arith.constant 127 : i32
    %232 = tpu.dynamic_rotate %219 by %c127_i32_72 dim 1 : vector<16x128xf32>, i32 -> vector<16x128xf32>
    %cst_73 = arith.constant 0.000000e+00 : f32
    %233 = vector.broadcast %cst_73 : f32 to vector<16x128xf32>
    %234 = arith.select %18, %232, %233 : vector<16x128xi1>, vector<16x128xf32>
    %235 = vector.broadcast %231 : f32 to vector<16x128xf32>
    %236 = arith.mulf %235, %234 : vector<16x128xf32>
    %237 = arith.addf %230, %236 : vector<16x128xf32>
    %c2_74 = arith.constant 2 : index
    %c0_75 = arith.constant 0 : index
    %c0_76 = arith.constant 0 : index
    %238 = vector.load %arg10[%c2_74, %c0_75, %c0_76] : memref<4x16x128xf32, #tpu.memory_space<vmem>>, vector<1x16x128xf32>
    %239 = vector.shape_cast %238 : vector<1x16x128xf32> to vector<16x128xf32>
    %c16_77 = arith.constant 16 : index
    %240 = memref.load %arg3[%c16_77] : memref<96xf32, #tpu.memory_space<smem>>
    %c1_i32_78 = arith.constant 1 : i32
    %241 = tpu.dynamic_rotate %239 by %c1_i32_78 dim 1 : vector<16x128xf32>, i32 -> vector<16x128xf32>
    %cst_79 = arith.constant 0.000000e+00 : f32
    %242 = vector.broadcast %cst_79 : f32 to vector<16x128xf32>
    %243 = arith.select %9, %241, %242 : vector<16x128xi1>, vector<16x128xf32>
    %244 = vector.broadcast %240 : f32 to vector<16x128xf32>
    %245 = arith.mulf %244, %243 : vector<16x128xf32>
    %246 = arith.addf %237, %245 : vector<16x128xf32>
    %c48 = arith.constant 48 : index
    %247 = memref.load %arg3[%c48] : memref<96xf32, #tpu.memory_space<smem>>
    %248 = vector.broadcast %247 : f32 to vector<16x128xf32>
    %249 = arith.mulf %248, %239 : vector<16x128xf32>
    %250 = arith.addf %246, %249 : vector<16x128xf32>
    %c80 = arith.constant 80 : index
    %251 = memref.load %arg3[%c80] : memref<96xf32, #tpu.memory_space<smem>>
    %c127_i32_80 = arith.constant 127 : i32
    %252 = tpu.dynamic_rotate %239 by %c127_i32_80 dim 1 : vector<16x128xf32>, i32 -> vector<16x128xf32>
    %cst_81 = arith.constant 0.000000e+00 : f32
    %253 = vector.broadcast %cst_81 : f32 to vector<16x128xf32>
    %254 = arith.select %18, %252, %253 : vector<16x128xi1>, vector<16x128xf32>
    %255 = vector.broadcast %251 : f32 to vector<16x128xf32>
    %256 = arith.mulf %255, %254 : vector<16x128xf32>
    %257 = arith.addf %250, %256 : vector<16x128xf32>
    %c3_82 = arith.constant 3 : index
    %c0_83 = arith.constant 0 : index
    %c0_84 = arith.constant 0 : index
    %258 = vector.load %arg10[%c3_82, %c0_83, %c0_84] : memref<4x16x128xf32, #tpu.memory_space<vmem>>, vector<1x16x128xf32>
    %259 = vector.shape_cast %258 : vector<1x16x128xf32> to vector<16x128xf32>
    %c24_85 = arith.constant 24 : index
    %260 = memref.load %arg3[%c24_85] : memref<96xf32, #tpu.memory_space<smem>>
    %c1_i32_86 = arith.constant 1 : i32
    %261 = tpu.dynamic_rotate %259 by %c1_i32_86 dim 1 : vector<16x128xf32>, i32 -> vector<16x128xf32>
    %cst_87 = arith.constant 0.000000e+00 : f32
    %262 = vector.broadcast %cst_87 : f32 to vector<16x128xf32>
    %263 = arith.select %9, %261, %262 : vector<16x128xi1>, vector<16x128xf32>
    %264 = vector.broadcast %260 : f32 to vector<16x128xf32>
    %265 = arith.mulf %264, %263 : vector<16x128xf32>
    %266 = arith.addf %257, %265 : vector<16x128xf32>
    %c56 = arith.constant 56 : index
    %267 = memref.load %arg3[%c56] : memref<96xf32, #tpu.memory_space<smem>>
    %268 = vector.broadcast %267 : f32 to vector<16x128xf32>
    %269 = arith.mulf %268, %259 : vector<16x128xf32>
    %270 = arith.addf %266, %269 : vector<16x128xf32>
    %c88 = arith.constant 88 : index
    %271 = memref.load %arg3[%c88] : memref<96xf32, #tpu.memory_space<smem>>
    %c127_i32_88 = arith.constant 127 : i32
    %272 = tpu.dynamic_rotate %259 by %c127_i32_88 dim 1 : vector<16x128xf32>, i32 -> vector<16x128xf32>
    %cst_89 = arith.constant 0.000000e+00 : f32
    %273 = vector.broadcast %cst_89 : f32 to vector<16x128xf32>
    %274 = arith.select %18, %272, %273 : vector<16x128xi1>, vector<16x128xf32>
    %275 = vector.broadcast %271 : f32 to vector<16x128xf32>
    %276 = arith.mulf %275, %274 : vector<16x128xf32>
    %277 = arith.addf %270, %276 : vector<16x128xf32>
    %c0_90 = arith.constant 0 : index
    %278 = memref.load %arg8[%c0_90] : memref<8xf32, #tpu.memory_space<smem>>
    %279 = vector.broadcast %278 : f32 to vector<16x128xf32>
    %280 = arith.addf %277, %279 : vector<16x128xf32>
    %cst_91 = arith.constant 0.000000e+00 : f32
    %281 = vector.broadcast %cst_91 : f32 to vector<16x128xf32>
    %282 = arith.maximumf %280, %281 : vector<16x128xf32>
    %c1_i32_92 = arith.constant 1 : i32
    %283 = tpu.dynamic_rotate %282 by %c1_i32_92 dim 1 : vector<16x128xf32>, i32 -> vector<16x128xf32>
    %cst_93 = arith.constant 0.000000e+00 : f32
    %284 = vector.broadcast %cst_93 : f32 to vector<16x128xf32>
    %285 = arith.select %9, %283, %284 : vector<16x128xi1>, vector<16x128xf32>
    %c127_i32_94 = arith.constant 127 : i32
    %286 = tpu.dynamic_rotate %282 by %c127_i32_94 dim 1 : vector<16x128xf32>, i32 -> vector<16x128xf32>
    %cst_95 = arith.constant 0.000000e+00 : f32
    %287 = vector.broadcast %cst_95 : f32 to vector<16x128xf32>
    %288 = arith.select %18, %286, %287 : vector<16x128xi1>, vector<16x128xf32>
    %c0_96 = arith.constant 0 : index
    %289 = memref.load %arg4[%c0_96] : memref<192xf32, #tpu.memory_space<smem>>
    %290 = vector.broadcast %289 : f32 to vector<16x128xf32>
    %291 = arith.mulf %290, %285 : vector<16x128xf32>
    %292 = arith.addf %93, %291 : vector<16x128xf32>
    %c64_97 = arith.constant 64 : index
    %293 = memref.load %arg4[%c64_97] : memref<192xf32, #tpu.memory_space<smem>>
    %294 = vector.broadcast %293 : f32 to vector<16x128xf32>
    %295 = arith.mulf %294, %282 : vector<16x128xf32>
    %296 = arith.addf %292, %295 : vector<16x128xf32>
    %c128 = arith.constant 128 : index
    %297 = memref.load %arg4[%c128] : memref<192xf32, #tpu.memory_space<smem>>
    %298 = vector.broadcast %297 : f32 to vector<16x128xf32>
    %299 = arith.mulf %298, %288 : vector<16x128xf32>
    %300 = arith.addf %296, %299 : vector<16x128xf32>
    %c1_98 = arith.constant 1 : index
    %301 = memref.load %arg4[%c1_98] : memref<192xf32, #tpu.memory_space<smem>>
    %302 = vector.broadcast %301 : f32 to vector<16x128xf32>
    %303 = arith.mulf %302, %285 : vector<16x128xf32>
    %304 = arith.addf %108, %303 : vector<16x128xf32>
    %c65 = arith.constant 65 : index
    %305 = memref.load %arg4[%c65] : memref<192xf32, #tpu.memory_space<smem>>
    %306 = vector.broadcast %305 : f32 to vector<16x128xf32>
    %307 = arith.mulf %306, %282 : vector<16x128xf32>
    %308 = arith.addf %304, %307 : vector<16x128xf32>
    %c129 = arith.constant 129 : index
    %309 = memref.load %arg4[%c129] : memref<192xf32, #tpu.memory_space<smem>>
    %310 = vector.broadcast %309 : f32 to vector<16x128xf32>
    %311 = arith.mulf %310, %288 : vector<16x128xf32>
    %312 = arith.addf %308, %311 : vector<16x128xf32>
    %c2_99 = arith.constant 2 : index
    %313 = memref.load %arg4[%c2_99] : memref<192xf32, #tpu.memory_space<smem>>
    %314 = vector.broadcast %313 : f32 to vector<16x128xf32>
    %315 = arith.mulf %314, %285 : vector<16x128xf32>
    %316 = arith.addf %123, %315 : vector<16x128xf32>
    %c66 = arith.constant 66 : index
    %317 = memref.load %arg4[%c66] : memref<192xf32, #tpu.memory_space<smem>>
    %318 = vector.broadcast %317 : f32 to vector<16x128xf32>
    %319 = arith.mulf %318, %282 : vector<16x128xf32>
    %320 = arith.addf %316, %319 : vector<16x128xf32>
    %c130 = arith.constant 130 : index
    %321 = memref.load %arg4[%c130] : memref<192xf32, #tpu.memory_space<smem>>
    %322 = vector.broadcast %321 : f32 to vector<16x128xf32>
    %323 = arith.mulf %322, %288 : vector<16x128xf32>
    %324 = arith.addf %320, %323 : vector<16x128xf32>
    %c3_100 = arith.constant 3 : index
    %325 = memref.load %arg4[%c3_100] : memref<192xf32, #tpu.memory_space<smem>>
    %326 = vector.broadcast %325 : f32 to vector<16x128xf32>
    %327 = arith.mulf %326, %285 : vector<16x128xf32>
    %328 = arith.addf %138, %327 : vector<16x128xf32>
    %c67 = arith.constant 67 : index
    %329 = memref.load %arg4[%c67] : memref<192xf32, #tpu.memory_space<smem>>
    %330 = vector.broadcast %329 : f32 to vector<16x128xf32>
    %331 = arith.mulf %330, %282 : vector<16x128xf32>
    %332 = arith.addf %328, %331 : vector<16x128xf32>
    %c131 = arith.constant 131 : index
    %333 = memref.load %arg4[%c131] : memref<192xf32, #tpu.memory_space<smem>>
    %334 = vector.broadcast %333 : f32 to vector<16x128xf32>
    %335 = arith.mulf %334, %288 : vector<16x128xf32>
    %336 = arith.addf %332, %335 : vector<16x128xf32>
    %c4_101 = arith.constant 4 : index
    %337 = memref.load %arg4[%c4_101] : memref<192xf32, #tpu.memory_space<smem>>
    %338 = vector.broadcast %337 : f32 to vector<16x128xf32>
    %339 = arith.mulf %338, %285 : vector<16x128xf32>
    %340 = arith.addf %153, %339 : vector<16x128xf32>
    %c68 = arith.constant 68 : index
    %341 = memref.load %arg4[%c68] : memref<192xf32, #tpu.memory_space<smem>>
    %342 = vector.broadcast %341 : f32 to vector<16x128xf32>
    %343 = arith.mulf %342, %282 : vector<16x128xf32>
    %344 = arith.addf %340, %343 : vector<16x128xf32>
    %c132 = arith.constant 132 : index
    %345 = memref.load %arg4[%c132] : memref<192xf32, #tpu.memory_space<smem>>
    %346 = vector.broadcast %345 : f32 to vector<16x128xf32>
    %347 = arith.mulf %346, %288 : vector<16x128xf32>
    %348 = arith.addf %344, %347 : vector<16x128xf32>
    %c5_102 = arith.constant 5 : index
    %349 = memref.load %arg4[%c5_102] : memref<192xf32, #tpu.memory_space<smem>>
    %350 = vector.broadcast %349 : f32 to vector<16x128xf32>
    %351 = arith.mulf %350, %285 : vector<16x128xf32>
    %352 = arith.addf %168, %351 : vector<16x128xf32>
    %c69 = arith.constant 69 : index
    %353 = memref.load %arg4[%c69] : memref<192xf32, #tpu.memory_space<smem>>
    %354 = vector.broadcast %353 : f32 to vector<16x128xf32>
    %355 = arith.mulf %354, %282 : vector<16x128xf32>
    %356 = arith.addf %352, %355 : vector<16x128xf32>
    %c133 = arith.constant 133 : index
    %357 = memref.load %arg4[%c133] : memref<192xf32, #tpu.memory_space<smem>>
    %358 = vector.broadcast %357 : f32 to vector<16x128xf32>
    %359 = arith.mulf %358, %288 : vector<16x128xf32>
    %360 = arith.addf %356, %359 : vector<16x128xf32>
    %c6_103 = arith.constant 6 : index
    %361 = memref.load %arg4[%c6_103] : memref<192xf32, #tpu.memory_space<smem>>
    %362 = vector.broadcast %361 : f32 to vector<16x128xf32>
    %363 = arith.mulf %362, %285 : vector<16x128xf32>
    %364 = arith.addf %183, %363 : vector<16x128xf32>
    %c70 = arith.constant 70 : index
    %365 = memref.load %arg4[%c70] : memref<192xf32, #tpu.memory_space<smem>>
    %366 = vector.broadcast %365 : f32 to vector<16x128xf32>
    %367 = arith.mulf %366, %282 : vector<16x128xf32>
    %368 = arith.addf %364, %367 : vector<16x128xf32>
    %c134 = arith.constant 134 : index
    %369 = memref.load %arg4[%c134] : memref<192xf32, #tpu.memory_space<smem>>
    %370 = vector.broadcast %369 : f32 to vector<16x128xf32>
    %371 = arith.mulf %370, %288 : vector<16x128xf32>
    %372 = arith.addf %368, %371 : vector<16x128xf32>
    %c7_104 = arith.constant 7 : index
    %373 = memref.load %arg4[%c7_104] : memref<192xf32, #tpu.memory_space<smem>>
    %374 = vector.broadcast %373 : f32 to vector<16x128xf32>
    %375 = arith.mulf %374, %285 : vector<16x128xf32>
    %376 = arith.addf %198, %375 : vector<16x128xf32>
    %c71 = arith.constant 71 : index
    %377 = memref.load %arg4[%c71] : memref<192xf32, #tpu.memory_space<smem>>
    %378 = vector.broadcast %377 : f32 to vector<16x128xf32>
    %379 = arith.mulf %378, %282 : vector<16x128xf32>
    %380 = arith.addf %376, %379 : vector<16x128xf32>
    %c135 = arith.constant 135 : index
    %381 = memref.load %arg4[%c135] : memref<192xf32, #tpu.memory_space<smem>>
    %382 = vector.broadcast %381 : f32 to vector<16x128xf32>
    %383 = arith.mulf %382, %288 : vector<16x128xf32>
    %384 = arith.addf %380, %383 : vector<16x128xf32>
    %c0_105 = arith.constant 0 : index
    %c0_106 = arith.constant 0 : index
    %c0_107 = arith.constant 0 : index
    %385 = vector.load %arg10[%c0_105, %c0_106, %c0_107] : memref<4x16x128xf32, #tpu.memory_space<vmem>>, vector<1x16x128xf32>
    %386 = vector.shape_cast %385 : vector<1x16x128xf32> to vector<16x128xf32>
    %c1_108 = arith.constant 1 : index
    %387 = memref.load %arg3[%c1_108] : memref<96xf32, #tpu.memory_space<smem>>
    %c1_i32_109 = arith.constant 1 : i32
    %388 = tpu.dynamic_rotate %386 by %c1_i32_109 dim 1 : vector<16x128xf32>, i32 -> vector<16x128xf32>
    %cst_110 = arith.constant 0.000000e+00 : f32
    %389 = vector.broadcast %cst_110 : f32 to vector<16x128xf32>
    %390 = arith.select %9, %388, %389 : vector<16x128xi1>, vector<16x128xf32>
    %391 = vector.broadcast %387 : f32 to vector<16x128xf32>
    %392 = arith.mulf %391, %390 : vector<16x128xf32>
    %c33 = arith.constant 33 : index
    %393 = memref.load %arg3[%c33] : memref<96xf32, #tpu.memory_space<smem>>
    %394 = vector.broadcast %393 : f32 to vector<16x128xf32>
    %395 = arith.mulf %394, %386 : vector<16x128xf32>
    %396 = arith.addf %392, %395 : vector<16x128xf32>
    %c65_111 = arith.constant 65 : index
    %397 = memref.load %arg3[%c65_111] : memref<96xf32, #tpu.memory_space<smem>>
    %c127_i32_112 = arith.constant 127 : i32
    %398 = tpu.dynamic_rotate %386 by %c127_i32_112 dim 1 : vector<16x128xf32>, i32 -> vector<16x128xf32>
    %cst_113 = arith.constant 0.000000e+00 : f32
    %399 = vector.broadcast %cst_113 : f32 to vector<16x128xf32>
    %400 = arith.select %18, %398, %399 : vector<16x128xi1>, vector<16x128xf32>
    %401 = vector.broadcast %397 : f32 to vector<16x128xf32>
    %402 = arith.mulf %401, %400 : vector<16x128xf32>
    %403 = arith.addf %396, %402 : vector<16x128xf32>
    %c1_114 = arith.constant 1 : index
    %c0_115 = arith.constant 0 : index
    %c0_116 = arith.constant 0 : index
    %404 = vector.load %arg10[%c1_114, %c0_115, %c0_116] : memref<4x16x128xf32, #tpu.memory_space<vmem>>, vector<1x16x128xf32>
    %405 = vector.shape_cast %404 : vector<1x16x128xf32> to vector<16x128xf32>
    %c9_117 = arith.constant 9 : index
    %406 = memref.load %arg3[%c9_117] : memref<96xf32, #tpu.memory_space<smem>>
    %c1_i32_118 = arith.constant 1 : i32
    %407 = tpu.dynamic_rotate %405 by %c1_i32_118 dim 1 : vector<16x128xf32>, i32 -> vector<16x128xf32>
    %cst_119 = arith.constant 0.000000e+00 : f32
    %408 = vector.broadcast %cst_119 : f32 to vector<16x128xf32>
    %409 = arith.select %9, %407, %408 : vector<16x128xi1>, vector<16x128xf32>
    %410 = vector.broadcast %406 : f32 to vector<16x128xf32>
    %411 = arith.mulf %410, %409 : vector<16x128xf32>
    %412 = arith.addf %403, %411 : vector<16x128xf32>
    %c41 = arith.constant 41 : index
    %413 = memref.load %arg3[%c41] : memref<96xf32, #tpu.memory_space<smem>>
    %414 = vector.broadcast %413 : f32 to vector<16x128xf32>
    %415 = arith.mulf %414, %405 : vector<16x128xf32>
    %416 = arith.addf %412, %415 : vector<16x128xf32>
    %c73 = arith.constant 73 : index
    %417 = memref.load %arg3[%c73] : memref<96xf32, #tpu.memory_space<smem>>
    %c127_i32_120 = arith.constant 127 : i32
    %418 = tpu.dynamic_rotate %405 by %c127_i32_120 dim 1 : vector<16x128xf32>, i32 -> vector<16x128xf32>
    %cst_121 = arith.constant 0.000000e+00 : f32
    %419 = vector.broadcast %cst_121 : f32 to vector<16x128xf32>
    %420 = arith.select %18, %418, %419 : vector<16x128xi1>, vector<16x128xf32>
    %421 = vector.broadcast %417 : f32 to vector<16x128xf32>
    %422 = arith.mulf %421, %420 : vector<16x128xf32>
    %423 = arith.addf %416, %422 : vector<16x128xf32>
    %c2_122 = arith.constant 2 : index
    %c0_123 = arith.constant 0 : index
    %c0_124 = arith.constant 0 : index
    %424 = vector.load %arg10[%c2_122, %c0_123, %c0_124] : memref<4x16x128xf32, #tpu.memory_space<vmem>>, vector<1x16x128xf32>
    %425 = vector.shape_cast %424 : vector<1x16x128xf32> to vector<16x128xf32>
    %c17_125 = arith.constant 17 : index
    %426 = memref.load %arg3[%c17_125] : memref<96xf32, #tpu.memory_space<smem>>
    %c1_i32_126 = arith.constant 1 : i32
    %427 = tpu.dynamic_rotate %425 by %c1_i32_126 dim 1 : vector<16x128xf32>, i32 -> vector<16x128xf32>
    %cst_127 = arith.constant 0.000000e+00 : f32
    %428 = vector.broadcast %cst_127 : f32 to vector<16x128xf32>
    %429 = arith.select %9, %427, %428 : vector<16x128xi1>, vector<16x128xf32>
    %430 = vector.broadcast %426 : f32 to vector<16x128xf32>
    %431 = arith.mulf %430, %429 : vector<16x128xf32>
    %432 = arith.addf %423, %431 : vector<16x128xf32>
    %c49 = arith.constant 49 : index
    %433 = memref.load %arg3[%c49] : memref<96xf32, #tpu.memory_space<smem>>
    %434 = vector.broadcast %433 : f32 to vector<16x128xf32>
    %435 = arith.mulf %434, %425 : vector<16x128xf32>
    %436 = arith.addf %432, %435 : vector<16x128xf32>
    %c81 = arith.constant 81 : index
    %437 = memref.load %arg3[%c81] : memref<96xf32, #tpu.memory_space<smem>>
    %c127_i32_128 = arith.constant 127 : i32
    %438 = tpu.dynamic_rotate %425 by %c127_i32_128 dim 1 : vector<16x128xf32>, i32 -> vector<16x128xf32>
    %cst_129 = arith.constant 0.000000e+00 : f32
    %439 = vector.broadcast %cst_129 : f32 to vector<16x128xf32>
    %440 = arith.select %18, %438, %439 : vector<16x128xi1>, vector<16x128xf32>
    %441 = vector.broadcast %437 : f32 to vector<16x128xf32>
    %442 = arith.mulf %441, %440 : vector<16x128xf32>
    %443 = arith.addf %436, %442 : vector<16x128xf32>
    %c3_130 = arith.constant 3 : index
    %c0_131 = arith.constant 0 : index
    %c0_132 = arith.constant 0 : index
    %444 = vector.load %arg10[%c3_130, %c0_131, %c0_132] : memref<4x16x128xf32, #tpu.memory_space<vmem>>, vector<1x16x128xf32>
    %445 = vector.shape_cast %444 : vector<1x16x128xf32> to vector<16x128xf32>
    %c25_133 = arith.constant 25 : index
    %446 = memref.load %arg3[%c25_133] : memref<96xf32, #tpu.memory_space<smem>>
    %c1_i32_134 = arith.constant 1 : i32
    %447 = tpu.dynamic_rotate %445 by %c1_i32_134 dim 1 : vector<16x128xf32>, i32 -> vector<16x128xf32>
    %cst_135 = arith.constant 0.000000e+00 : f32
    %448 = vector.broadcast %cst_135 : f32 to vector<16x128xf32>
    %449 = arith.select %9, %447, %448 : vector<16x128xi1>, vector<16x128xf32>
    %450 = vector.broadcast %446 : f32 to vector<16x128xf32>
    %451 = arith.mulf %450, %449 : vector<16x128xf32>
    %452 = arith.addf %443, %451 : vector<16x128xf32>
    %c57 = arith.constant 57 : index
    %453 = memref.load %arg3[%c57] : memref<96xf32, #tpu.memory_space<smem>>
    %454 = vector.broadcast %453 : f32 to vector<16x128xf32>
    %455 = arith.mulf %454, %445 : vector<16x128xf32>
    %456 = arith.addf %452, %455 : vector<16x128xf32>
    %c89 = arith.constant 89 : index
    %457 = memref.load %arg3[%c89] : memref<96xf32, #tpu.memory_space<smem>>
    %c127_i32_136 = arith.constant 127 : i32
    %458 = tpu.dynamic_rotate %445 by %c127_i32_136 dim 1 : vector<16x128xf32>, i32 -> vector<16x128xf32>
    %cst_137 = arith.constant 0.000000e+00 : f32
    %459 = vector.broadcast %cst_137 : f32 to vector<16x128xf32>
    %460 = arith.select %18, %458, %459 : vector<16x128xi1>, vector<16x128xf32>
    %461 = vector.broadcast %457 : f32 to vector<16x128xf32>
    %462 = arith.mulf %461, %460 : vector<16x128xf32>
    %463 = arith.addf %456, %462 : vector<16x128xf32>
    %c1_138 = arith.constant 1 : index
    %464 = memref.load %arg8[%c1_138] : memref<8xf32, #tpu.memory_space<smem>>
    %465 = vector.broadcast %464 : f32 to vector<16x128xf32>
    %466 = arith.addf %463, %465 : vector<16x128xf32>
    %cst_139 = arith.constant 0.000000e+00 : f32
    %467 = vector.broadcast %cst_139 : f32 to vector<16x128xf32>
    %468 = arith.maximumf %466, %467 : vector<16x128xf32>
    %c1_i32_140 = arith.constant 1 : i32
    %469 = tpu.dynamic_rotate %468 by %c1_i32_140 dim 1 : vector<16x128xf32>, i32 -> vector<16x128xf32>
    %cst_141 = arith.constant 0.000000e+00 : f32
    %470 = vector.broadcast %cst_141 : f32 to vector<16x128xf32>
    %471 = arith.select %9, %469, %470 : vector<16x128xi1>, vector<16x128xf32>
    %c127_i32_142 = arith.constant 127 : i32
    %472 = tpu.dynamic_rotate %468 by %c127_i32_142 dim 1 : vector<16x128xf32>, i32 -> vector<16x128xf32>
    %cst_143 = arith.constant 0.000000e+00 : f32
    %473 = vector.broadcast %cst_143 : f32 to vector<16x128xf32>
    %474 = arith.select %18, %472, %473 : vector<16x128xi1>, vector<16x128xf32>
    %c8_144 = arith.constant 8 : index
    %475 = memref.load %arg4[%c8_144] : memref<192xf32, #tpu.memory_space<smem>>
    %476 = vector.broadcast %475 : f32 to vector<16x128xf32>
    %477 = arith.mulf %476, %471 : vector<16x128xf32>
    %478 = arith.addf %300, %477 : vector<16x128xf32>
    %c72_145 = arith.constant 72 : index
    %479 = memref.load %arg4[%c72_145] : memref<192xf32, #tpu.memory_space<smem>>
    %480 = vector.broadcast %479 : f32 to vector<16x128xf32>
    %481 = arith.mulf %480, %468 : vector<16x128xf32>
    %482 = arith.addf %478, %481 : vector<16x128xf32>
    %c136 = arith.constant 136 : index
    %483 = memref.load %arg4[%c136] : memref<192xf32, #tpu.memory_space<smem>>
    %484 = vector.broadcast %483 : f32 to vector<16x128xf32>
    %485 = arith.mulf %484, %474 : vector<16x128xf32>
    %486 = arith.addf %482, %485 : vector<16x128xf32>
    %c9_146 = arith.constant 9 : index
    %487 = memref.load %arg4[%c9_146] : memref<192xf32, #tpu.memory_space<smem>>
    %488 = vector.broadcast %487 : f32 to vector<16x128xf32>
    %489 = arith.mulf %488, %471 : vector<16x128xf32>
    %490 = arith.addf %312, %489 : vector<16x128xf32>
    %c73_147 = arith.constant 73 : index
    %491 = memref.load %arg4[%c73_147] : memref<192xf32, #tpu.memory_space<smem>>
    %492 = vector.broadcast %491 : f32 to vector<16x128xf32>
    %493 = arith.mulf %492, %468 : vector<16x128xf32>
    %494 = arith.addf %490, %493 : vector<16x128xf32>
    %c137 = arith.constant 137 : index
    %495 = memref.load %arg4[%c137] : memref<192xf32, #tpu.memory_space<smem>>
    %496 = vector.broadcast %495 : f32 to vector<16x128xf32>
    %497 = arith.mulf %496, %474 : vector<16x128xf32>
    %498 = arith.addf %494, %497 : vector<16x128xf32>
    %c10_148 = arith.constant 10 : index
    %499 = memref.load %arg4[%c10_148] : memref<192xf32, #tpu.memory_space<smem>>
    %500 = vector.broadcast %499 : f32 to vector<16x128xf32>
    %501 = arith.mulf %500, %471 : vector<16x128xf32>
    %502 = arith.addf %324, %501 : vector<16x128xf32>
    %c74 = arith.constant 74 : index
    %503 = memref.load %arg4[%c74] : memref<192xf32, #tpu.memory_space<smem>>
    %504 = vector.broadcast %503 : f32 to vector<16x128xf32>
    %505 = arith.mulf %504, %468 : vector<16x128xf32>
    %506 = arith.addf %502, %505 : vector<16x128xf32>
    %c138 = arith.constant 138 : index
    %507 = memref.load %arg4[%c138] : memref<192xf32, #tpu.memory_space<smem>>
    %508 = vector.broadcast %507 : f32 to vector<16x128xf32>
    %509 = arith.mulf %508, %474 : vector<16x128xf32>
    %510 = arith.addf %506, %509 : vector<16x128xf32>
    %c11_149 = arith.constant 11 : index
    %511 = memref.load %arg4[%c11_149] : memref<192xf32, #tpu.memory_space<smem>>
    %512 = vector.broadcast %511 : f32 to vector<16x128xf32>
    %513 = arith.mulf %512, %471 : vector<16x128xf32>
    %514 = arith.addf %336, %513 : vector<16x128xf32>
    %c75 = arith.constant 75 : index
    %515 = memref.load %arg4[%c75] : memref<192xf32, #tpu.memory_space<smem>>
    %516 = vector.broadcast %515 : f32 to vector<16x128xf32>
    %517 = arith.mulf %516, %468 : vector<16x128xf32>
    %518 = arith.addf %514, %517 : vector<16x128xf32>
    %c139 = arith.constant 139 : index
    %519 = memref.load %arg4[%c139] : memref<192xf32, #tpu.memory_space<smem>>
    %520 = vector.broadcast %519 : f32 to vector<16x128xf32>
    %521 = arith.mulf %520, %474 : vector<16x128xf32>
    %522 = arith.addf %518, %521 : vector<16x128xf32>
    %c12_150 = arith.constant 12 : index
    %523 = memref.load %arg4[%c12_150] : memref<192xf32, #tpu.memory_space<smem>>
    %524 = vector.broadcast %523 : f32 to vector<16x128xf32>
    %525 = arith.mulf %524, %471 : vector<16x128xf32>
    %526 = arith.addf %348, %525 : vector<16x128xf32>
    %c76 = arith.constant 76 : index
    %527 = memref.load %arg4[%c76] : memref<192xf32, #tpu.memory_space<smem>>
    %528 = vector.broadcast %527 : f32 to vector<16x128xf32>
    %529 = arith.mulf %528, %468 : vector<16x128xf32>
    %530 = arith.addf %526, %529 : vector<16x128xf32>
    %c140 = arith.constant 140 : index
    %531 = memref.load %arg4[%c140] : memref<192xf32, #tpu.memory_space<smem>>
    %532 = vector.broadcast %531 : f32 to vector<16x128xf32>
    %533 = arith.mulf %532, %474 : vector<16x128xf32>
    %534 = arith.addf %530, %533 : vector<16x128xf32>
    %c13_151 = arith.constant 13 : index
    %535 = memref.load %arg4[%c13_151] : memref<192xf32, #tpu.memory_space<smem>>
    %536 = vector.broadcast %535 : f32 to vector<16x128xf32>
    %537 = arith.mulf %536, %471 : vector<16x128xf32>
    %538 = arith.addf %360, %537 : vector<16x128xf32>
    %c77 = arith.constant 77 : index
    %539 = memref.load %arg4[%c77] : memref<192xf32, #tpu.memory_space<smem>>
    %540 = vector.broadcast %539 : f32 to vector<16x128xf32>
    %541 = arith.mulf %540, %468 : vector<16x128xf32>
    %542 = arith.addf %538, %541 : vector<16x128xf32>
    %c141 = arith.constant 141 : index
    %543 = memref.load %arg4[%c141] : memref<192xf32, #tpu.memory_space<smem>>
    %544 = vector.broadcast %543 : f32 to vector<16x128xf32>
    %545 = arith.mulf %544, %474 : vector<16x128xf32>
    %546 = arith.addf %542, %545 : vector<16x128xf32>
    %c14_152 = arith.constant 14 : index
    %547 = memref.load %arg4[%c14_152] : memref<192xf32, #tpu.memory_space<smem>>
    %548 = vector.broadcast %547 : f32 to vector<16x128xf32>
    %549 = arith.mulf %548, %471 : vector<16x128xf32>
    %550 = arith.addf %372, %549 : vector<16x128xf32>
    %c78 = arith.constant 78 : index
    %551 = memref.load %arg4[%c78] : memref<192xf32, #tpu.memory_space<smem>>
    %552 = vector.broadcast %551 : f32 to vector<16x128xf32>
    %553 = arith.mulf %552, %468 : vector<16x128xf32>
    %554 = arith.addf %550, %553 : vector<16x128xf32>
    %c142 = arith.constant 142 : index
    %555 = memref.load %arg4[%c142] : memref<192xf32, #tpu.memory_space<smem>>
    %556 = vector.broadcast %555 : f32 to vector<16x128xf32>
    %557 = arith.mulf %556, %474 : vector<16x128xf32>
    %558 = arith.addf %554, %557 : vector<16x128xf32>
    %c15_153 = arith.constant 15 : index
    %559 = memref.load %arg4[%c15_153] : memref<192xf32, #tpu.memory_space<smem>>
    %560 = vector.broadcast %559 : f32 to vector<16x128xf32>
    %561 = arith.mulf %560, %471 : vector<16x128xf32>
    %562 = arith.addf %384, %561 : vector<16x128xf32>
    %c79 = arith.constant 79 : index
    %563 = memref.load %arg4[%c79] : memref<192xf32, #tpu.memory_space<smem>>
    %564 = vector.broadcast %563 : f32 to vector<16x128xf32>
    %565 = arith.mulf %564, %468 : vector<16x128xf32>
    %566 = arith.addf %562, %565 : vector<16x128xf32>
    %c143 = arith.constant 143 : index
    %567 = memref.load %arg4[%c143] : memref<192xf32, #tpu.memory_space<smem>>
    %568 = vector.broadcast %567 : f32 to vector<16x128xf32>
    %569 = arith.mulf %568, %474 : vector<16x128xf32>
    %570 = arith.addf %566, %569 : vector<16x128xf32>
    %c0_154 = arith.constant 0 : index
    %c0_155 = arith.constant 0 : index
    %c0_156 = arith.constant 0 : index
    %571 = vector.load %arg10[%c0_154, %c0_155, %c0_156] : memref<4x16x128xf32, #tpu.memory_space<vmem>>, vector<1x16x128xf32>
    %572 = vector.shape_cast %571 : vector<1x16x128xf32> to vector<16x128xf32>
    %c2_157 = arith.constant 2 : index
    %573 = memref.load %arg3[%c2_157] : memref<96xf32, #tpu.memory_space<smem>>
    %c1_i32_158 = arith.constant 1 : i32
    %574 = tpu.dynamic_rotate %572 by %c1_i32_158 dim 1 : vector<16x128xf32>, i32 -> vector<16x128xf32>
    %cst_159 = arith.constant 0.000000e+00 : f32
    %575 = vector.broadcast %cst_159 : f32 to vector<16x128xf32>
    %576 = arith.select %9, %574, %575 : vector<16x128xi1>, vector<16x128xf32>
    %577 = vector.broadcast %573 : f32 to vector<16x128xf32>
    %578 = arith.mulf %577, %576 : vector<16x128xf32>
    %c34 = arith.constant 34 : index
    %579 = memref.load %arg3[%c34] : memref<96xf32, #tpu.memory_space<smem>>
    %580 = vector.broadcast %579 : f32 to vector<16x128xf32>
    %581 = arith.mulf %580, %572 : vector<16x128xf32>
    %582 = arith.addf %578, %581 : vector<16x128xf32>
    %c66_160 = arith.constant 66 : index
    %583 = memref.load %arg3[%c66_160] : memref<96xf32, #tpu.memory_space<smem>>
    %c127_i32_161 = arith.constant 127 : i32
    %584 = tpu.dynamic_rotate %572 by %c127_i32_161 dim 1 : vector<16x128xf32>, i32 -> vector<16x128xf32>
    %cst_162 = arith.constant 0.000000e+00 : f32
    %585 = vector.broadcast %cst_162 : f32 to vector<16x128xf32>
    %586 = arith.select %18, %584, %585 : vector<16x128xi1>, vector<16x128xf32>
    %587 = vector.broadcast %583 : f32 to vector<16x128xf32>
    %588 = arith.mulf %587, %586 : vector<16x128xf32>
    %589 = arith.addf %582, %588 : vector<16x128xf32>
    %c1_163 = arith.constant 1 : index
    %c0_164 = arith.constant 0 : index
    %c0_165 = arith.constant 0 : index
    %590 = vector.load %arg10[%c1_163, %c0_164, %c0_165] : memref<4x16x128xf32, #tpu.memory_space<vmem>>, vector<1x16x128xf32>
    %591 = vector.shape_cast %590 : vector<1x16x128xf32> to vector<16x128xf32>
    %c10_166 = arith.constant 10 : index
    %592 = memref.load %arg3[%c10_166] : memref<96xf32, #tpu.memory_space<smem>>
    %c1_i32_167 = arith.constant 1 : i32
    %593 = tpu.dynamic_rotate %591 by %c1_i32_167 dim 1 : vector<16x128xf32>, i32 -> vector<16x128xf32>
    %cst_168 = arith.constant 0.000000e+00 : f32
    %594 = vector.broadcast %cst_168 : f32 to vector<16x128xf32>
    %595 = arith.select %9, %593, %594 : vector<16x128xi1>, vector<16x128xf32>
    %596 = vector.broadcast %592 : f32 to vector<16x128xf32>
    %597 = arith.mulf %596, %595 : vector<16x128xf32>
    %598 = arith.addf %589, %597 : vector<16x128xf32>
    %c42 = arith.constant 42 : index
    %599 = memref.load %arg3[%c42] : memref<96xf32, #tpu.memory_space<smem>>
    %600 = vector.broadcast %599 : f32 to vector<16x128xf32>
    %601 = arith.mulf %600, %591 : vector<16x128xf32>
    %602 = arith.addf %598, %601 : vector<16x128xf32>
    %c74_169 = arith.constant 74 : index
    %603 = memref.load %arg3[%c74_169] : memref<96xf32, #tpu.memory_space<smem>>
    %c127_i32_170 = arith.constant 127 : i32
    %604 = tpu.dynamic_rotate %591 by %c127_i32_170 dim 1 : vector<16x128xf32>, i32 -> vector<16x128xf32>
    %cst_171 = arith.constant 0.000000e+00 : f32
    %605 = vector.broadcast %cst_171 : f32 to vector<16x128xf32>
    %606 = arith.select %18, %604, %605 : vector<16x128xi1>, vector<16x128xf32>
    %607 = vector.broadcast %603 : f32 to vector<16x128xf32>
    %608 = arith.mulf %607, %606 : vector<16x128xf32>
    %609 = arith.addf %602, %608 : vector<16x128xf32>
    %c2_172 = arith.constant 2 : index
    %c0_173 = arith.constant 0 : index
    %c0_174 = arith.constant 0 : index
    %610 = vector.load %arg10[%c2_172, %c0_173, %c0_174] : memref<4x16x128xf32, #tpu.memory_space<vmem>>, vector<1x16x128xf32>
    %611 = vector.shape_cast %610 : vector<1x16x128xf32> to vector<16x128xf32>
    %c18_175 = arith.constant 18 : index
    %612 = memref.load %arg3[%c18_175] : memref<96xf32, #tpu.memory_space<smem>>
    %c1_i32_176 = arith.constant 1 : i32
    %613 = tpu.dynamic_rotate %611 by %c1_i32_176 dim 1 : vector<16x128xf32>, i32 -> vector<16x128xf32>
    %cst_177 = arith.constant 0.000000e+00 : f32
    %614 = vector.broadcast %cst_177 : f32 to vector<16x128xf32>
    %615 = arith.select %9, %613, %614 : vector<16x128xi1>, vector<16x128xf32>
    %616 = vector.broadcast %612 : f32 to vector<16x128xf32>
    %617 = arith.mulf %616, %615 : vector<16x128xf32>
    %618 = arith.addf %609, %617 : vector<16x128xf32>
    %c50 = arith.constant 50 : index
    %619 = memref.load %arg3[%c50] : memref<96xf32, #tpu.memory_space<smem>>
    %620 = vector.broadcast %619 : f32 to vector<16x128xf32>
    %621 = arith.mulf %620, %611 : vector<16x128xf32>
    %622 = arith.addf %618, %621 : vector<16x128xf32>
    %c82 = arith.constant 82 : index
    %623 = memref.load %arg3[%c82] : memref<96xf32, #tpu.memory_space<smem>>
    %c127_i32_178 = arith.constant 127 : i32
    %624 = tpu.dynamic_rotate %611 by %c127_i32_178 dim 1 : vector<16x128xf32>, i32 -> vector<16x128xf32>
    %cst_179 = arith.constant 0.000000e+00 : f32
    %625 = vector.broadcast %cst_179 : f32 to vector<16x128xf32>
    %626 = arith.select %18, %624, %625 : vector<16x128xi1>, vector<16x128xf32>
    %627 = vector.broadcast %623 : f32 to vector<16x128xf32>
    %628 = arith.mulf %627, %626 : vector<16x128xf32>
    %629 = arith.addf %622, %628 : vector<16x128xf32>
    %c3_180 = arith.constant 3 : index
    %c0_181 = arith.constant 0 : index
    %c0_182 = arith.constant 0 : index
    %630 = vector.load %arg10[%c3_180, %c0_181, %c0_182] : memref<4x16x128xf32, #tpu.memory_space<vmem>>, vector<1x16x128xf32>
    %631 = vector.shape_cast %630 : vector<1x16x128xf32> to vector<16x128xf32>
    %c26_183 = arith.constant 26 : index
    %632 = memref.load %arg3[%c26_183] : memref<96xf32, #tpu.memory_space<smem>>
    %c1_i32_184 = arith.constant 1 : i32
    %633 = tpu.dynamic_rotate %631 by %c1_i32_184 dim 1 : vector<16x128xf32>, i32 -> vector<16x128xf32>
    %cst_185 = arith.constant 0.000000e+00 : f32
    %634 = vector.broadcast %cst_185 : f32 to vector<16x128xf32>
    %635 = arith.select %9, %633, %634 : vector<16x128xi1>, vector<16x128xf32>
    %636 = vector.broadcast %632 : f32 to vector<16x128xf32>
    %637 = arith.mulf %636, %635 : vector<16x128xf32>
    %638 = arith.addf %629, %637 : vector<16x128xf32>
    %c58 = arith.constant 58 : index
    %639 = memref.load %arg3[%c58] : memref<96xf32, #tpu.memory_space<smem>>
    %640 = vector.broadcast %639 : f32 to vector<16x128xf32>
    %641 = arith.mulf %640, %631 : vector<16x128xf32>
    %642 = arith.addf %638, %641 : vector<16x128xf32>
    %c90 = arith.constant 90 : index
    %643 = memref.load %arg3[%c90] : memref<96xf32, #tpu.memory_space<smem>>
    %c127_i32_186 = arith.constant 127 : i32
    %644 = tpu.dynamic_rotate %631 by %c127_i32_186 dim 1 : vector<16x128xf32>, i32 -> vector<16x128xf32>
    %cst_187 = arith.constant 0.000000e+00 : f32
    %645 = vector.broadcast %cst_187 : f32 to vector<16x128xf32>
    %646 = arith.select %18, %644, %645 : vector<16x128xi1>, vector<16x128xf32>
    %647 = vector.broadcast %643 : f32 to vector<16x128xf32>
    %648 = arith.mulf %647, %646 : vector<16x128xf32>
    %649 = arith.addf %642, %648 : vector<16x128xf32>
    %c2_188 = arith.constant 2 : index
    %650 = memref.load %arg8[%c2_188] : memref<8xf32, #tpu.memory_space<smem>>
    %651 = vector.broadcast %650 : f32 to vector<16x128xf32>
    %652 = arith.addf %649, %651 : vector<16x128xf32>
    %cst_189 = arith.constant 0.000000e+00 : f32
    %653 = vector.broadcast %cst_189 : f32 to vector<16x128xf32>
    %654 = arith.maximumf %652, %653 : vector<16x128xf32>
    %c1_i32_190 = arith.constant 1 : i32
    %655 = tpu.dynamic_rotate %654 by %c1_i32_190 dim 1 : vector<16x128xf32>, i32 -> vector<16x128xf32>
    %cst_191 = arith.constant 0.000000e+00 : f32
    %656 = vector.broadcast %cst_191 : f32 to vector<16x128xf32>
    %657 = arith.select %9, %655, %656 : vector<16x128xi1>, vector<16x128xf32>
    %c127_i32_192 = arith.constant 127 : i32
    %658 = tpu.dynamic_rotate %654 by %c127_i32_192 dim 1 : vector<16x128xf32>, i32 -> vector<16x128xf32>
    %cst_193 = arith.constant 0.000000e+00 : f32
    %659 = vector.broadcast %cst_193 : f32 to vector<16x128xf32>
    %660 = arith.select %18, %658, %659 : vector<16x128xi1>, vector<16x128xf32>
    %c16_194 = arith.constant 16 : index
    %661 = memref.load %arg4[%c16_194] : memref<192xf32, #tpu.memory_space<smem>>
    %662 = vector.broadcast %661 : f32 to vector<16x128xf32>
    %663 = arith.mulf %662, %657 : vector<16x128xf32>
    %664 = arith.addf %486, %663 : vector<16x128xf32>
    %c80_195 = arith.constant 80 : index
    %665 = memref.load %arg4[%c80_195] : memref<192xf32, #tpu.memory_space<smem>>
    %666 = vector.broadcast %665 : f32 to vector<16x128xf32>
    %667 = arith.mulf %666, %654 : vector<16x128xf32>
    %668 = arith.addf %664, %667 : vector<16x128xf32>
    %c144 = arith.constant 144 : index
    %669 = memref.load %arg4[%c144] : memref<192xf32, #tpu.memory_space<smem>>
    %670 = vector.broadcast %669 : f32 to vector<16x128xf32>
    %671 = arith.mulf %670, %660 : vector<16x128xf32>
    %672 = arith.addf %668, %671 : vector<16x128xf32>
    %c17_196 = arith.constant 17 : index
    %673 = memref.load %arg4[%c17_196] : memref<192xf32, #tpu.memory_space<smem>>
    %674 = vector.broadcast %673 : f32 to vector<16x128xf32>
    %675 = arith.mulf %674, %657 : vector<16x128xf32>
    %676 = arith.addf %498, %675 : vector<16x128xf32>
    %c81_197 = arith.constant 81 : index
    %677 = memref.load %arg4[%c81_197] : memref<192xf32, #tpu.memory_space<smem>>
    %678 = vector.broadcast %677 : f32 to vector<16x128xf32>
    %679 = arith.mulf %678, %654 : vector<16x128xf32>
    %680 = arith.addf %676, %679 : vector<16x128xf32>
    %c145 = arith.constant 145 : index
    %681 = memref.load %arg4[%c145] : memref<192xf32, #tpu.memory_space<smem>>
    %682 = vector.broadcast %681 : f32 to vector<16x128xf32>
    %683 = arith.mulf %682, %660 : vector<16x128xf32>
    %684 = arith.addf %680, %683 : vector<16x128xf32>
    %c18_198 = arith.constant 18 : index
    %685 = memref.load %arg4[%c18_198] : memref<192xf32, #tpu.memory_space<smem>>
    %686 = vector.broadcast %685 : f32 to vector<16x128xf32>
    %687 = arith.mulf %686, %657 : vector<16x128xf32>
    %688 = arith.addf %510, %687 : vector<16x128xf32>
    %c82_199 = arith.constant 82 : index
    %689 = memref.load %arg4[%c82_199] : memref<192xf32, #tpu.memory_space<smem>>
    %690 = vector.broadcast %689 : f32 to vector<16x128xf32>
    %691 = arith.mulf %690, %654 : vector<16x128xf32>
    %692 = arith.addf %688, %691 : vector<16x128xf32>
    %c146 = arith.constant 146 : index
    %693 = memref.load %arg4[%c146] : memref<192xf32, #tpu.memory_space<smem>>
    %694 = vector.broadcast %693 : f32 to vector<16x128xf32>
    %695 = arith.mulf %694, %660 : vector<16x128xf32>
    %696 = arith.addf %692, %695 : vector<16x128xf32>
    %c19_200 = arith.constant 19 : index
    %697 = memref.load %arg4[%c19_200] : memref<192xf32, #tpu.memory_space<smem>>
    %698 = vector.broadcast %697 : f32 to vector<16x128xf32>
    %699 = arith.mulf %698, %657 : vector<16x128xf32>
    %700 = arith.addf %522, %699 : vector<16x128xf32>
    %c83 = arith.constant 83 : index
    %701 = memref.load %arg4[%c83] : memref<192xf32, #tpu.memory_space<smem>>
    %702 = vector.broadcast %701 : f32 to vector<16x128xf32>
    %703 = arith.mulf %702, %654 : vector<16x128xf32>
    %704 = arith.addf %700, %703 : vector<16x128xf32>
    %c147 = arith.constant 147 : index
    %705 = memref.load %arg4[%c147] : memref<192xf32, #tpu.memory_space<smem>>
    %706 = vector.broadcast %705 : f32 to vector<16x128xf32>
    %707 = arith.mulf %706, %660 : vector<16x128xf32>
    %708 = arith.addf %704, %707 : vector<16x128xf32>
    %c20_201 = arith.constant 20 : index
    %709 = memref.load %arg4[%c20_201] : memref<192xf32, #tpu.memory_space<smem>>
    %710 = vector.broadcast %709 : f32 to vector<16x128xf32>
    %711 = arith.mulf %710, %657 : vector<16x128xf32>
    %712 = arith.addf %534, %711 : vector<16x128xf32>
    %c84 = arith.constant 84 : index
    %713 = memref.load %arg4[%c84] : memref<192xf32, #tpu.memory_space<smem>>
    %714 = vector.broadcast %713 : f32 to vector<16x128xf32>
    %715 = arith.mulf %714, %654 : vector<16x128xf32>
    %716 = arith.addf %712, %715 : vector<16x128xf32>
    %c148 = arith.constant 148 : index
    %717 = memref.load %arg4[%c148] : memref<192xf32, #tpu.memory_space<smem>>
    %718 = vector.broadcast %717 : f32 to vector<16x128xf32>
    %719 = arith.mulf %718, %660 : vector<16x128xf32>
    %720 = arith.addf %716, %719 : vector<16x128xf32>
    %c21_202 = arith.constant 21 : index
    %721 = memref.load %arg4[%c21_202] : memref<192xf32, #tpu.memory_space<smem>>
    %722 = vector.broadcast %721 : f32 to vector<16x128xf32>
    %723 = arith.mulf %722, %657 : vector<16x128xf32>
    %724 = arith.addf %546, %723 : vector<16x128xf32>
    %c85 = arith.constant 85 : index
    %725 = memref.load %arg4[%c85] : memref<192xf32, #tpu.memory_space<smem>>
    %726 = vector.broadcast %725 : f32 to vector<16x128xf32>
    %727 = arith.mulf %726, %654 : vector<16x128xf32>
    %728 = arith.addf %724, %727 : vector<16x128xf32>
    %c149 = arith.constant 149 : index
    %729 = memref.load %arg4[%c149] : memref<192xf32, #tpu.memory_space<smem>>
    %730 = vector.broadcast %729 : f32 to vector<16x128xf32>
    %731 = arith.mulf %730, %660 : vector<16x128xf32>
    %732 = arith.addf %728, %731 : vector<16x128xf32>
    %c22_203 = arith.constant 22 : index
    %733 = memref.load %arg4[%c22_203] : memref<192xf32, #tpu.memory_space<smem>>
    %734 = vector.broadcast %733 : f32 to vector<16x128xf32>
    %735 = arith.mulf %734, %657 : vector<16x128xf32>
    %736 = arith.addf %558, %735 : vector<16x128xf32>
    %c86 = arith.constant 86 : index
    %737 = memref.load %arg4[%c86] : memref<192xf32, #tpu.memory_space<smem>>
    %738 = vector.broadcast %737 : f32 to vector<16x128xf32>
    %739 = arith.mulf %738, %654 : vector<16x128xf32>
    %740 = arith.addf %736, %739 : vector<16x128xf32>
    %c150 = arith.constant 150 : index
    %741 = memref.load %arg4[%c150] : memref<192xf32, #tpu.memory_space<smem>>
    %742 = vector.broadcast %741 : f32 to vector<16x128xf32>
    %743 = arith.mulf %742, %660 : vector<16x128xf32>
    %744 = arith.addf %740, %743 : vector<16x128xf32>
    %c23_204 = arith.constant 23 : index
    %745 = memref.load %arg4[%c23_204] : memref<192xf32, #tpu.memory_space<smem>>
    %746 = vector.broadcast %745 : f32 to vector<16x128xf32>
    %747 = arith.mulf %746, %657 : vector<16x128xf32>
    %748 = arith.addf %570, %747 : vector<16x128xf32>
    %c87 = arith.constant 87 : index
    %749 = memref.load %arg4[%c87] : memref<192xf32, #tpu.memory_space<smem>>
    %750 = vector.broadcast %749 : f32 to vector<16x128xf32>
    %751 = arith.mulf %750, %654 : vector<16x128xf32>
    %752 = arith.addf %748, %751 : vector<16x128xf32>
    %c151 = arith.constant 151 : index
    %753 = memref.load %arg4[%c151] : memref<192xf32, #tpu.memory_space<smem>>
    %754 = vector.broadcast %753 : f32 to vector<16x128xf32>
    %755 = arith.mulf %754, %660 : vector<16x128xf32>
    %756 = arith.addf %752, %755 : vector<16x128xf32>
    %c0_205 = arith.constant 0 : index
    %c0_206 = arith.constant 0 : index
    %c0_207 = arith.constant 0 : index
    %757 = vector.load %arg10[%c0_205, %c0_206, %c0_207] : memref<4x16x128xf32, #tpu.memory_space<vmem>>, vector<1x16x128xf32>
    %758 = vector.shape_cast %757 : vector<1x16x128xf32> to vector<16x128xf32>
    %c3_208 = arith.constant 3 : index
    %759 = memref.load %arg3[%c3_208] : memref<96xf32, #tpu.memory_space<smem>>
    %c1_i32_209 = arith.constant 1 : i32
    %760 = tpu.dynamic_rotate %758 by %c1_i32_209 dim 1 : vector<16x128xf32>, i32 -> vector<16x128xf32>
    %cst_210 = arith.constant 0.000000e+00 : f32
    %761 = vector.broadcast %cst_210 : f32 to vector<16x128xf32>
    %762 = arith.select %9, %760, %761 : vector<16x128xi1>, vector<16x128xf32>
    %763 = vector.broadcast %759 : f32 to vector<16x128xf32>
    %764 = arith.mulf %763, %762 : vector<16x128xf32>
    %c35 = arith.constant 35 : index
    %765 = memref.load %arg3[%c35] : memref<96xf32, #tpu.memory_space<smem>>
    %766 = vector.broadcast %765 : f32 to vector<16x128xf32>
    %767 = arith.mulf %766, %758 : vector<16x128xf32>
    %768 = arith.addf %764, %767 : vector<16x128xf32>
    %c67_211 = arith.constant 67 : index
    %769 = memref.load %arg3[%c67_211] : memref<96xf32, #tpu.memory_space<smem>>
    %c127_i32_212 = arith.constant 127 : i32
    %770 = tpu.dynamic_rotate %758 by %c127_i32_212 dim 1 : vector<16x128xf32>, i32 -> vector<16x128xf32>
    %cst_213 = arith.constant 0.000000e+00 : f32
    %771 = vector.broadcast %cst_213 : f32 to vector<16x128xf32>
    %772 = arith.select %18, %770, %771 : vector<16x128xi1>, vector<16x128xf32>
    %773 = vector.broadcast %769 : f32 to vector<16x128xf32>
    %774 = arith.mulf %773, %772 : vector<16x128xf32>
    %775 = arith.addf %768, %774 : vector<16x128xf32>
    %c1_214 = arith.constant 1 : index
    %c0_215 = arith.constant 0 : index
    %c0_216 = arith.constant 0 : index
    %776 = vector.load %arg10[%c1_214, %c0_215, %c0_216] : memref<4x16x128xf32, #tpu.memory_space<vmem>>, vector<1x16x128xf32>
    %777 = vector.shape_cast %776 : vector<1x16x128xf32> to vector<16x128xf32>
    %c11_217 = arith.constant 11 : index
    %778 = memref.load %arg3[%c11_217] : memref<96xf32, #tpu.memory_space<smem>>
    %c1_i32_218 = arith.constant 1 : i32
    %779 = tpu.dynamic_rotate %777 by %c1_i32_218 dim 1 : vector<16x128xf32>, i32 -> vector<16x128xf32>
    %cst_219 = arith.constant 0.000000e+00 : f32
    %780 = vector.broadcast %cst_219 : f32 to vector<16x128xf32>
    %781 = arith.select %9, %779, %780 : vector<16x128xi1>, vector<16x128xf32>
    %782 = vector.broadcast %778 : f32 to vector<16x128xf32>
    %783 = arith.mulf %782, %781 : vector<16x128xf32>
    %784 = arith.addf %775, %783 : vector<16x128xf32>
    %c43 = arith.constant 43 : index
    %785 = memref.load %arg3[%c43] : memref<96xf32, #tpu.memory_space<smem>>
    %786 = vector.broadcast %785 : f32 to vector<16x128xf32>
    %787 = arith.mulf %786, %777 : vector<16x128xf32>
    %788 = arith.addf %784, %787 : vector<16x128xf32>
    %c75_220 = arith.constant 75 : index
    %789 = memref.load %arg3[%c75_220] : memref<96xf32, #tpu.memory_space<smem>>
    %c127_i32_221 = arith.constant 127 : i32
    %790 = tpu.dynamic_rotate %777 by %c127_i32_221 dim 1 : vector<16x128xf32>, i32 -> vector<16x128xf32>
    %cst_222 = arith.constant 0.000000e+00 : f32
    %791 = vector.broadcast %cst_222 : f32 to vector<16x128xf32>
    %792 = arith.select %18, %790, %791 : vector<16x128xi1>, vector<16x128xf32>
    %793 = vector.broadcast %789 : f32 to vector<16x128xf32>
    %794 = arith.mulf %793, %792 : vector<16x128xf32>
    %795 = arith.addf %788, %794 : vector<16x128xf32>
    %c2_223 = arith.constant 2 : index
    %c0_224 = arith.constant 0 : index
    %c0_225 = arith.constant 0 : index
    %796 = vector.load %arg10[%c2_223, %c0_224, %c0_225] : memref<4x16x128xf32, #tpu.memory_space<vmem>>, vector<1x16x128xf32>
    %797 = vector.shape_cast %796 : vector<1x16x128xf32> to vector<16x128xf32>
    %c19_226 = arith.constant 19 : index
    %798 = memref.load %arg3[%c19_226] : memref<96xf32, #tpu.memory_space<smem>>
    %c1_i32_227 = arith.constant 1 : i32
    %799 = tpu.dynamic_rotate %797 by %c1_i32_227 dim 1 : vector<16x128xf32>, i32 -> vector<16x128xf32>
    %cst_228 = arith.constant 0.000000e+00 : f32
    %800 = vector.broadcast %cst_228 : f32 to vector<16x128xf32>
    %801 = arith.select %9, %799, %800 : vector<16x128xi1>, vector<16x128xf32>
    %802 = vector.broadcast %798 : f32 to vector<16x128xf32>
    %803 = arith.mulf %802, %801 : vector<16x128xf32>
    %804 = arith.addf %795, %803 : vector<16x128xf32>
    %c51 = arith.constant 51 : index
    %805 = memref.load %arg3[%c51] : memref<96xf32, #tpu.memory_space<smem>>
    %806 = vector.broadcast %805 : f32 to vector<16x128xf32>
    %807 = arith.mulf %806, %797 : vector<16x128xf32>
    %808 = arith.addf %804, %807 : vector<16x128xf32>
    %c83_229 = arith.constant 83 : index
    %809 = memref.load %arg3[%c83_229] : memref<96xf32, #tpu.memory_space<smem>>
    %c127_i32_230 = arith.constant 127 : i32
    %810 = tpu.dynamic_rotate %797 by %c127_i32_230 dim 1 : vector<16x128xf32>, i32 -> vector<16x128xf32>
    %cst_231 = arith.constant 0.000000e+00 : f32
    %811 = vector.broadcast %cst_231 : f32 to vector<16x128xf32>
    %812 = arith.select %18, %810, %811 : vector<16x128xi1>, vector<16x128xf32>
    %813 = vector.broadcast %809 : f32 to vector<16x128xf32>
    %814 = arith.mulf %813, %812 : vector<16x128xf32>
    %815 = arith.addf %808, %814 : vector<16x128xf32>
    %c3_232 = arith.constant 3 : index
    %c0_233 = arith.constant 0 : index
    %c0_234 = arith.constant 0 : index
    %816 = vector.load %arg10[%c3_232, %c0_233, %c0_234] : memref<4x16x128xf32, #tpu.memory_space<vmem>>, vector<1x16x128xf32>
    %817 = vector.shape_cast %816 : vector<1x16x128xf32> to vector<16x128xf32>
    %c27_235 = arith.constant 27 : index
    %818 = memref.load %arg3[%c27_235] : memref<96xf32, #tpu.memory_space<smem>>
    %c1_i32_236 = arith.constant 1 : i32
    %819 = tpu.dynamic_rotate %817 by %c1_i32_236 dim 1 : vector<16x128xf32>, i32 -> vector<16x128xf32>
    %cst_237 = arith.constant 0.000000e+00 : f32
    %820 = vector.broadcast %cst_237 : f32 to vector<16x128xf32>
    %821 = arith.select %9, %819, %820 : vector<16x128xi1>, vector<16x128xf32>
    %822 = vector.broadcast %818 : f32 to vector<16x128xf32>
    %823 = arith.mulf %822, %821 : vector<16x128xf32>
    %824 = arith.addf %815, %823 : vector<16x128xf32>
    %c59 = arith.constant 59 : index
    %825 = memref.load %arg3[%c59] : memref<96xf32, #tpu.memory_space<smem>>
    %826 = vector.broadcast %825 : f32 to vector<16x128xf32>
    %827 = arith.mulf %826, %817 : vector<16x128xf32>
    %828 = arith.addf %824, %827 : vector<16x128xf32>
    %c91 = arith.constant 91 : index
    %829 = memref.load %arg3[%c91] : memref<96xf32, #tpu.memory_space<smem>>
    %c127_i32_238 = arith.constant 127 : i32
    %830 = tpu.dynamic_rotate %817 by %c127_i32_238 dim 1 : vector<16x128xf32>, i32 -> vector<16x128xf32>
    %cst_239 = arith.constant 0.000000e+00 : f32
    %831 = vector.broadcast %cst_239 : f32 to vector<16x128xf32>
    %832 = arith.select %18, %830, %831 : vector<16x128xi1>, vector<16x128xf32>
    %833 = vector.broadcast %829 : f32 to vector<16x128xf32>
    %834 = arith.mulf %833, %832 : vector<16x128xf32>
    %835 = arith.addf %828, %834 : vector<16x128xf32>
    %c3_240 = arith.constant 3 : index
    %836 = memref.load %arg8[%c3_240] : memref<8xf32, #tpu.memory_space<smem>>
    %837 = vector.broadcast %836 : f32 to vector<16x128xf32>
    %838 = arith.addf %835, %837 : vector<16x128xf32>
    %cst_241 = arith.constant 0.000000e+00 : f32
    %839 = vector.broadcast %cst_241 : f32 to vector<16x128xf32>
    %840 = arith.maximumf %838, %839 : vector<16x128xf32>
    %c1_i32_242 = arith.constant 1 : i32
    %841 = tpu.dynamic_rotate %840 by %c1_i32_242 dim 1 : vector<16x128xf32>, i32 -> vector<16x128xf32>
    %cst_243 = arith.constant 0.000000e+00 : f32
    %842 = vector.broadcast %cst_243 : f32 to vector<16x128xf32>
    %843 = arith.select %9, %841, %842 : vector<16x128xi1>, vector<16x128xf32>
    %c127_i32_244 = arith.constant 127 : i32
    %844 = tpu.dynamic_rotate %840 by %c127_i32_244 dim 1 : vector<16x128xf32>, i32 -> vector<16x128xf32>
    %cst_245 = arith.constant 0.000000e+00 : f32
    %845 = vector.broadcast %cst_245 : f32 to vector<16x128xf32>
    %846 = arith.select %18, %844, %845 : vector<16x128xi1>, vector<16x128xf32>
    %c24_246 = arith.constant 24 : index
    %847 = memref.load %arg4[%c24_246] : memref<192xf32, #tpu.memory_space<smem>>
    %848 = vector.broadcast %847 : f32 to vector<16x128xf32>
    %849 = arith.mulf %848, %843 : vector<16x128xf32>
    %850 = arith.addf %672, %849 : vector<16x128xf32>
    %c88_247 = arith.constant 88 : index
    %851 = memref.load %arg4[%c88_247] : memref<192xf32, #tpu.memory_space<smem>>
    %852 = vector.broadcast %851 : f32 to vector<16x128xf32>
    %853 = arith.mulf %852, %840 : vector<16x128xf32>
    %854 = arith.addf %850, %853 : vector<16x128xf32>
    %c152 = arith.constant 152 : index
    %855 = memref.load %arg4[%c152] : memref<192xf32, #tpu.memory_space<smem>>
    %856 = vector.broadcast %855 : f32 to vector<16x128xf32>
    %857 = arith.mulf %856, %846 : vector<16x128xf32>
    %858 = arith.addf %854, %857 : vector<16x128xf32>
    %c25_248 = arith.constant 25 : index
    %859 = memref.load %arg4[%c25_248] : memref<192xf32, #tpu.memory_space<smem>>
    %860 = vector.broadcast %859 : f32 to vector<16x128xf32>
    %861 = arith.mulf %860, %843 : vector<16x128xf32>
    %862 = arith.addf %684, %861 : vector<16x128xf32>
    %c89_249 = arith.constant 89 : index
    %863 = memref.load %arg4[%c89_249] : memref<192xf32, #tpu.memory_space<smem>>
    %864 = vector.broadcast %863 : f32 to vector<16x128xf32>
    %865 = arith.mulf %864, %840 : vector<16x128xf32>
    %866 = arith.addf %862, %865 : vector<16x128xf32>
    %c153 = arith.constant 153 : index
    %867 = memref.load %arg4[%c153] : memref<192xf32, #tpu.memory_space<smem>>
    %868 = vector.broadcast %867 : f32 to vector<16x128xf32>
    %869 = arith.mulf %868, %846 : vector<16x128xf32>
    %870 = arith.addf %866, %869 : vector<16x128xf32>
    %c26_250 = arith.constant 26 : index
    %871 = memref.load %arg4[%c26_250] : memref<192xf32, #tpu.memory_space<smem>>
    %872 = vector.broadcast %871 : f32 to vector<16x128xf32>
    %873 = arith.mulf %872, %843 : vector<16x128xf32>
    %874 = arith.addf %696, %873 : vector<16x128xf32>
    %c90_251 = arith.constant 90 : index
    %875 = memref.load %arg4[%c90_251] : memref<192xf32, #tpu.memory_space<smem>>
    %876 = vector.broadcast %875 : f32 to vector<16x128xf32>
    %877 = arith.mulf %876, %840 : vector<16x128xf32>
    %878 = arith.addf %874, %877 : vector<16x128xf32>
    %c154 = arith.constant 154 : index
    %879 = memref.load %arg4[%c154] : memref<192xf32, #tpu.memory_space<smem>>
    %880 = vector.broadcast %879 : f32 to vector<16x128xf32>
    %881 = arith.mulf %880, %846 : vector<16x128xf32>
    %882 = arith.addf %878, %881 : vector<16x128xf32>
    %c27_252 = arith.constant 27 : index
    %883 = memref.load %arg4[%c27_252] : memref<192xf32, #tpu.memory_space<smem>>
    %884 = vector.broadcast %883 : f32 to vector<16x128xf32>
    %885 = arith.mulf %884, %843 : vector<16x128xf32>
    %886 = arith.addf %708, %885 : vector<16x128xf32>
    %c91_253 = arith.constant 91 : index
    %887 = memref.load %arg4[%c91_253] : memref<192xf32, #tpu.memory_space<smem>>
    %888 = vector.broadcast %887 : f32 to vector<16x128xf32>
    %889 = arith.mulf %888, %840 : vector<16x128xf32>
    %890 = arith.addf %886, %889 : vector<16x128xf32>
    %c155 = arith.constant 155 : index
    %891 = memref.load %arg4[%c155] : memref<192xf32, #tpu.memory_space<smem>>
    %892 = vector.broadcast %891 : f32 to vector<16x128xf32>
    %893 = arith.mulf %892, %846 : vector<16x128xf32>
    %894 = arith.addf %890, %893 : vector<16x128xf32>
    %c28_254 = arith.constant 28 : index
    %895 = memref.load %arg4[%c28_254] : memref<192xf32, #tpu.memory_space<smem>>
    %896 = vector.broadcast %895 : f32 to vector<16x128xf32>
    %897 = arith.mulf %896, %843 : vector<16x128xf32>
    %898 = arith.addf %720, %897 : vector<16x128xf32>
    %c92 = arith.constant 92 : index
    %899 = memref.load %arg4[%c92] : memref<192xf32, #tpu.memory_space<smem>>
    %900 = vector.broadcast %899 : f32 to vector<16x128xf32>
    %901 = arith.mulf %900, %840 : vector<16x128xf32>
    %902 = arith.addf %898, %901 : vector<16x128xf32>
    %c156 = arith.constant 156 : index
    %903 = memref.load %arg4[%c156] : memref<192xf32, #tpu.memory_space<smem>>
    %904 = vector.broadcast %903 : f32 to vector<16x128xf32>
    %905 = arith.mulf %904, %846 : vector<16x128xf32>
    %906 = arith.addf %902, %905 : vector<16x128xf32>
    %c29_255 = arith.constant 29 : index
    %907 = memref.load %arg4[%c29_255] : memref<192xf32, #tpu.memory_space<smem>>
    %908 = vector.broadcast %907 : f32 to vector<16x128xf32>
    %909 = arith.mulf %908, %843 : vector<16x128xf32>
    %910 = arith.addf %732, %909 : vector<16x128xf32>
    %c93 = arith.constant 93 : index
    %911 = memref.load %arg4[%c93] : memref<192xf32, #tpu.memory_space<smem>>
    %912 = vector.broadcast %911 : f32 to vector<16x128xf32>
    %913 = arith.mulf %912, %840 : vector<16x128xf32>
    %914 = arith.addf %910, %913 : vector<16x128xf32>
    %c157 = arith.constant 157 : index
    %915 = memref.load %arg4[%c157] : memref<192xf32, #tpu.memory_space<smem>>
    %916 = vector.broadcast %915 : f32 to vector<16x128xf32>
    %917 = arith.mulf %916, %846 : vector<16x128xf32>
    %918 = arith.addf %914, %917 : vector<16x128xf32>
    %c30_256 = arith.constant 30 : index
    %919 = memref.load %arg4[%c30_256] : memref<192xf32, #tpu.memory_space<smem>>
    %920 = vector.broadcast %919 : f32 to vector<16x128xf32>
    %921 = arith.mulf %920, %843 : vector<16x128xf32>
    %922 = arith.addf %744, %921 : vector<16x128xf32>
    %c94 = arith.constant 94 : index
    %923 = memref.load %arg4[%c94] : memref<192xf32, #tpu.memory_space<smem>>
    %924 = vector.broadcast %923 : f32 to vector<16x128xf32>
    %925 = arith.mulf %924, %840 : vector<16x128xf32>
    %926 = arith.addf %922, %925 : vector<16x128xf32>
    %c158 = arith.constant 158 : index
    %927 = memref.load %arg4[%c158] : memref<192xf32, #tpu.memory_space<smem>>
    %928 = vector.broadcast %927 : f32 to vector<16x128xf32>
    %929 = arith.mulf %928, %846 : vector<16x128xf32>
    %930 = arith.addf %926, %929 : vector<16x128xf32>
    %c31_257 = arith.constant 31 : index
    %931 = memref.load %arg4[%c31_257] : memref<192xf32, #tpu.memory_space<smem>>
    %932 = vector.broadcast %931 : f32 to vector<16x128xf32>
    %933 = arith.mulf %932, %843 : vector<16x128xf32>
    %934 = arith.addf %756, %933 : vector<16x128xf32>
    %c95 = arith.constant 95 : index
    %935 = memref.load %arg4[%c95] : memref<192xf32, #tpu.memory_space<smem>>
    %936 = vector.broadcast %935 : f32 to vector<16x128xf32>
    %937 = arith.mulf %936, %840 : vector<16x128xf32>
    %938 = arith.addf %934, %937 : vector<16x128xf32>
    %c159 = arith.constant 159 : index
    %939 = memref.load %arg4[%c159] : memref<192xf32, #tpu.memory_space<smem>>
    %940 = vector.broadcast %939 : f32 to vector<16x128xf32>
    %941 = arith.mulf %940, %846 : vector<16x128xf32>
    %942 = arith.addf %938, %941 : vector<16x128xf32>
    %c0_258 = arith.constant 0 : index
    %c0_259 = arith.constant 0 : index
    %c0_260 = arith.constant 0 : index
    %943 = vector.load %arg10[%c0_258, %c0_259, %c0_260] : memref<4x16x128xf32, #tpu.memory_space<vmem>>, vector<1x16x128xf32>
    %944 = vector.shape_cast %943 : vector<1x16x128xf32> to vector<16x128xf32>
    %c4_261 = arith.constant 4 : index
    %945 = memref.load %arg3[%c4_261] : memref<96xf32, #tpu.memory_space<smem>>
    %c1_i32_262 = arith.constant 1 : i32
    %946 = tpu.dynamic_rotate %944 by %c1_i32_262 dim 1 : vector<16x128xf32>, i32 -> vector<16x128xf32>
    %cst_263 = arith.constant 0.000000e+00 : f32
    %947 = vector.broadcast %cst_263 : f32 to vector<16x128xf32>
    %948 = arith.select %9, %946, %947 : vector<16x128xi1>, vector<16x128xf32>
    %949 = vector.broadcast %945 : f32 to vector<16x128xf32>
    %950 = arith.mulf %949, %948 : vector<16x128xf32>
    %c36 = arith.constant 36 : index
    %951 = memref.load %arg3[%c36] : memref<96xf32, #tpu.memory_space<smem>>
    %952 = vector.broadcast %951 : f32 to vector<16x128xf32>
    %953 = arith.mulf %952, %944 : vector<16x128xf32>
    %954 = arith.addf %950, %953 : vector<16x128xf32>
    %c68_264 = arith.constant 68 : index
    %955 = memref.load %arg3[%c68_264] : memref<96xf32, #tpu.memory_space<smem>>
    %c127_i32_265 = arith.constant 127 : i32
    %956 = tpu.dynamic_rotate %944 by %c127_i32_265 dim 1 : vector<16x128xf32>, i32 -> vector<16x128xf32>
    %cst_266 = arith.constant 0.000000e+00 : f32
    %957 = vector.broadcast %cst_266 : f32 to vector<16x128xf32>
    %958 = arith.select %18, %956, %957 : vector<16x128xi1>, vector<16x128xf32>
    %959 = vector.broadcast %955 : f32 to vector<16x128xf32>
    %960 = arith.mulf %959, %958 : vector<16x128xf32>
    %961 = arith.addf %954, %960 : vector<16x128xf32>
    %c1_267 = arith.constant 1 : index
    %c0_268 = arith.constant 0 : index
    %c0_269 = arith.constant 0 : index
    %962 = vector.load %arg10[%c1_267, %c0_268, %c0_269] : memref<4x16x128xf32, #tpu.memory_space<vmem>>, vector<1x16x128xf32>
    %963 = vector.shape_cast %962 : vector<1x16x128xf32> to vector<16x128xf32>
    %c12_270 = arith.constant 12 : index
    %964 = memref.load %arg3[%c12_270] : memref<96xf32, #tpu.memory_space<smem>>
    %c1_i32_271 = arith.constant 1 : i32
    %965 = tpu.dynamic_rotate %963 by %c1_i32_271 dim 1 : vector<16x128xf32>, i32 -> vector<16x128xf32>
    %cst_272 = arith.constant 0.000000e+00 : f32
    %966 = vector.broadcast %cst_272 : f32 to vector<16x128xf32>
    %967 = arith.select %9, %965, %966 : vector<16x128xi1>, vector<16x128xf32>
    %968 = vector.broadcast %964 : f32 to vector<16x128xf32>
    %969 = arith.mulf %968, %967 : vector<16x128xf32>
    %970 = arith.addf %961, %969 : vector<16x128xf32>
    %c44 = arith.constant 44 : index
    %971 = memref.load %arg3[%c44] : memref<96xf32, #tpu.memory_space<smem>>
    %972 = vector.broadcast %971 : f32 to vector<16x128xf32>
    %973 = arith.mulf %972, %963 : vector<16x128xf32>
    %974 = arith.addf %970, %973 : vector<16x128xf32>
    %c76_273 = arith.constant 76 : index
    %975 = memref.load %arg3[%c76_273] : memref<96xf32, #tpu.memory_space<smem>>
    %c127_i32_274 = arith.constant 127 : i32
    %976 = tpu.dynamic_rotate %963 by %c127_i32_274 dim 1 : vector<16x128xf32>, i32 -> vector<16x128xf32>
    %cst_275 = arith.constant 0.000000e+00 : f32
    %977 = vector.broadcast %cst_275 : f32 to vector<16x128xf32>
    %978 = arith.select %18, %976, %977 : vector<16x128xi1>, vector<16x128xf32>
    %979 = vector.broadcast %975 : f32 to vector<16x128xf32>
    %980 = arith.mulf %979, %978 : vector<16x128xf32>
    %981 = arith.addf %974, %980 : vector<16x128xf32>
    %c2_276 = arith.constant 2 : index
    %c0_277 = arith.constant 0 : index
    %c0_278 = arith.constant 0 : index
    %982 = vector.load %arg10[%c2_276, %c0_277, %c0_278] : memref<4x16x128xf32, #tpu.memory_space<vmem>>, vector<1x16x128xf32>
    %983 = vector.shape_cast %982 : vector<1x16x128xf32> to vector<16x128xf32>
    %c20_279 = arith.constant 20 : index
    %984 = memref.load %arg3[%c20_279] : memref<96xf32, #tpu.memory_space<smem>>
    %c1_i32_280 = arith.constant 1 : i32
    %985 = tpu.dynamic_rotate %983 by %c1_i32_280 dim 1 : vector<16x128xf32>, i32 -> vector<16x128xf32>
    %cst_281 = arith.constant 0.000000e+00 : f32
    %986 = vector.broadcast %cst_281 : f32 to vector<16x128xf32>
    %987 = arith.select %9, %985, %986 : vector<16x128xi1>, vector<16x128xf32>
    %988 = vector.broadcast %984 : f32 to vector<16x128xf32>
    %989 = arith.mulf %988, %987 : vector<16x128xf32>
    %990 = arith.addf %981, %989 : vector<16x128xf32>
    %c52 = arith.constant 52 : index
    %991 = memref.load %arg3[%c52] : memref<96xf32, #tpu.memory_space<smem>>
    %992 = vector.broadcast %991 : f32 to vector<16x128xf32>
    %993 = arith.mulf %992, %983 : vector<16x128xf32>
    %994 = arith.addf %990, %993 : vector<16x128xf32>
    %c84_282 = arith.constant 84 : index
    %995 = memref.load %arg3[%c84_282] : memref<96xf32, #tpu.memory_space<smem>>
    %c127_i32_283 = arith.constant 127 : i32
    %996 = tpu.dynamic_rotate %983 by %c127_i32_283 dim 1 : vector<16x128xf32>, i32 -> vector<16x128xf32>
    %cst_284 = arith.constant 0.000000e+00 : f32
    %997 = vector.broadcast %cst_284 : f32 to vector<16x128xf32>
    %998 = arith.select %18, %996, %997 : vector<16x128xi1>, vector<16x128xf32>
    %999 = vector.broadcast %995 : f32 to vector<16x128xf32>
    %1000 = arith.mulf %999, %998 : vector<16x128xf32>
    %1001 = arith.addf %994, %1000 : vector<16x128xf32>
    %c3_285 = arith.constant 3 : index
    %c0_286 = arith.constant 0 : index
    %c0_287 = arith.constant 0 : index
    %1002 = vector.load %arg10[%c3_285, %c0_286, %c0_287] : memref<4x16x128xf32, #tpu.memory_space<vmem>>, vector<1x16x128xf32>
    %1003 = vector.shape_cast %1002 : vector<1x16x128xf32> to vector<16x128xf32>
    %c28_288 = arith.constant 28 : index
    %1004 = memref.load %arg3[%c28_288] : memref<96xf32, #tpu.memory_space<smem>>
    %c1_i32_289 = arith.constant 1 : i32
    %1005 = tpu.dynamic_rotate %1003 by %c1_i32_289 dim 1 : vector<16x128xf32>, i32 -> vector<16x128xf32>
    %cst_290 = arith.constant 0.000000e+00 : f32
    %1006 = vector.broadcast %cst_290 : f32 to vector<16x128xf32>
    %1007 = arith.select %9, %1005, %1006 : vector<16x128xi1>, vector<16x128xf32>
    %1008 = vector.broadcast %1004 : f32 to vector<16x128xf32>
    %1009 = arith.mulf %1008, %1007 : vector<16x128xf32>
    %1010 = arith.addf %1001, %1009 : vector<16x128xf32>
    %c60 = arith.constant 60 : index
    %1011 = memref.load %arg3[%c60] : memref<96xf32, #tpu.memory_space<smem>>
    %1012 = vector.broadcast %1011 : f32 to vector<16x128xf32>
    %1013 = arith.mulf %1012, %1003 : vector<16x128xf32>
    %1014 = arith.addf %1010, %1013 : vector<16x128xf32>
    %c92_291 = arith.constant 92 : index
    %1015 = memref.load %arg3[%c92_291] : memref<96xf32, #tpu.memory_space<smem>>
    %c127_i32_292 = arith.constant 127 : i32
    %1016 = tpu.dynamic_rotate %1003 by %c127_i32_292 dim 1 : vector<16x128xf32>, i32 -> vector<16x128xf32>
    %cst_293 = arith.constant 0.000000e+00 : f32
    %1017 = vector.broadcast %cst_293 : f32 to vector<16x128xf32>
    %1018 = arith.select %18, %1016, %1017 : vector<16x128xi1>, vector<16x128xf32>
    %1019 = vector.broadcast %1015 : f32 to vector<16x128xf32>
    %1020 = arith.mulf %1019, %1018 : vector<16x128xf32>
    %1021 = arith.addf %1014, %1020 : vector<16x128xf32>
    %c4_294 = arith.constant 4 : index
    %1022 = memref.load %arg8[%c4_294] : memref<8xf32, #tpu.memory_space<smem>>
    %1023 = vector.broadcast %1022 : f32 to vector<16x128xf32>
    %1024 = arith.addf %1021, %1023 : vector<16x128xf32>
    %cst_295 = arith.constant 0.000000e+00 : f32
    %1025 = vector.broadcast %cst_295 : f32 to vector<16x128xf32>
    %1026 = arith.maximumf %1024, %1025 : vector<16x128xf32>
    %c1_i32_296 = arith.constant 1 : i32
    %1027 = tpu.dynamic_rotate %1026 by %c1_i32_296 dim 1 : vector<16x128xf32>, i32 -> vector<16x128xf32>
    %cst_297 = arith.constant 0.000000e+00 : f32
    %1028 = vector.broadcast %cst_297 : f32 to vector<16x128xf32>
    %1029 = arith.select %9, %1027, %1028 : vector<16x128xi1>, vector<16x128xf32>
    %c127_i32_298 = arith.constant 127 : i32
    %1030 = tpu.dynamic_rotate %1026 by %c127_i32_298 dim 1 : vector<16x128xf32>, i32 -> vector<16x128xf32>
    %cst_299 = arith.constant 0.000000e+00 : f32
    %1031 = vector.broadcast %cst_299 : f32 to vector<16x128xf32>
    %1032 = arith.select %18, %1030, %1031 : vector<16x128xi1>, vector<16x128xf32>
    %c32_300 = arith.constant 32 : index
    %1033 = memref.load %arg4[%c32_300] : memref<192xf32, #tpu.memory_space<smem>>
    %1034 = vector.broadcast %1033 : f32 to vector<16x128xf32>
    %1035 = arith.mulf %1034, %1029 : vector<16x128xf32>
    %1036 = arith.addf %858, %1035 : vector<16x128xf32>
    %c96 = arith.constant 96 : index
    %1037 = memref.load %arg4[%c96] : memref<192xf32, #tpu.memory_space<smem>>
    %1038 = vector.broadcast %1037 : f32 to vector<16x128xf32>
    %1039 = arith.mulf %1038, %1026 : vector<16x128xf32>
    %1040 = arith.addf %1036, %1039 : vector<16x128xf32>
    %c160 = arith.constant 160 : index
    %1041 = memref.load %arg4[%c160] : memref<192xf32, #tpu.memory_space<smem>>
    %1042 = vector.broadcast %1041 : f32 to vector<16x128xf32>
    %1043 = arith.mulf %1042, %1032 : vector<16x128xf32>
    %1044 = arith.addf %1040, %1043 : vector<16x128xf32>
    %c33_301 = arith.constant 33 : index
    %1045 = memref.load %arg4[%c33_301] : memref<192xf32, #tpu.memory_space<smem>>
    %1046 = vector.broadcast %1045 : f32 to vector<16x128xf32>
    %1047 = arith.mulf %1046, %1029 : vector<16x128xf32>
    %1048 = arith.addf %870, %1047 : vector<16x128xf32>
    %c97 = arith.constant 97 : index
    %1049 = memref.load %arg4[%c97] : memref<192xf32, #tpu.memory_space<smem>>
    %1050 = vector.broadcast %1049 : f32 to vector<16x128xf32>
    %1051 = arith.mulf %1050, %1026 : vector<16x128xf32>
    %1052 = arith.addf %1048, %1051 : vector<16x128xf32>
    %c161 = arith.constant 161 : index
    %1053 = memref.load %arg4[%c161] : memref<192xf32, #tpu.memory_space<smem>>
    %1054 = vector.broadcast %1053 : f32 to vector<16x128xf32>
    %1055 = arith.mulf %1054, %1032 : vector<16x128xf32>
    %1056 = arith.addf %1052, %1055 : vector<16x128xf32>
    %c34_302 = arith.constant 34 : index
    %1057 = memref.load %arg4[%c34_302] : memref<192xf32, #tpu.memory_space<smem>>
    %1058 = vector.broadcast %1057 : f32 to vector<16x128xf32>
    %1059 = arith.mulf %1058, %1029 : vector<16x128xf32>
    %1060 = arith.addf %882, %1059 : vector<16x128xf32>
    %c98 = arith.constant 98 : index
    %1061 = memref.load %arg4[%c98] : memref<192xf32, #tpu.memory_space<smem>>
    %1062 = vector.broadcast %1061 : f32 to vector<16x128xf32>
    %1063 = arith.mulf %1062, %1026 : vector<16x128xf32>
    %1064 = arith.addf %1060, %1063 : vector<16x128xf32>
    %c162 = arith.constant 162 : index
    %1065 = memref.load %arg4[%c162] : memref<192xf32, #tpu.memory_space<smem>>
    %1066 = vector.broadcast %1065 : f32 to vector<16x128xf32>
    %1067 = arith.mulf %1066, %1032 : vector<16x128xf32>
    %1068 = arith.addf %1064, %1067 : vector<16x128xf32>
    %c35_303 = arith.constant 35 : index
    %1069 = memref.load %arg4[%c35_303] : memref<192xf32, #tpu.memory_space<smem>>
    %1070 = vector.broadcast %1069 : f32 to vector<16x128xf32>
    %1071 = arith.mulf %1070, %1029 : vector<16x128xf32>
    %1072 = arith.addf %894, %1071 : vector<16x128xf32>
    %c99 = arith.constant 99 : index
    %1073 = memref.load %arg4[%c99] : memref<192xf32, #tpu.memory_space<smem>>
    %1074 = vector.broadcast %1073 : f32 to vector<16x128xf32>
    %1075 = arith.mulf %1074, %1026 : vector<16x128xf32>
    %1076 = arith.addf %1072, %1075 : vector<16x128xf32>
    %c163 = arith.constant 163 : index
    %1077 = memref.load %arg4[%c163] : memref<192xf32, #tpu.memory_space<smem>>
    %1078 = vector.broadcast %1077 : f32 to vector<16x128xf32>
    %1079 = arith.mulf %1078, %1032 : vector<16x128xf32>
    %1080 = arith.addf %1076, %1079 : vector<16x128xf32>
    %c36_304 = arith.constant 36 : index
    %1081 = memref.load %arg4[%c36_304] : memref<192xf32, #tpu.memory_space<smem>>
    %1082 = vector.broadcast %1081 : f32 to vector<16x128xf32>
    %1083 = arith.mulf %1082, %1029 : vector<16x128xf32>
    %1084 = arith.addf %906, %1083 : vector<16x128xf32>
    %c100 = arith.constant 100 : index
    %1085 = memref.load %arg4[%c100] : memref<192xf32, #tpu.memory_space<smem>>
    %1086 = vector.broadcast %1085 : f32 to vector<16x128xf32>
    %1087 = arith.mulf %1086, %1026 : vector<16x128xf32>
    %1088 = arith.addf %1084, %1087 : vector<16x128xf32>
    %c164 = arith.constant 164 : index
    %1089 = memref.load %arg4[%c164] : memref<192xf32, #tpu.memory_space<smem>>
    %1090 = vector.broadcast %1089 : f32 to vector<16x128xf32>
    %1091 = arith.mulf %1090, %1032 : vector<16x128xf32>
    %1092 = arith.addf %1088, %1091 : vector<16x128xf32>
    %c37 = arith.constant 37 : index
    %1093 = memref.load %arg4[%c37] : memref<192xf32, #tpu.memory_space<smem>>
    %1094 = vector.broadcast %1093 : f32 to vector<16x128xf32>
    %1095 = arith.mulf %1094, %1029 : vector<16x128xf32>
    %1096 = arith.addf %918, %1095 : vector<16x128xf32>
    %c101 = arith.constant 101 : index
    %1097 = memref.load %arg4[%c101] : memref<192xf32, #tpu.memory_space<smem>>
    %1098 = vector.broadcast %1097 : f32 to vector<16x128xf32>
    %1099 = arith.mulf %1098, %1026 : vector<16x128xf32>
    %1100 = arith.addf %1096, %1099 : vector<16x128xf32>
    %c165 = arith.constant 165 : index
    %1101 = memref.load %arg4[%c165] : memref<192xf32, #tpu.memory_space<smem>>
    %1102 = vector.broadcast %1101 : f32 to vector<16x128xf32>
    %1103 = arith.mulf %1102, %1032 : vector<16x128xf32>
    %1104 = arith.addf %1100, %1103 : vector<16x128xf32>
    %c38 = arith.constant 38 : index
    %1105 = memref.load %arg4[%c38] : memref<192xf32, #tpu.memory_space<smem>>
    %1106 = vector.broadcast %1105 : f32 to vector<16x128xf32>
    %1107 = arith.mulf %1106, %1029 : vector<16x128xf32>
    %1108 = arith.addf %930, %1107 : vector<16x128xf32>
    %c102 = arith.constant 102 : index
    %1109 = memref.load %arg4[%c102] : memref<192xf32, #tpu.memory_space<smem>>
    %1110 = vector.broadcast %1109 : f32 to vector<16x128xf32>
    %1111 = arith.mulf %1110, %1026 : vector<16x128xf32>
    %1112 = arith.addf %1108, %1111 : vector<16x128xf32>
    %c166 = arith.constant 166 : index
    %1113 = memref.load %arg4[%c166] : memref<192xf32, #tpu.memory_space<smem>>
    %1114 = vector.broadcast %1113 : f32 to vector<16x128xf32>
    %1115 = arith.mulf %1114, %1032 : vector<16x128xf32>
    %1116 = arith.addf %1112, %1115 : vector<16x128xf32>
    %c39 = arith.constant 39 : index
    %1117 = memref.load %arg4[%c39] : memref<192xf32, #tpu.memory_space<smem>>
    %1118 = vector.broadcast %1117 : f32 to vector<16x128xf32>
    %1119 = arith.mulf %1118, %1029 : vector<16x128xf32>
    %1120 = arith.addf %942, %1119 : vector<16x128xf32>
    %c103 = arith.constant 103 : index
    %1121 = memref.load %arg4[%c103] : memref<192xf32, #tpu.memory_space<smem>>
    %1122 = vector.broadcast %1121 : f32 to vector<16x128xf32>
    %1123 = arith.mulf %1122, %1026 : vector<16x128xf32>
    %1124 = arith.addf %1120, %1123 : vector<16x128xf32>
    %c167 = arith.constant 167 : index
    %1125 = memref.load %arg4[%c167] : memref<192xf32, #tpu.memory_space<smem>>
    %1126 = vector.broadcast %1125 : f32 to vector<16x128xf32>
    %1127 = arith.mulf %1126, %1032 : vector<16x128xf32>
    %1128 = arith.addf %1124, %1127 : vector<16x128xf32>
    %c0_305 = arith.constant 0 : index
    %c0_306 = arith.constant 0 : index
    %c0_307 = arith.constant 0 : index
    %1129 = vector.load %arg10[%c0_305, %c0_306, %c0_307] : memref<4x16x128xf32, #tpu.memory_space<vmem>>, vector<1x16x128xf32>
    %1130 = vector.shape_cast %1129 : vector<1x16x128xf32> to vector<16x128xf32>
    %c5_308 = arith.constant 5 : index
    %1131 = memref.load %arg3[%c5_308] : memref<96xf32, #tpu.memory_space<smem>>
    %c1_i32_309 = arith.constant 1 : i32
    %1132 = tpu.dynamic_rotate %1130 by %c1_i32_309 dim 1 : vector<16x128xf32>, i32 -> vector<16x128xf32>
    %cst_310 = arith.constant 0.000000e+00 : f32
    %1133 = vector.broadcast %cst_310 : f32 to vector<16x128xf32>
    %1134 = arith.select %9, %1132, %1133 : vector<16x128xi1>, vector<16x128xf32>
    %1135 = vector.broadcast %1131 : f32 to vector<16x128xf32>
    %1136 = arith.mulf %1135, %1134 : vector<16x128xf32>
    %c37_311 = arith.constant 37 : index
    %1137 = memref.load %arg3[%c37_311] : memref<96xf32, #tpu.memory_space<smem>>
    %1138 = vector.broadcast %1137 : f32 to vector<16x128xf32>
    %1139 = arith.mulf %1138, %1130 : vector<16x128xf32>
    %1140 = arith.addf %1136, %1139 : vector<16x128xf32>
    %c69_312 = arith.constant 69 : index
    %1141 = memref.load %arg3[%c69_312] : memref<96xf32, #tpu.memory_space<smem>>
    %c127_i32_313 = arith.constant 127 : i32
    %1142 = tpu.dynamic_rotate %1130 by %c127_i32_313 dim 1 : vector<16x128xf32>, i32 -> vector<16x128xf32>
    %cst_314 = arith.constant 0.000000e+00 : f32
    %1143 = vector.broadcast %cst_314 : f32 to vector<16x128xf32>
    %1144 = arith.select %18, %1142, %1143 : vector<16x128xi1>, vector<16x128xf32>
    %1145 = vector.broadcast %1141 : f32 to vector<16x128xf32>
    %1146 = arith.mulf %1145, %1144 : vector<16x128xf32>
    %1147 = arith.addf %1140, %1146 : vector<16x128xf32>
    %c1_315 = arith.constant 1 : index
    %c0_316 = arith.constant 0 : index
    %c0_317 = arith.constant 0 : index
    %1148 = vector.load %arg10[%c1_315, %c0_316, %c0_317] : memref<4x16x128xf32, #tpu.memory_space<vmem>>, vector<1x16x128xf32>
    %1149 = vector.shape_cast %1148 : vector<1x16x128xf32> to vector<16x128xf32>
    %c13_318 = arith.constant 13 : index
    %1150 = memref.load %arg3[%c13_318] : memref<96xf32, #tpu.memory_space<smem>>
    %c1_i32_319 = arith.constant 1 : i32
    %1151 = tpu.dynamic_rotate %1149 by %c1_i32_319 dim 1 : vector<16x128xf32>, i32 -> vector<16x128xf32>
    %cst_320 = arith.constant 0.000000e+00 : f32
    %1152 = vector.broadcast %cst_320 : f32 to vector<16x128xf32>
    %1153 = arith.select %9, %1151, %1152 : vector<16x128xi1>, vector<16x128xf32>
    %1154 = vector.broadcast %1150 : f32 to vector<16x128xf32>
    %1155 = arith.mulf %1154, %1153 : vector<16x128xf32>
    %1156 = arith.addf %1147, %1155 : vector<16x128xf32>
    %c45 = arith.constant 45 : index
    %1157 = memref.load %arg3[%c45] : memref<96xf32, #tpu.memory_space<smem>>
    %1158 = vector.broadcast %1157 : f32 to vector<16x128xf32>
    %1159 = arith.mulf %1158, %1149 : vector<16x128xf32>
    %1160 = arith.addf %1156, %1159 : vector<16x128xf32>
    %c77_321 = arith.constant 77 : index
    %1161 = memref.load %arg3[%c77_321] : memref<96xf32, #tpu.memory_space<smem>>
    %c127_i32_322 = arith.constant 127 : i32
    %1162 = tpu.dynamic_rotate %1149 by %c127_i32_322 dim 1 : vector<16x128xf32>, i32 -> vector<16x128xf32>
    %cst_323 = arith.constant 0.000000e+00 : f32
    %1163 = vector.broadcast %cst_323 : f32 to vector<16x128xf32>
    %1164 = arith.select %18, %1162, %1163 : vector<16x128xi1>, vector<16x128xf32>
    %1165 = vector.broadcast %1161 : f32 to vector<16x128xf32>
    %1166 = arith.mulf %1165, %1164 : vector<16x128xf32>
    %1167 = arith.addf %1160, %1166 : vector<16x128xf32>
    %c2_324 = arith.constant 2 : index
    %c0_325 = arith.constant 0 : index
    %c0_326 = arith.constant 0 : index
    %1168 = vector.load %arg10[%c2_324, %c0_325, %c0_326] : memref<4x16x128xf32, #tpu.memory_space<vmem>>, vector<1x16x128xf32>
    %1169 = vector.shape_cast %1168 : vector<1x16x128xf32> to vector<16x128xf32>
    %c21_327 = arith.constant 21 : index
    %1170 = memref.load %arg3[%c21_327] : memref<96xf32, #tpu.memory_space<smem>>
    %c1_i32_328 = arith.constant 1 : i32
    %1171 = tpu.dynamic_rotate %1169 by %c1_i32_328 dim 1 : vector<16x128xf32>, i32 -> vector<16x128xf32>
    %cst_329 = arith.constant 0.000000e+00 : f32
    %1172 = vector.broadcast %cst_329 : f32 to vector<16x128xf32>
    %1173 = arith.select %9, %1171, %1172 : vector<16x128xi1>, vector<16x128xf32>
    %1174 = vector.broadcast %1170 : f32 to vector<16x128xf32>
    %1175 = arith.mulf %1174, %1173 : vector<16x128xf32>
    %1176 = arith.addf %1167, %1175 : vector<16x128xf32>
    %c53 = arith.constant 53 : index
    %1177 = memref.load %arg3[%c53] : memref<96xf32, #tpu.memory_space<smem>>
    %1178 = vector.broadcast %1177 : f32 to vector<16x128xf32>
    %1179 = arith.mulf %1178, %1169 : vector<16x128xf32>
    %1180 = arith.addf %1176, %1179 : vector<16x128xf32>
    %c85_330 = arith.constant 85 : index
    %1181 = memref.load %arg3[%c85_330] : memref<96xf32, #tpu.memory_space<smem>>
    %c127_i32_331 = arith.constant 127 : i32
    %1182 = tpu.dynamic_rotate %1169 by %c127_i32_331 dim 1 : vector<16x128xf32>, i32 -> vector<16x128xf32>
    %cst_332 = arith.constant 0.000000e+00 : f32
    %1183 = vector.broadcast %cst_332 : f32 to vector<16x128xf32>
    %1184 = arith.select %18, %1182, %1183 : vector<16x128xi1>, vector<16x128xf32>
    %1185 = vector.broadcast %1181 : f32 to vector<16x128xf32>
    %1186 = arith.mulf %1185, %1184 : vector<16x128xf32>
    %1187 = arith.addf %1180, %1186 : vector<16x128xf32>
    %c3_333 = arith.constant 3 : index
    %c0_334 = arith.constant 0 : index
    %c0_335 = arith.constant 0 : index
    %1188 = vector.load %arg10[%c3_333, %c0_334, %c0_335] : memref<4x16x128xf32, #tpu.memory_space<vmem>>, vector<1x16x128xf32>
    %1189 = vector.shape_cast %1188 : vector<1x16x128xf32> to vector<16x128xf32>
    %c29_336 = arith.constant 29 : index
    %1190 = memref.load %arg3[%c29_336] : memref<96xf32, #tpu.memory_space<smem>>
    %c1_i32_337 = arith.constant 1 : i32
    %1191 = tpu.dynamic_rotate %1189 by %c1_i32_337 dim 1 : vector<16x128xf32>, i32 -> vector<16x128xf32>
    %cst_338 = arith.constant 0.000000e+00 : f32
    %1192 = vector.broadcast %cst_338 : f32 to vector<16x128xf32>
    %1193 = arith.select %9, %1191, %1192 : vector<16x128xi1>, vector<16x128xf32>
    %1194 = vector.broadcast %1190 : f32 to vector<16x128xf32>
    %1195 = arith.mulf %1194, %1193 : vector<16x128xf32>
    %1196 = arith.addf %1187, %1195 : vector<16x128xf32>
    %c61 = arith.constant 61 : index
    %1197 = memref.load %arg3[%c61] : memref<96xf32, #tpu.memory_space<smem>>
    %1198 = vector.broadcast %1197 : f32 to vector<16x128xf32>
    %1199 = arith.mulf %1198, %1189 : vector<16x128xf32>
    %1200 = arith.addf %1196, %1199 : vector<16x128xf32>
    %c93_339 = arith.constant 93 : index
    %1201 = memref.load %arg3[%c93_339] : memref<96xf32, #tpu.memory_space<smem>>
    %c127_i32_340 = arith.constant 127 : i32
    %1202 = tpu.dynamic_rotate %1189 by %c127_i32_340 dim 1 : vector<16x128xf32>, i32 -> vector<16x128xf32>
    %cst_341 = arith.constant 0.000000e+00 : f32
    %1203 = vector.broadcast %cst_341 : f32 to vector<16x128xf32>
    %1204 = arith.select %18, %1202, %1203 : vector<16x128xi1>, vector<16x128xf32>
    %1205 = vector.broadcast %1201 : f32 to vector<16x128xf32>
    %1206 = arith.mulf %1205, %1204 : vector<16x128xf32>
    %1207 = arith.addf %1200, %1206 : vector<16x128xf32>
    %c5_342 = arith.constant 5 : index
    %1208 = memref.load %arg8[%c5_342] : memref<8xf32, #tpu.memory_space<smem>>
    %1209 = vector.broadcast %1208 : f32 to vector<16x128xf32>
    %1210 = arith.addf %1207, %1209 : vector<16x128xf32>
    %cst_343 = arith.constant 0.000000e+00 : f32
    %1211 = vector.broadcast %cst_343 : f32 to vector<16x128xf32>
    %1212 = arith.maximumf %1210, %1211 : vector<16x128xf32>
    %c1_i32_344 = arith.constant 1 : i32
    %1213 = tpu.dynamic_rotate %1212 by %c1_i32_344 dim 1 : vector<16x128xf32>, i32 -> vector<16x128xf32>
    %cst_345 = arith.constant 0.000000e+00 : f32
    %1214 = vector.broadcast %cst_345 : f32 to vector<16x128xf32>
    %1215 = arith.select %9, %1213, %1214 : vector<16x128xi1>, vector<16x128xf32>
    %c127_i32_346 = arith.constant 127 : i32
    %1216 = tpu.dynamic_rotate %1212 by %c127_i32_346 dim 1 : vector<16x128xf32>, i32 -> vector<16x128xf32>
    %cst_347 = arith.constant 0.000000e+00 : f32
    %1217 = vector.broadcast %cst_347 : f32 to vector<16x128xf32>
    %1218 = arith.select %18, %1216, %1217 : vector<16x128xi1>, vector<16x128xf32>
    %c40_348 = arith.constant 40 : index
    %1219 = memref.load %arg4[%c40_348] : memref<192xf32, #tpu.memory_space<smem>>
    %1220 = vector.broadcast %1219 : f32 to vector<16x128xf32>
    %1221 = arith.mulf %1220, %1215 : vector<16x128xf32>
    %1222 = arith.addf %1044, %1221 : vector<16x128xf32>
    %c104 = arith.constant 104 : index
    %1223 = memref.load %arg4[%c104] : memref<192xf32, #tpu.memory_space<smem>>
    %1224 = vector.broadcast %1223 : f32 to vector<16x128xf32>
    %1225 = arith.mulf %1224, %1212 : vector<16x128xf32>
    %1226 = arith.addf %1222, %1225 : vector<16x128xf32>
    %c168 = arith.constant 168 : index
    %1227 = memref.load %arg4[%c168] : memref<192xf32, #tpu.memory_space<smem>>
    %1228 = vector.broadcast %1227 : f32 to vector<16x128xf32>
    %1229 = arith.mulf %1228, %1218 : vector<16x128xf32>
    %1230 = arith.addf %1226, %1229 : vector<16x128xf32>
    %c41_349 = arith.constant 41 : index
    %1231 = memref.load %arg4[%c41_349] : memref<192xf32, #tpu.memory_space<smem>>
    %1232 = vector.broadcast %1231 : f32 to vector<16x128xf32>
    %1233 = arith.mulf %1232, %1215 : vector<16x128xf32>
    %1234 = arith.addf %1056, %1233 : vector<16x128xf32>
    %c105 = arith.constant 105 : index
    %1235 = memref.load %arg4[%c105] : memref<192xf32, #tpu.memory_space<smem>>
    %1236 = vector.broadcast %1235 : f32 to vector<16x128xf32>
    %1237 = arith.mulf %1236, %1212 : vector<16x128xf32>
    %1238 = arith.addf %1234, %1237 : vector<16x128xf32>
    %c169 = arith.constant 169 : index
    %1239 = memref.load %arg4[%c169] : memref<192xf32, #tpu.memory_space<smem>>
    %1240 = vector.broadcast %1239 : f32 to vector<16x128xf32>
    %1241 = arith.mulf %1240, %1218 : vector<16x128xf32>
    %1242 = arith.addf %1238, %1241 : vector<16x128xf32>
    %c42_350 = arith.constant 42 : index
    %1243 = memref.load %arg4[%c42_350] : memref<192xf32, #tpu.memory_space<smem>>
    %1244 = vector.broadcast %1243 : f32 to vector<16x128xf32>
    %1245 = arith.mulf %1244, %1215 : vector<16x128xf32>
    %1246 = arith.addf %1068, %1245 : vector<16x128xf32>
    %c106 = arith.constant 106 : index
    %1247 = memref.load %arg4[%c106] : memref<192xf32, #tpu.memory_space<smem>>
    %1248 = vector.broadcast %1247 : f32 to vector<16x128xf32>
    %1249 = arith.mulf %1248, %1212 : vector<16x128xf32>
    %1250 = arith.addf %1246, %1249 : vector<16x128xf32>
    %c170 = arith.constant 170 : index
    %1251 = memref.load %arg4[%c170] : memref<192xf32, #tpu.memory_space<smem>>
    %1252 = vector.broadcast %1251 : f32 to vector<16x128xf32>
    %1253 = arith.mulf %1252, %1218 : vector<16x128xf32>
    %1254 = arith.addf %1250, %1253 : vector<16x128xf32>
    %c43_351 = arith.constant 43 : index
    %1255 = memref.load %arg4[%c43_351] : memref<192xf32, #tpu.memory_space<smem>>
    %1256 = vector.broadcast %1255 : f32 to vector<16x128xf32>
    %1257 = arith.mulf %1256, %1215 : vector<16x128xf32>
    %1258 = arith.addf %1080, %1257 : vector<16x128xf32>
    %c107 = arith.constant 107 : index
    %1259 = memref.load %arg4[%c107] : memref<192xf32, #tpu.memory_space<smem>>
    %1260 = vector.broadcast %1259 : f32 to vector<16x128xf32>
    %1261 = arith.mulf %1260, %1212 : vector<16x128xf32>
    %1262 = arith.addf %1258, %1261 : vector<16x128xf32>
    %c171 = arith.constant 171 : index
    %1263 = memref.load %arg4[%c171] : memref<192xf32, #tpu.memory_space<smem>>
    %1264 = vector.broadcast %1263 : f32 to vector<16x128xf32>
    %1265 = arith.mulf %1264, %1218 : vector<16x128xf32>
    %1266 = arith.addf %1262, %1265 : vector<16x128xf32>
    %c44_352 = arith.constant 44 : index
    %1267 = memref.load %arg4[%c44_352] : memref<192xf32, #tpu.memory_space<smem>>
    %1268 = vector.broadcast %1267 : f32 to vector<16x128xf32>
    %1269 = arith.mulf %1268, %1215 : vector<16x128xf32>
    %1270 = arith.addf %1092, %1269 : vector<16x128xf32>
    %c108 = arith.constant 108 : index
    %1271 = memref.load %arg4[%c108] : memref<192xf32, #tpu.memory_space<smem>>
    %1272 = vector.broadcast %1271 : f32 to vector<16x128xf32>
    %1273 = arith.mulf %1272, %1212 : vector<16x128xf32>
    %1274 = arith.addf %1270, %1273 : vector<16x128xf32>
    %c172 = arith.constant 172 : index
    %1275 = memref.load %arg4[%c172] : memref<192xf32, #tpu.memory_space<smem>>
    %1276 = vector.broadcast %1275 : f32 to vector<16x128xf32>
    %1277 = arith.mulf %1276, %1218 : vector<16x128xf32>
    %1278 = arith.addf %1274, %1277 : vector<16x128xf32>
    %c45_353 = arith.constant 45 : index
    %1279 = memref.load %arg4[%c45_353] : memref<192xf32, #tpu.memory_space<smem>>
    %1280 = vector.broadcast %1279 : f32 to vector<16x128xf32>
    %1281 = arith.mulf %1280, %1215 : vector<16x128xf32>
    %1282 = arith.addf %1104, %1281 : vector<16x128xf32>
    %c109 = arith.constant 109 : index
    %1283 = memref.load %arg4[%c109] : memref<192xf32, #tpu.memory_space<smem>>
    %1284 = vector.broadcast %1283 : f32 to vector<16x128xf32>
    %1285 = arith.mulf %1284, %1212 : vector<16x128xf32>
    %1286 = arith.addf %1282, %1285 : vector<16x128xf32>
    %c173 = arith.constant 173 : index
    %1287 = memref.load %arg4[%c173] : memref<192xf32, #tpu.memory_space<smem>>
    %1288 = vector.broadcast %1287 : f32 to vector<16x128xf32>
    %1289 = arith.mulf %1288, %1218 : vector<16x128xf32>
    %1290 = arith.addf %1286, %1289 : vector<16x128xf32>
    %c46 = arith.constant 46 : index
    %1291 = memref.load %arg4[%c46] : memref<192xf32, #tpu.memory_space<smem>>
    %1292 = vector.broadcast %1291 : f32 to vector<16x128xf32>
    %1293 = arith.mulf %1292, %1215 : vector<16x128xf32>
    %1294 = arith.addf %1116, %1293 : vector<16x128xf32>
    %c110 = arith.constant 110 : index
    %1295 = memref.load %arg4[%c110] : memref<192xf32, #tpu.memory_space<smem>>
    %1296 = vector.broadcast %1295 : f32 to vector<16x128xf32>
    %1297 = arith.mulf %1296, %1212 : vector<16x128xf32>
    %1298 = arith.addf %1294, %1297 : vector<16x128xf32>
    %c174 = arith.constant 174 : index
    %1299 = memref.load %arg4[%c174] : memref<192xf32, #tpu.memory_space<smem>>
    %1300 = vector.broadcast %1299 : f32 to vector<16x128xf32>
    %1301 = arith.mulf %1300, %1218 : vector<16x128xf32>
    %1302 = arith.addf %1298, %1301 : vector<16x128xf32>
    %c47 = arith.constant 47 : index
    %1303 = memref.load %arg4[%c47] : memref<192xf32, #tpu.memory_space<smem>>
    %1304 = vector.broadcast %1303 : f32 to vector<16x128xf32>
    %1305 = arith.mulf %1304, %1215 : vector<16x128xf32>
    %1306 = arith.addf %1128, %1305 : vector<16x128xf32>
    %c111 = arith.constant 111 : index
    %1307 = memref.load %arg4[%c111] : memref<192xf32, #tpu.memory_space<smem>>
    %1308 = vector.broadcast %1307 : f32 to vector<16x128xf32>
    %1309 = arith.mulf %1308, %1212 : vector<16x128xf32>
    %1310 = arith.addf %1306, %1309 : vector<16x128xf32>
    %c175 = arith.constant 175 : index
    %1311 = memref.load %arg4[%c175] : memref<192xf32, #tpu.memory_space<smem>>
    %1312 = vector.broadcast %1311 : f32 to vector<16x128xf32>
    %1313 = arith.mulf %1312, %1218 : vector<16x128xf32>
    %1314 = arith.addf %1310, %1313 : vector<16x128xf32>
    %c0_354 = arith.constant 0 : index
    %c0_355 = arith.constant 0 : index
    %c0_356 = arith.constant 0 : index
    %1315 = vector.load %arg10[%c0_354, %c0_355, %c0_356] : memref<4x16x128xf32, #tpu.memory_space<vmem>>, vector<1x16x128xf32>
    %1316 = vector.shape_cast %1315 : vector<1x16x128xf32> to vector<16x128xf32>
    %c6_357 = arith.constant 6 : index
    %1317 = memref.load %arg3[%c6_357] : memref<96xf32, #tpu.memory_space<smem>>
    %c1_i32_358 = arith.constant 1 : i32
    %1318 = tpu.dynamic_rotate %1316 by %c1_i32_358 dim 1 : vector<16x128xf32>, i32 -> vector<16x128xf32>
    %cst_359 = arith.constant 0.000000e+00 : f32
    %1319 = vector.broadcast %cst_359 : f32 to vector<16x128xf32>
    %1320 = arith.select %9, %1318, %1319 : vector<16x128xi1>, vector<16x128xf32>
    %1321 = vector.broadcast %1317 : f32 to vector<16x128xf32>
    %1322 = arith.mulf %1321, %1320 : vector<16x128xf32>
    %c38_360 = arith.constant 38 : index
    %1323 = memref.load %arg3[%c38_360] : memref<96xf32, #tpu.memory_space<smem>>
    %1324 = vector.broadcast %1323 : f32 to vector<16x128xf32>
    %1325 = arith.mulf %1324, %1316 : vector<16x128xf32>
    %1326 = arith.addf %1322, %1325 : vector<16x128xf32>
    %c70_361 = arith.constant 70 : index
    %1327 = memref.load %arg3[%c70_361] : memref<96xf32, #tpu.memory_space<smem>>
    %c127_i32_362 = arith.constant 127 : i32
    %1328 = tpu.dynamic_rotate %1316 by %c127_i32_362 dim 1 : vector<16x128xf32>, i32 -> vector<16x128xf32>
    %cst_363 = arith.constant 0.000000e+00 : f32
    %1329 = vector.broadcast %cst_363 : f32 to vector<16x128xf32>
    %1330 = arith.select %18, %1328, %1329 : vector<16x128xi1>, vector<16x128xf32>
    %1331 = vector.broadcast %1327 : f32 to vector<16x128xf32>
    %1332 = arith.mulf %1331, %1330 : vector<16x128xf32>
    %1333 = arith.addf %1326, %1332 : vector<16x128xf32>
    %c1_364 = arith.constant 1 : index
    %c0_365 = arith.constant 0 : index
    %c0_366 = arith.constant 0 : index
    %1334 = vector.load %arg10[%c1_364, %c0_365, %c0_366] : memref<4x16x128xf32, #tpu.memory_space<vmem>>, vector<1x16x128xf32>
    %1335 = vector.shape_cast %1334 : vector<1x16x128xf32> to vector<16x128xf32>
    %c14_367 = arith.constant 14 : index
    %1336 = memref.load %arg3[%c14_367] : memref<96xf32, #tpu.memory_space<smem>>
    %c1_i32_368 = arith.constant 1 : i32
    %1337 = tpu.dynamic_rotate %1335 by %c1_i32_368 dim 1 : vector<16x128xf32>, i32 -> vector<16x128xf32>
    %cst_369 = arith.constant 0.000000e+00 : f32
    %1338 = vector.broadcast %cst_369 : f32 to vector<16x128xf32>
    %1339 = arith.select %9, %1337, %1338 : vector<16x128xi1>, vector<16x128xf32>
    %1340 = vector.broadcast %1336 : f32 to vector<16x128xf32>
    %1341 = arith.mulf %1340, %1339 : vector<16x128xf32>
    %1342 = arith.addf %1333, %1341 : vector<16x128xf32>
    %c46_370 = arith.constant 46 : index
    %1343 = memref.load %arg3[%c46_370] : memref<96xf32, #tpu.memory_space<smem>>
    %1344 = vector.broadcast %1343 : f32 to vector<16x128xf32>
    %1345 = arith.mulf %1344, %1335 : vector<16x128xf32>
    %1346 = arith.addf %1342, %1345 : vector<16x128xf32>
    %c78_371 = arith.constant 78 : index
    %1347 = memref.load %arg3[%c78_371] : memref<96xf32, #tpu.memory_space<smem>>
    %c127_i32_372 = arith.constant 127 : i32
    %1348 = tpu.dynamic_rotate %1335 by %c127_i32_372 dim 1 : vector<16x128xf32>, i32 -> vector<16x128xf32>
    %cst_373 = arith.constant 0.000000e+00 : f32
    %1349 = vector.broadcast %cst_373 : f32 to vector<16x128xf32>
    %1350 = arith.select %18, %1348, %1349 : vector<16x128xi1>, vector<16x128xf32>
    %1351 = vector.broadcast %1347 : f32 to vector<16x128xf32>
    %1352 = arith.mulf %1351, %1350 : vector<16x128xf32>
    %1353 = arith.addf %1346, %1352 : vector<16x128xf32>
    %c2_374 = arith.constant 2 : index
    %c0_375 = arith.constant 0 : index
    %c0_376 = arith.constant 0 : index
    %1354 = vector.load %arg10[%c2_374, %c0_375, %c0_376] : memref<4x16x128xf32, #tpu.memory_space<vmem>>, vector<1x16x128xf32>
    %1355 = vector.shape_cast %1354 : vector<1x16x128xf32> to vector<16x128xf32>
    %c22_377 = arith.constant 22 : index
    %1356 = memref.load %arg3[%c22_377] : memref<96xf32, #tpu.memory_space<smem>>
    %c1_i32_378 = arith.constant 1 : i32
    %1357 = tpu.dynamic_rotate %1355 by %c1_i32_378 dim 1 : vector<16x128xf32>, i32 -> vector<16x128xf32>
    %cst_379 = arith.constant 0.000000e+00 : f32
    %1358 = vector.broadcast %cst_379 : f32 to vector<16x128xf32>
    %1359 = arith.select %9, %1357, %1358 : vector<16x128xi1>, vector<16x128xf32>
    %1360 = vector.broadcast %1356 : f32 to vector<16x128xf32>
    %1361 = arith.mulf %1360, %1359 : vector<16x128xf32>
    %1362 = arith.addf %1353, %1361 : vector<16x128xf32>
    %c54 = arith.constant 54 : index
    %1363 = memref.load %arg3[%c54] : memref<96xf32, #tpu.memory_space<smem>>
    %1364 = vector.broadcast %1363 : f32 to vector<16x128xf32>
    %1365 = arith.mulf %1364, %1355 : vector<16x128xf32>
    %1366 = arith.addf %1362, %1365 : vector<16x128xf32>
    %c86_380 = arith.constant 86 : index
    %1367 = memref.load %arg3[%c86_380] : memref<96xf32, #tpu.memory_space<smem>>
    %c127_i32_381 = arith.constant 127 : i32
    %1368 = tpu.dynamic_rotate %1355 by %c127_i32_381 dim 1 : vector<16x128xf32>, i32 -> vector<16x128xf32>
    %cst_382 = arith.constant 0.000000e+00 : f32
    %1369 = vector.broadcast %cst_382 : f32 to vector<16x128xf32>
    %1370 = arith.select %18, %1368, %1369 : vector<16x128xi1>, vector<16x128xf32>
    %1371 = vector.broadcast %1367 : f32 to vector<16x128xf32>
    %1372 = arith.mulf %1371, %1370 : vector<16x128xf32>
    %1373 = arith.addf %1366, %1372 : vector<16x128xf32>
    %c3_383 = arith.constant 3 : index
    %c0_384 = arith.constant 0 : index
    %c0_385 = arith.constant 0 : index
    %1374 = vector.load %arg10[%c3_383, %c0_384, %c0_385] : memref<4x16x128xf32, #tpu.memory_space<vmem>>, vector<1x16x128xf32>
    %1375 = vector.shape_cast %1374 : vector<1x16x128xf32> to vector<16x128xf32>
    %c30_386 = arith.constant 30 : index
    %1376 = memref.load %arg3[%c30_386] : memref<96xf32, #tpu.memory_space<smem>>
    %c1_i32_387 = arith.constant 1 : i32
    %1377 = tpu.dynamic_rotate %1375 by %c1_i32_387 dim 1 : vector<16x128xf32>, i32 -> vector<16x128xf32>
    %cst_388 = arith.constant 0.000000e+00 : f32
    %1378 = vector.broadcast %cst_388 : f32 to vector<16x128xf32>
    %1379 = arith.select %9, %1377, %1378 : vector<16x128xi1>, vector<16x128xf32>
    %1380 = vector.broadcast %1376 : f32 to vector<16x128xf32>
    %1381 = arith.mulf %1380, %1379 : vector<16x128xf32>
    %1382 = arith.addf %1373, %1381 : vector<16x128xf32>
    %c62 = arith.constant 62 : index
    %1383 = memref.load %arg3[%c62] : memref<96xf32, #tpu.memory_space<smem>>
    %1384 = vector.broadcast %1383 : f32 to vector<16x128xf32>
    %1385 = arith.mulf %1384, %1375 : vector<16x128xf32>
    %1386 = arith.addf %1382, %1385 : vector<16x128xf32>
    %c94_389 = arith.constant 94 : index
    %1387 = memref.load %arg3[%c94_389] : memref<96xf32, #tpu.memory_space<smem>>
    %c127_i32_390 = arith.constant 127 : i32
    %1388 = tpu.dynamic_rotate %1375 by %c127_i32_390 dim 1 : vector<16x128xf32>, i32 -> vector<16x128xf32>
    %cst_391 = arith.constant 0.000000e+00 : f32
    %1389 = vector.broadcast %cst_391 : f32 to vector<16x128xf32>
    %1390 = arith.select %18, %1388, %1389 : vector<16x128xi1>, vector<16x128xf32>
    %1391 = vector.broadcast %1387 : f32 to vector<16x128xf32>
    %1392 = arith.mulf %1391, %1390 : vector<16x128xf32>
    %1393 = arith.addf %1386, %1392 : vector<16x128xf32>
    %c6_392 = arith.constant 6 : index
    %1394 = memref.load %arg8[%c6_392] : memref<8xf32, #tpu.memory_space<smem>>
    %1395 = vector.broadcast %1394 : f32 to vector<16x128xf32>
    %1396 = arith.addf %1393, %1395 : vector<16x128xf32>
    %cst_393 = arith.constant 0.000000e+00 : f32
    %1397 = vector.broadcast %cst_393 : f32 to vector<16x128xf32>
    %1398 = arith.maximumf %1396, %1397 : vector<16x128xf32>
    %c1_i32_394 = arith.constant 1 : i32
    %1399 = tpu.dynamic_rotate %1398 by %c1_i32_394 dim 1 : vector<16x128xf32>, i32 -> vector<16x128xf32>
    %cst_395 = arith.constant 0.000000e+00 : f32
    %1400 = vector.broadcast %cst_395 : f32 to vector<16x128xf32>
    %1401 = arith.select %9, %1399, %1400 : vector<16x128xi1>, vector<16x128xf32>
    %c127_i32_396 = arith.constant 127 : i32
    %1402 = tpu.dynamic_rotate %1398 by %c127_i32_396 dim 1 : vector<16x128xf32>, i32 -> vector<16x128xf32>
    %cst_397 = arith.constant 0.000000e+00 : f32
    %1403 = vector.broadcast %cst_397 : f32 to vector<16x128xf32>
    %1404 = arith.select %18, %1402, %1403 : vector<16x128xi1>, vector<16x128xf32>
    %c48_398 = arith.constant 48 : index
    %1405 = memref.load %arg4[%c48_398] : memref<192xf32, #tpu.memory_space<smem>>
    %1406 = vector.broadcast %1405 : f32 to vector<16x128xf32>
    %1407 = arith.mulf %1406, %1401 : vector<16x128xf32>
    %1408 = arith.addf %1230, %1407 : vector<16x128xf32>
    %c112 = arith.constant 112 : index
    %1409 = memref.load %arg4[%c112] : memref<192xf32, #tpu.memory_space<smem>>
    %1410 = vector.broadcast %1409 : f32 to vector<16x128xf32>
    %1411 = arith.mulf %1410, %1398 : vector<16x128xf32>
    %1412 = arith.addf %1408, %1411 : vector<16x128xf32>
    %c176 = arith.constant 176 : index
    %1413 = memref.load %arg4[%c176] : memref<192xf32, #tpu.memory_space<smem>>
    %1414 = vector.broadcast %1413 : f32 to vector<16x128xf32>
    %1415 = arith.mulf %1414, %1404 : vector<16x128xf32>
    %1416 = arith.addf %1412, %1415 : vector<16x128xf32>
    %c49_399 = arith.constant 49 : index
    %1417 = memref.load %arg4[%c49_399] : memref<192xf32, #tpu.memory_space<smem>>
    %1418 = vector.broadcast %1417 : f32 to vector<16x128xf32>
    %1419 = arith.mulf %1418, %1401 : vector<16x128xf32>
    %1420 = arith.addf %1242, %1419 : vector<16x128xf32>
    %c113 = arith.constant 113 : index
    %1421 = memref.load %arg4[%c113] : memref<192xf32, #tpu.memory_space<smem>>
    %1422 = vector.broadcast %1421 : f32 to vector<16x128xf32>
    %1423 = arith.mulf %1422, %1398 : vector<16x128xf32>
    %1424 = arith.addf %1420, %1423 : vector<16x128xf32>
    %c177 = arith.constant 177 : index
    %1425 = memref.load %arg4[%c177] : memref<192xf32, #tpu.memory_space<smem>>
    %1426 = vector.broadcast %1425 : f32 to vector<16x128xf32>
    %1427 = arith.mulf %1426, %1404 : vector<16x128xf32>
    %1428 = arith.addf %1424, %1427 : vector<16x128xf32>
    %c50_400 = arith.constant 50 : index
    %1429 = memref.load %arg4[%c50_400] : memref<192xf32, #tpu.memory_space<smem>>
    %1430 = vector.broadcast %1429 : f32 to vector<16x128xf32>
    %1431 = arith.mulf %1430, %1401 : vector<16x128xf32>
    %1432 = arith.addf %1254, %1431 : vector<16x128xf32>
    %c114 = arith.constant 114 : index
    %1433 = memref.load %arg4[%c114] : memref<192xf32, #tpu.memory_space<smem>>
    %1434 = vector.broadcast %1433 : f32 to vector<16x128xf32>
    %1435 = arith.mulf %1434, %1398 : vector<16x128xf32>
    %1436 = arith.addf %1432, %1435 : vector<16x128xf32>
    %c178 = arith.constant 178 : index
    %1437 = memref.load %arg4[%c178] : memref<192xf32, #tpu.memory_space<smem>>
    %1438 = vector.broadcast %1437 : f32 to vector<16x128xf32>
    %1439 = arith.mulf %1438, %1404 : vector<16x128xf32>
    %1440 = arith.addf %1436, %1439 : vector<16x128xf32>
    %c51_401 = arith.constant 51 : index
    %1441 = memref.load %arg4[%c51_401] : memref<192xf32, #tpu.memory_space<smem>>
    %1442 = vector.broadcast %1441 : f32 to vector<16x128xf32>
    %1443 = arith.mulf %1442, %1401 : vector<16x128xf32>
    %1444 = arith.addf %1266, %1443 : vector<16x128xf32>
    %c115 = arith.constant 115 : index
    %1445 = memref.load %arg4[%c115] : memref<192xf32, #tpu.memory_space<smem>>
    %1446 = vector.broadcast %1445 : f32 to vector<16x128xf32>
    %1447 = arith.mulf %1446, %1398 : vector<16x128xf32>
    %1448 = arith.addf %1444, %1447 : vector<16x128xf32>
    %c179 = arith.constant 179 : index
    %1449 = memref.load %arg4[%c179] : memref<192xf32, #tpu.memory_space<smem>>
    %1450 = vector.broadcast %1449 : f32 to vector<16x128xf32>
    %1451 = arith.mulf %1450, %1404 : vector<16x128xf32>
    %1452 = arith.addf %1448, %1451 : vector<16x128xf32>
    %c52_402 = arith.constant 52 : index
    %1453 = memref.load %arg4[%c52_402] : memref<192xf32, #tpu.memory_space<smem>>
    %1454 = vector.broadcast %1453 : f32 to vector<16x128xf32>
    %1455 = arith.mulf %1454, %1401 : vector<16x128xf32>
    %1456 = arith.addf %1278, %1455 : vector<16x128xf32>
    %c116 = arith.constant 116 : index
    %1457 = memref.load %arg4[%c116] : memref<192xf32, #tpu.memory_space<smem>>
    %1458 = vector.broadcast %1457 : f32 to vector<16x128xf32>
    %1459 = arith.mulf %1458, %1398 : vector<16x128xf32>
    %1460 = arith.addf %1456, %1459 : vector<16x128xf32>
    %c180 = arith.constant 180 : index
    %1461 = memref.load %arg4[%c180] : memref<192xf32, #tpu.memory_space<smem>>
    %1462 = vector.broadcast %1461 : f32 to vector<16x128xf32>
    %1463 = arith.mulf %1462, %1404 : vector<16x128xf32>
    %1464 = arith.addf %1460, %1463 : vector<16x128xf32>
    %c53_403 = arith.constant 53 : index
    %1465 = memref.load %arg4[%c53_403] : memref<192xf32, #tpu.memory_space<smem>>
    %1466 = vector.broadcast %1465 : f32 to vector<16x128xf32>
    %1467 = arith.mulf %1466, %1401 : vector<16x128xf32>
    %1468 = arith.addf %1290, %1467 : vector<16x128xf32>
    %c117 = arith.constant 117 : index
    %1469 = memref.load %arg4[%c117] : memref<192xf32, #tpu.memory_space<smem>>
    %1470 = vector.broadcast %1469 : f32 to vector<16x128xf32>
    %1471 = arith.mulf %1470, %1398 : vector<16x128xf32>
    %1472 = arith.addf %1468, %1471 : vector<16x128xf32>
    %c181 = arith.constant 181 : index
    %1473 = memref.load %arg4[%c181] : memref<192xf32, #tpu.memory_space<smem>>
    %1474 = vector.broadcast %1473 : f32 to vector<16x128xf32>
    %1475 = arith.mulf %1474, %1404 : vector<16x128xf32>
    %1476 = arith.addf %1472, %1475 : vector<16x128xf32>
    %c54_404 = arith.constant 54 : index
    %1477 = memref.load %arg4[%c54_404] : memref<192xf32, #tpu.memory_space<smem>>
    %1478 = vector.broadcast %1477 : f32 to vector<16x128xf32>
    %1479 = arith.mulf %1478, %1401 : vector<16x128xf32>
    %1480 = arith.addf %1302, %1479 : vector<16x128xf32>
    %c118 = arith.constant 118 : index
    %1481 = memref.load %arg4[%c118] : memref<192xf32, #tpu.memory_space<smem>>
    %1482 = vector.broadcast %1481 : f32 to vector<16x128xf32>
    %1483 = arith.mulf %1482, %1398 : vector<16x128xf32>
    %1484 = arith.addf %1480, %1483 : vector<16x128xf32>
    %c182 = arith.constant 182 : index
    %1485 = memref.load %arg4[%c182] : memref<192xf32, #tpu.memory_space<smem>>
    %1486 = vector.broadcast %1485 : f32 to vector<16x128xf32>
    %1487 = arith.mulf %1486, %1404 : vector<16x128xf32>
    %1488 = arith.addf %1484, %1487 : vector<16x128xf32>
    %c55 = arith.constant 55 : index
    %1489 = memref.load %arg4[%c55] : memref<192xf32, #tpu.memory_space<smem>>
    %1490 = vector.broadcast %1489 : f32 to vector<16x128xf32>
    %1491 = arith.mulf %1490, %1401 : vector<16x128xf32>
    %1492 = arith.addf %1314, %1491 : vector<16x128xf32>
    %c119 = arith.constant 119 : index
    %1493 = memref.load %arg4[%c119] : memref<192xf32, #tpu.memory_space<smem>>
    %1494 = vector.broadcast %1493 : f32 to vector<16x128xf32>
    %1495 = arith.mulf %1494, %1398 : vector<16x128xf32>
    %1496 = arith.addf %1492, %1495 : vector<16x128xf32>
    %c183 = arith.constant 183 : index
    %1497 = memref.load %arg4[%c183] : memref<192xf32, #tpu.memory_space<smem>>
    %1498 = vector.broadcast %1497 : f32 to vector<16x128xf32>
    %1499 = arith.mulf %1498, %1404 : vector<16x128xf32>
    %1500 = arith.addf %1496, %1499 : vector<16x128xf32>
    %c0_405 = arith.constant 0 : index
    %c0_406 = arith.constant 0 : index
    %c0_407 = arith.constant 0 : index
    %1501 = vector.load %arg10[%c0_405, %c0_406, %c0_407] : memref<4x16x128xf32, #tpu.memory_space<vmem>>, vector<1x16x128xf32>
    %1502 = vector.shape_cast %1501 : vector<1x16x128xf32> to vector<16x128xf32>
    %c7_408 = arith.constant 7 : index
    %1503 = memref.load %arg3[%c7_408] : memref<96xf32, #tpu.memory_space<smem>>
    %c1_i32_409 = arith.constant 1 : i32
    %1504 = tpu.dynamic_rotate %1502 by %c1_i32_409 dim 1 : vector<16x128xf32>, i32 -> vector<16x128xf32>
    %cst_410 = arith.constant 0.000000e+00 : f32
    %1505 = vector.broadcast %cst_410 : f32 to vector<16x128xf32>
    %1506 = arith.select %9, %1504, %1505 : vector<16x128xi1>, vector<16x128xf32>
    %1507 = vector.broadcast %1503 : f32 to vector<16x128xf32>
    %1508 = arith.mulf %1507, %1506 : vector<16x128xf32>
    %c39_411 = arith.constant 39 : index
    %1509 = memref.load %arg3[%c39_411] : memref<96xf32, #tpu.memory_space<smem>>
    %1510 = vector.broadcast %1509 : f32 to vector<16x128xf32>
    %1511 = arith.mulf %1510, %1502 : vector<16x128xf32>
    %1512 = arith.addf %1508, %1511 : vector<16x128xf32>
    %c71_412 = arith.constant 71 : index
    %1513 = memref.load %arg3[%c71_412] : memref<96xf32, #tpu.memory_space<smem>>
    %c127_i32_413 = arith.constant 127 : i32
    %1514 = tpu.dynamic_rotate %1502 by %c127_i32_413 dim 1 : vector<16x128xf32>, i32 -> vector<16x128xf32>
    %cst_414 = arith.constant 0.000000e+00 : f32
    %1515 = vector.broadcast %cst_414 : f32 to vector<16x128xf32>
    %1516 = arith.select %18, %1514, %1515 : vector<16x128xi1>, vector<16x128xf32>
    %1517 = vector.broadcast %1513 : f32 to vector<16x128xf32>
    %1518 = arith.mulf %1517, %1516 : vector<16x128xf32>
    %1519 = arith.addf %1512, %1518 : vector<16x128xf32>
    %c1_415 = arith.constant 1 : index
    %c0_416 = arith.constant 0 : index
    %c0_417 = arith.constant 0 : index
    %1520 = vector.load %arg10[%c1_415, %c0_416, %c0_417] : memref<4x16x128xf32, #tpu.memory_space<vmem>>, vector<1x16x128xf32>
    %1521 = vector.shape_cast %1520 : vector<1x16x128xf32> to vector<16x128xf32>
    %c15_418 = arith.constant 15 : index
    %1522 = memref.load %arg3[%c15_418] : memref<96xf32, #tpu.memory_space<smem>>
    %c1_i32_419 = arith.constant 1 : i32
    %1523 = tpu.dynamic_rotate %1521 by %c1_i32_419 dim 1 : vector<16x128xf32>, i32 -> vector<16x128xf32>
    %cst_420 = arith.constant 0.000000e+00 : f32
    %1524 = vector.broadcast %cst_420 : f32 to vector<16x128xf32>
    %1525 = arith.select %9, %1523, %1524 : vector<16x128xi1>, vector<16x128xf32>
    %1526 = vector.broadcast %1522 : f32 to vector<16x128xf32>
    %1527 = arith.mulf %1526, %1525 : vector<16x128xf32>
    %1528 = arith.addf %1519, %1527 : vector<16x128xf32>
    %c47_421 = arith.constant 47 : index
    %1529 = memref.load %arg3[%c47_421] : memref<96xf32, #tpu.memory_space<smem>>
    %1530 = vector.broadcast %1529 : f32 to vector<16x128xf32>
    %1531 = arith.mulf %1530, %1521 : vector<16x128xf32>
    %1532 = arith.addf %1528, %1531 : vector<16x128xf32>
    %c79_422 = arith.constant 79 : index
    %1533 = memref.load %arg3[%c79_422] : memref<96xf32, #tpu.memory_space<smem>>
    %c127_i32_423 = arith.constant 127 : i32
    %1534 = tpu.dynamic_rotate %1521 by %c127_i32_423 dim 1 : vector<16x128xf32>, i32 -> vector<16x128xf32>
    %cst_424 = arith.constant 0.000000e+00 : f32
    %1535 = vector.broadcast %cst_424 : f32 to vector<16x128xf32>
    %1536 = arith.select %18, %1534, %1535 : vector<16x128xi1>, vector<16x128xf32>
    %1537 = vector.broadcast %1533 : f32 to vector<16x128xf32>
    %1538 = arith.mulf %1537, %1536 : vector<16x128xf32>
    %1539 = arith.addf %1532, %1538 : vector<16x128xf32>
    %c2_425 = arith.constant 2 : index
    %c0_426 = arith.constant 0 : index
    %c0_427 = arith.constant 0 : index
    %1540 = vector.load %arg10[%c2_425, %c0_426, %c0_427] : memref<4x16x128xf32, #tpu.memory_space<vmem>>, vector<1x16x128xf32>
    %1541 = vector.shape_cast %1540 : vector<1x16x128xf32> to vector<16x128xf32>
    %c23_428 = arith.constant 23 : index
    %1542 = memref.load %arg3[%c23_428] : memref<96xf32, #tpu.memory_space<smem>>
    %c1_i32_429 = arith.constant 1 : i32
    %1543 = tpu.dynamic_rotate %1541 by %c1_i32_429 dim 1 : vector<16x128xf32>, i32 -> vector<16x128xf32>
    %cst_430 = arith.constant 0.000000e+00 : f32
    %1544 = vector.broadcast %cst_430 : f32 to vector<16x128xf32>
    %1545 = arith.select %9, %1543, %1544 : vector<16x128xi1>, vector<16x128xf32>
    %1546 = vector.broadcast %1542 : f32 to vector<16x128xf32>
    %1547 = arith.mulf %1546, %1545 : vector<16x128xf32>
    %1548 = arith.addf %1539, %1547 : vector<16x128xf32>
    %c55_431 = arith.constant 55 : index
    %1549 = memref.load %arg3[%c55_431] : memref<96xf32, #tpu.memory_space<smem>>
    %1550 = vector.broadcast %1549 : f32 to vector<16x128xf32>
    %1551 = arith.mulf %1550, %1541 : vector<16x128xf32>
    %1552 = arith.addf %1548, %1551 : vector<16x128xf32>
    %c87_432 = arith.constant 87 : index
    %1553 = memref.load %arg3[%c87_432] : memref<96xf32, #tpu.memory_space<smem>>
    %c127_i32_433 = arith.constant 127 : i32
    %1554 = tpu.dynamic_rotate %1541 by %c127_i32_433 dim 1 : vector<16x128xf32>, i32 -> vector<16x128xf32>
    %cst_434 = arith.constant 0.000000e+00 : f32
    %1555 = vector.broadcast %cst_434 : f32 to vector<16x128xf32>
    %1556 = arith.select %18, %1554, %1555 : vector<16x128xi1>, vector<16x128xf32>
    %1557 = vector.broadcast %1553 : f32 to vector<16x128xf32>
    %1558 = arith.mulf %1557, %1556 : vector<16x128xf32>
    %1559 = arith.addf %1552, %1558 : vector<16x128xf32>
    %c3_435 = arith.constant 3 : index
    %c0_436 = arith.constant 0 : index
    %c0_437 = arith.constant 0 : index
    %1560 = vector.load %arg10[%c3_435, %c0_436, %c0_437] : memref<4x16x128xf32, #tpu.memory_space<vmem>>, vector<1x16x128xf32>
    %1561 = vector.shape_cast %1560 : vector<1x16x128xf32> to vector<16x128xf32>
    %c31_438 = arith.constant 31 : index
    %1562 = memref.load %arg3[%c31_438] : memref<96xf32, #tpu.memory_space<smem>>
    %c1_i32_439 = arith.constant 1 : i32
    %1563 = tpu.dynamic_rotate %1561 by %c1_i32_439 dim 1 : vector<16x128xf32>, i32 -> vector<16x128xf32>
    %cst_440 = arith.constant 0.000000e+00 : f32
    %1564 = vector.broadcast %cst_440 : f32 to vector<16x128xf32>
    %1565 = arith.select %9, %1563, %1564 : vector<16x128xi1>, vector<16x128xf32>
    %1566 = vector.broadcast %1562 : f32 to vector<16x128xf32>
    %1567 = arith.mulf %1566, %1565 : vector<16x128xf32>
    %1568 = arith.addf %1559, %1567 : vector<16x128xf32>
    %c63 = arith.constant 63 : index
    %1569 = memref.load %arg3[%c63] : memref<96xf32, #tpu.memory_space<smem>>
    %1570 = vector.broadcast %1569 : f32 to vector<16x128xf32>
    %1571 = arith.mulf %1570, %1561 : vector<16x128xf32>
    %1572 = arith.addf %1568, %1571 : vector<16x128xf32>
    %c95_441 = arith.constant 95 : index
    %1573 = memref.load %arg3[%c95_441] : memref<96xf32, #tpu.memory_space<smem>>
    %c127_i32_442 = arith.constant 127 : i32
    %1574 = tpu.dynamic_rotate %1561 by %c127_i32_442 dim 1 : vector<16x128xf32>, i32 -> vector<16x128xf32>
    %cst_443 = arith.constant 0.000000e+00 : f32
    %1575 = vector.broadcast %cst_443 : f32 to vector<16x128xf32>
    %1576 = arith.select %18, %1574, %1575 : vector<16x128xi1>, vector<16x128xf32>
    %1577 = vector.broadcast %1573 : f32 to vector<16x128xf32>
    %1578 = arith.mulf %1577, %1576 : vector<16x128xf32>
    %1579 = arith.addf %1572, %1578 : vector<16x128xf32>
    %c7_444 = arith.constant 7 : index
    %1580 = memref.load %arg8[%c7_444] : memref<8xf32, #tpu.memory_space<smem>>
    %1581 = vector.broadcast %1580 : f32 to vector<16x128xf32>
    %1582 = arith.addf %1579, %1581 : vector<16x128xf32>
    %cst_445 = arith.constant 0.000000e+00 : f32
    %1583 = vector.broadcast %cst_445 : f32 to vector<16x128xf32>
    %1584 = arith.maximumf %1582, %1583 : vector<16x128xf32>
    %c1_i32_446 = arith.constant 1 : i32
    %1585 = tpu.dynamic_rotate %1584 by %c1_i32_446 dim 1 : vector<16x128xf32>, i32 -> vector<16x128xf32>
    %cst_447 = arith.constant 0.000000e+00 : f32
    %1586 = vector.broadcast %cst_447 : f32 to vector<16x128xf32>
    %1587 = arith.select %9, %1585, %1586 : vector<16x128xi1>, vector<16x128xf32>
    %c127_i32_448 = arith.constant 127 : i32
    %1588 = tpu.dynamic_rotate %1584 by %c127_i32_448 dim 1 : vector<16x128xf32>, i32 -> vector<16x128xf32>
    %cst_449 = arith.constant 0.000000e+00 : f32
    %1589 = vector.broadcast %cst_449 : f32 to vector<16x128xf32>
    %1590 = arith.select %18, %1588, %1589 : vector<16x128xi1>, vector<16x128xf32>
    %c56_450 = arith.constant 56 : index
    %1591 = memref.load %arg4[%c56_450] : memref<192xf32, #tpu.memory_space<smem>>
    %1592 = vector.broadcast %1591 : f32 to vector<16x128xf32>
    %1593 = arith.mulf %1592, %1587 : vector<16x128xf32>
    %1594 = arith.addf %1416, %1593 : vector<16x128xf32>
    %c120 = arith.constant 120 : index
    %1595 = memref.load %arg4[%c120] : memref<192xf32, #tpu.memory_space<smem>>
    %1596 = vector.broadcast %1595 : f32 to vector<16x128xf32>
    %1597 = arith.mulf %1596, %1584 : vector<16x128xf32>
    %1598 = arith.addf %1594, %1597 : vector<16x128xf32>
    %c184 = arith.constant 184 : index
    %1599 = memref.load %arg4[%c184] : memref<192xf32, #tpu.memory_space<smem>>
    %1600 = vector.broadcast %1599 : f32 to vector<16x128xf32>
    %1601 = arith.mulf %1600, %1590 : vector<16x128xf32>
    %1602 = arith.addf %1598, %1601 : vector<16x128xf32>
    %c57_451 = arith.constant 57 : index
    %1603 = memref.load %arg4[%c57_451] : memref<192xf32, #tpu.memory_space<smem>>
    %1604 = vector.broadcast %1603 : f32 to vector<16x128xf32>
    %1605 = arith.mulf %1604, %1587 : vector<16x128xf32>
    %1606 = arith.addf %1428, %1605 : vector<16x128xf32>
    %c121 = arith.constant 121 : index
    %1607 = memref.load %arg4[%c121] : memref<192xf32, #tpu.memory_space<smem>>
    %1608 = vector.broadcast %1607 : f32 to vector<16x128xf32>
    %1609 = arith.mulf %1608, %1584 : vector<16x128xf32>
    %1610 = arith.addf %1606, %1609 : vector<16x128xf32>
    %c185 = arith.constant 185 : index
    %1611 = memref.load %arg4[%c185] : memref<192xf32, #tpu.memory_space<smem>>
    %1612 = vector.broadcast %1611 : f32 to vector<16x128xf32>
    %1613 = arith.mulf %1612, %1590 : vector<16x128xf32>
    %1614 = arith.addf %1610, %1613 : vector<16x128xf32>
    %c58_452 = arith.constant 58 : index
    %1615 = memref.load %arg4[%c58_452] : memref<192xf32, #tpu.memory_space<smem>>
    %1616 = vector.broadcast %1615 : f32 to vector<16x128xf32>
    %1617 = arith.mulf %1616, %1587 : vector<16x128xf32>
    %1618 = arith.addf %1440, %1617 : vector<16x128xf32>
    %c122 = arith.constant 122 : index
    %1619 = memref.load %arg4[%c122] : memref<192xf32, #tpu.memory_space<smem>>
    %1620 = vector.broadcast %1619 : f32 to vector<16x128xf32>
    %1621 = arith.mulf %1620, %1584 : vector<16x128xf32>
    %1622 = arith.addf %1618, %1621 : vector<16x128xf32>
    %c186 = arith.constant 186 : index
    %1623 = memref.load %arg4[%c186] : memref<192xf32, #tpu.memory_space<smem>>
    %1624 = vector.broadcast %1623 : f32 to vector<16x128xf32>
    %1625 = arith.mulf %1624, %1590 : vector<16x128xf32>
    %1626 = arith.addf %1622, %1625 : vector<16x128xf32>
    %c59_453 = arith.constant 59 : index
    %1627 = memref.load %arg4[%c59_453] : memref<192xf32, #tpu.memory_space<smem>>
    %1628 = vector.broadcast %1627 : f32 to vector<16x128xf32>
    %1629 = arith.mulf %1628, %1587 : vector<16x128xf32>
    %1630 = arith.addf %1452, %1629 : vector<16x128xf32>
    %c123 = arith.constant 123 : index
    %1631 = memref.load %arg4[%c123] : memref<192xf32, #tpu.memory_space<smem>>
    %1632 = vector.broadcast %1631 : f32 to vector<16x128xf32>
    %1633 = arith.mulf %1632, %1584 : vector<16x128xf32>
    %1634 = arith.addf %1630, %1633 : vector<16x128xf32>
    %c187 = arith.constant 187 : index
    %1635 = memref.load %arg4[%c187] : memref<192xf32, #tpu.memory_space<smem>>
    %1636 = vector.broadcast %1635 : f32 to vector<16x128xf32>
    %1637 = arith.mulf %1636, %1590 : vector<16x128xf32>
    %1638 = arith.addf %1634, %1637 : vector<16x128xf32>
    %c60_454 = arith.constant 60 : index
    %1639 = memref.load %arg4[%c60_454] : memref<192xf32, #tpu.memory_space<smem>>
    %1640 = vector.broadcast %1639 : f32 to vector<16x128xf32>
    %1641 = arith.mulf %1640, %1587 : vector<16x128xf32>
    %1642 = arith.addf %1464, %1641 : vector<16x128xf32>
    %c124 = arith.constant 124 : index
    %1643 = memref.load %arg4[%c124] : memref<192xf32, #tpu.memory_space<smem>>
    %1644 = vector.broadcast %1643 : f32 to vector<16x128xf32>
    %1645 = arith.mulf %1644, %1584 : vector<16x128xf32>
    %1646 = arith.addf %1642, %1645 : vector<16x128xf32>
    %c188 = arith.constant 188 : index
    %1647 = memref.load %arg4[%c188] : memref<192xf32, #tpu.memory_space<smem>>
    %1648 = vector.broadcast %1647 : f32 to vector<16x128xf32>
    %1649 = arith.mulf %1648, %1590 : vector<16x128xf32>
    %1650 = arith.addf %1646, %1649 : vector<16x128xf32>
    %c61_455 = arith.constant 61 : index
    %1651 = memref.load %arg4[%c61_455] : memref<192xf32, #tpu.memory_space<smem>>
    %1652 = vector.broadcast %1651 : f32 to vector<16x128xf32>
    %1653 = arith.mulf %1652, %1587 : vector<16x128xf32>
    %1654 = arith.addf %1476, %1653 : vector<16x128xf32>
    %c125 = arith.constant 125 : index
    %1655 = memref.load %arg4[%c125] : memref<192xf32, #tpu.memory_space<smem>>
    %1656 = vector.broadcast %1655 : f32 to vector<16x128xf32>
    %1657 = arith.mulf %1656, %1584 : vector<16x128xf32>
    %1658 = arith.addf %1654, %1657 : vector<16x128xf32>
    %c189 = arith.constant 189 : index
    %1659 = memref.load %arg4[%c189] : memref<192xf32, #tpu.memory_space<smem>>
    %1660 = vector.broadcast %1659 : f32 to vector<16x128xf32>
    %1661 = arith.mulf %1660, %1590 : vector<16x128xf32>
    %1662 = arith.addf %1658, %1661 : vector<16x128xf32>
    %c62_456 = arith.constant 62 : index
    %1663 = memref.load %arg4[%c62_456] : memref<192xf32, #tpu.memory_space<smem>>
    %1664 = vector.broadcast %1663 : f32 to vector<16x128xf32>
    %1665 = arith.mulf %1664, %1587 : vector<16x128xf32>
    %1666 = arith.addf %1488, %1665 : vector<16x128xf32>
    %c126 = arith.constant 126 : index
    %1667 = memref.load %arg4[%c126] : memref<192xf32, #tpu.memory_space<smem>>
    %1668 = vector.broadcast %1667 : f32 to vector<16x128xf32>
    %1669 = arith.mulf %1668, %1584 : vector<16x128xf32>
    %1670 = arith.addf %1666, %1669 : vector<16x128xf32>
    %c190 = arith.constant 190 : index
    %1671 = memref.load %arg4[%c190] : memref<192xf32, #tpu.memory_space<smem>>
    %1672 = vector.broadcast %1671 : f32 to vector<16x128xf32>
    %1673 = arith.mulf %1672, %1590 : vector<16x128xf32>
    %1674 = arith.addf %1670, %1673 : vector<16x128xf32>
    %c63_457 = arith.constant 63 : index
    %1675 = memref.load %arg4[%c63_457] : memref<192xf32, #tpu.memory_space<smem>>
    %1676 = vector.broadcast %1675 : f32 to vector<16x128xf32>
    %1677 = arith.mulf %1676, %1587 : vector<16x128xf32>
    %1678 = arith.addf %1500, %1677 : vector<16x128xf32>
    %c127 = arith.constant 127 : index
    %1679 = memref.load %arg4[%c127] : memref<192xf32, #tpu.memory_space<smem>>
    %1680 = vector.broadcast %1679 : f32 to vector<16x128xf32>
    %1681 = arith.mulf %1680, %1584 : vector<16x128xf32>
    %1682 = arith.addf %1678, %1681 : vector<16x128xf32>
    %c191 = arith.constant 191 : index
    %1683 = memref.load %arg4[%c191] : memref<192xf32, #tpu.memory_space<smem>>
    %1684 = vector.broadcast %1683 : f32 to vector<16x128xf32>
    %1685 = arith.mulf %1684, %1590 : vector<16x128xf32>
    %1686 = arith.addf %1682, %1685 : vector<16x128xf32>
    %c0_458 = arith.constant 0 : index
    %c0_459 = arith.constant 0 : index
    %c0_460 = arith.constant 0 : index
    %c0_461 = arith.constant 0 : index
    %1687 = vector.load %arg9[%c0_458, %c0_459, %c0_460, %c0_461] : memref<1x8x16x128xf32, #tpu.memory_space<vmem>>, vector<1x1x16x128xf32>
    %1688 = vector.shape_cast %1687 : vector<1x1x16x128xf32> to vector<16x128xf32>
    %1689 = vector.shape_cast %1602 : vector<16x128xf32> to vector<1x1x16x128xf32>
    tpu.vector_store %arg9[%c0_458, %c0_459, %c0_460, %c0_461], %1689 {strides = array<i32>} : memref<1x8x16x128xf32, #tpu.memory_space<vmem>>, vector<1x1x16x128xf32>,
    %c0_462 = arith.constant 0 : index
    %c1_463 = arith.constant 1 : index
    %c0_464 = arith.constant 0 : index
    %c0_465 = arith.constant 0 : index
    %1690 = vector.load %arg9[%c0_462, %c1_463, %c0_464, %c0_465] : memref<1x8x16x128xf32, #tpu.memory_space<vmem>>, vector<1x1x16x128xf32>
    %1691 = vector.shape_cast %1690 : vector<1x1x16x128xf32> to vector<16x128xf32>
    %1692 = vector.shape_cast %1614 : vector<16x128xf32> to vector<1x1x16x128xf32>
    tpu.vector_store %arg9[%c0_462, %c1_463, %c0_464, %c0_465], %1692 {strides = array<i32>} : memref<1x8x16x128xf32, #tpu.memory_space<vmem>>, vector<1x1x16x128xf32>,
    %c0_466 = arith.constant 0 : index
    %c2_467 = arith.constant 2 : index
    %c0_468 = arith.constant 0 : index
    %c0_469 = arith.constant 0 : index
    %1693 = vector.load %arg9[%c0_466, %c2_467, %c0_468, %c0_469] : memref<1x8x16x128xf32, #tpu.memory_space<vmem>>, vector<1x1x16x128xf32>
    %1694 = vector.shape_cast %1693 : vector<1x1x16x128xf32> to vector<16x128xf32>
    %1695 = vector.shape_cast %1626 : vector<16x128xf32> to vector<1x1x16x128xf32>
    tpu.vector_store %arg9[%c0_466, %c2_467, %c0_468, %c0_469], %1695 {strides = array<i32>} : memref<1x8x16x128xf32, #tpu.memory_space<vmem>>, vector<1x1x16x128xf32>,
    %c0_470 = arith.constant 0 : index
    %c3_471 = arith.constant 3 : index
    %c0_472 = arith.constant 0 : index
    %c0_473 = arith.constant 0 : index
    %1696 = vector.load %arg9[%c0_470, %c3_471, %c0_472, %c0_473] : memref<1x8x16x128xf32, #tpu.memory_space<vmem>>, vector<1x1x16x128xf32>
    %1697 = vector.shape_cast %1696 : vector<1x1x16x128xf32> to vector<16x128xf32>
    %1698 = vector.shape_cast %1638 : vector<16x128xf32> to vector<1x1x16x128xf32>
    tpu.vector_store %arg9[%c0_470, %c3_471, %c0_472, %c0_473], %1698 {strides = array<i32>} : memref<1x8x16x128xf32, #tpu.memory_space<vmem>>, vector<1x1x16x128xf32>,
    %c0_474 = arith.constant 0 : index
    %c4_475 = arith.constant 4 : index
    %c0_476 = arith.constant 0 : index
    %c0_477 = arith.constant 0 : index
    %1699 = vector.load %arg9[%c0_474, %c4_475, %c0_476, %c0_477] : memref<1x8x16x128xf32, #tpu.memory_space<vmem>>, vector<1x1x16x128xf32>
    %1700 = vector.shape_cast %1699 : vector<1x1x16x128xf32> to vector<16x128xf32>
    %1701 = vector.shape_cast %1650 : vector<16x128xf32> to vector<1x1x16x128xf32>
    tpu.vector_store %arg9[%c0_474, %c4_475, %c0_476, %c0_477], %1701 {strides = array<i32>} : memref<1x8x16x128xf32, #tpu.memory_space<vmem>>, vector<1x1x16x128xf32>,
    %c0_478 = arith.constant 0 : index
    %c5_479 = arith.constant 5 : index
    %c0_480 = arith.constant 0 : index
    %c0_481 = arith.constant 0 : index
    %1702 = vector.load %arg9[%c0_478, %c5_479, %c0_480, %c0_481] : memref<1x8x16x128xf32, #tpu.memory_space<vmem>>, vector<1x1x16x128xf32>
    %1703 = vector.shape_cast %1702 : vector<1x1x16x128xf32> to vector<16x128xf32>
    %1704 = vector.shape_cast %1662 : vector<16x128xf32> to vector<1x1x16x128xf32>
    tpu.vector_store %arg9[%c0_478, %c5_479, %c0_480, %c0_481], %1704 {strides = array<i32>} : memref<1x8x16x128xf32, #tpu.memory_space<vmem>>, vector<1x1x16x128xf32>,
    %c0_482 = arith.constant 0 : index
    %c6_483 = arith.constant 6 : index
    %c0_484 = arith.constant 0 : index
    %c0_485 = arith.constant 0 : index
    %1705 = vector.load %arg9[%c0_482, %c6_483, %c0_484, %c0_485] : memref<1x8x16x128xf32, #tpu.memory_space<vmem>>, vector<1x1x16x128xf32>
    %1706 = vector.shape_cast %1705 : vector<1x1x16x128xf32> to vector<16x128xf32>
    %1707 = vector.shape_cast %1674 : vector<16x128xf32> to vector<1x1x16x128xf32>
    tpu.vector_store %arg9[%c0_482, %c6_483, %c0_484, %c0_485], %1707 {strides = array<i32>} : memref<1x8x16x128xf32, #tpu.memory_space<vmem>>, vector<1x1x16x128xf32>,
    %c0_486 = arith.constant 0 : index
    %c7_487 = arith.constant 7 : index
    %c0_488 = arith.constant 0 : index
    %c0_489 = arith.constant 0 : index
    %1708 = vector.load %arg9[%c0_486, %c7_487, %c0_488, %c0_489] : memref<1x8x16x128xf32, #tpu.memory_space<vmem>>, vector<1x1x16x128xf32>
    %1709 = vector.shape_cast %1708 : vector<1x1x16x128xf32> to vector<16x128xf32>
    %1710 = vector.shape_cast %1686 : vector<16x128xf32> to vector<1x1x16x128xf32>
    tpu.vector_store %arg9[%c0_486, %c7_487, %c0_488, %c0_489], %1710 {strides = array<i32>} : memref<1x8x16x128xf32, #tpu.memory_space<vmem>>, vector<1x1x16x128xf32>,
    return
  }
  func.func @transform_0(%arg0: i32, %arg1: i32) -> (i32, i32, i32, i32) {
    %c0_i32 = arith.constant 0 : i32
    %c0_i32_0 = arith.constant 0 : i32
    %c0_i32_1 = arith.constant 0 : i32
    return %arg0, %c0_i32, %arg1, %c0_i32_0 : i32, i32, i32, i32
  }
  func.func @transform_1(%arg0: i32, %arg1: i32) -> i32 {
    %c0_i32 = arith.constant 0 : i32
    %c0_i32_0 = arith.constant 0 : i32
    return %c0_i32 : i32
  }
  func.func @transform_2(%arg0: i32, %arg1: i32) -> i32 {
    %c0_i32 = arith.constant 0 : i32
    %c0_i32_0 = arith.constant 0 : i32
    return %c0_i32 : i32
  }
  func.func @transform_3(%arg0: i32, %arg1: i32) -> i32 {
    %c0_i32 = arith.constant 0 : i32
    %c0_i32_0 = arith.constant 0 : i32
    return %c0_i32 : i32
  }
  func.func @transform_4(%arg0: i32, %arg1: i32) -> i32 {
    %c0_i32 = arith.constant 0 : i32
    %c0_i32_0 = arith.constant 0 : i32
    return %c0_i32 : i32
  }
  func.func @transform_5(%arg0: i32, %arg1: i32) -> i32 {
    %c0_i32 = arith.constant 0 : i32
    %c0_i32_0 = arith.constant 0 : i32
    return %c0_i32 : i32
  }
  func.func @transform_6(%arg0: i32, %arg1: i32) -> i32 {
    %c0_i32 = arith.constant 0 : i32
    %c0_i32_0 = arith.constant 0 : i32
    return %c0_i32 : i32
  }
  func.func @transform_7(%arg0: i32, %arg1: i32) -> (i32, i32, i32, i32) {
    %c0_i32 = arith.constant 0 : i32
    %c0_i32_0 = arith.constant 0 : i32
    %c0_i32_1 = arith.constant 0 : i32
    return %arg0, %c0_i32, %arg1, %c0_i32_0 : i32, i32, i32, i32
  }
}

</mosaic_0001>

<llo_original>
// kernel: tpu_custom_call.1
$region0: #{tpu_custom_call.1}
  #allocation0 [shape = 'u32[]', space=smem, size = 0x4, offset = 0x4, fixed_abs, tag = 'smem constant byte address 0x4 - core index']
  #allocation1 [shape = 'u32[144,128]{1,0:T(1,128)}', space=vmem, size = 0x12000, scoped, tag = 'internal scratch']
  #allocation2 [shape = 'f32[4,16,128]{2,1,0:T(8,128)}', space=vmem, size = 0x8000, scoped, tag = 'scratch operand']
  %s0 = inlined_call_operand.hbm [shape: f32[2,4,16,128], index: 0, kind: input, shape index: {}]
  %s1 = inlined_call_operand.vmem [shape: f32[96], index: 1, kind: input, shape index: {}]
  %s2 = inlined_call_operand.vmem [shape: f32[192], index: 2, kind: input, shape index: {}]
  %s3 = inlined_call_operand.vmem [shape: f32[32], index: 3, kind: input, shape index: {}]
  %s4 = inlined_call_operand.vmem [shape: f32[4], index: 4, kind: input, shape index: {}]
  %s5 = inlined_call_operand.vmem [shape: f32[4], index: 5, kind: input, shape index: {}]
  %s6 = inlined_call_operand.vmem [shape: f32[8], index: 6, kind: input, shape index: {}]
  %s7 = inlined_call_operand.hbm [shape: f32[2,8,16,128], index: 7, kind: output, shape index: {}]
  %s8 = sld [smem:[#allocation0]]
  $region89: #{tpu_custom_call.1} parent=0
    _
  %s10 = ssub.s32 1, %s8
  %s11 = scalar_select 0, %s10, %s8
  $region1: #{tpu_custom_call.1} parent=0
    #allocation3 [shape = 'u8[65536]{0}', space=vmem, size = 0x10000, scoped, tag = 'input window, operand 0']
    #allocation4 [shape = 's32[2]{0}', space=sflag, size = 0x8, scoped, tag = 'scoped memory for tpu_custom_call.1']
    #allocation5 [shape = 's32[2]{0}', space=sflag, size = 0x8, scoped, tag = 'scoped memory for tpu_custom_call.1']
    #allocation6 [shape = 's32[2]{0}', space=sflag, size = 0x8, scoped, tag = 'scoped memory for tpu_custom_call.1']
    #allocation7 [shape = 'u8[512]{0}', space=smem, size = 0x200, scoped, tag = 'input window, operand 1, single buffered']
    #allocation8 [shape = 'u8[1024]{0}', space=smem, size = 0x400, scoped, tag = 'input window, operand 2, single buffered']
    #allocation9 [shape = 's32[1]{0}', space=sflag, size = 0x4, scoped, tag = 'scoped memory for tpu_custom_call.1']
    #allocation10 [shape = 'u8[512]{0}', space=smem, size = 0x200, scoped, tag = 'input window, operand 3, single buffered']
    #allocation11 [shape = 'u8[512]{0}', space=smem, size = 0x200, scoped, tag = 'input window, operand 4, single buffered']
    #allocation12 [shape = 's32[1]{0}', space=sflag, size = 0x4, scoped, tag = 'scoped memory for tpu_custom_call.1']
    #allocation13 [shape = 'u8[512]{0}', space=smem, size = 0x200, scoped, tag = 'input window, operand 5, single buffered']
    #allocation14 [shape = 'u8[512]{0}', space=smem, size = 0x200, scoped, tag = 'input window, operand 6, single buffered']
    #allocation15 [shape = 's32[1]{0}', space=sflag, size = 0x4, scoped, tag = 'scoped memory for tpu_custom_call.1']
    #allocation16 [shape = 'u8[131072]{0}', space=vmem, size = 0x20000, scoped, tag = 'output window, operand 0']
    %12 = vsyncpa [#allocation4], 0
    %s13 = scalar_lea.sflag [#allocation4], 1
    %14 = vsyncpa %s13, 0
    %15 = vsyncpa [#allocation6], 0
    %16 = vsyncpa [#allocation9], 0
    %17 = vsyncpa [#allocation12], 0
    %18 = vsyncpa [#allocation15], 0
    %19 = vsyncpa [#allocation5], 0
    %s20 = scalar_lea.sflag [#allocation5], 1
    %21 = vsyncpa %s20, 0
    loop: start=0, step=1, limit=4
    $region2: #{tpu_custom_call.1} parent=1 // loop_pre_header
      _
    $region3: #{tpu_custom_call.1} parent=1 // loop_header
      %s23 = sphi 0, %s27
      %p24 = scmp.ge.s32.totalorder %s23, 4
      %s30 = sphi 0, %s42
      %s31 = sphi 0, %s38
      %s32 = sphi 0, %s30
      %s33 = sphi 0, %s31
      %s34 = sphi 0, %s32
      %s35 = sphi 0, %s33
      %s47 = sphi 0, %s49
      %s50 = sphi 0, %s47
      %s51 = sphi 0, %s50
      %s67 = sphi 0, %s51
      %s71 = sphi 0, %s71
      %s73 = sphi 0, %s71
      %s74 = sphi 0, %s73
      %s88 = sphi 0, %s74
      %s92 = sphi 0, %s92
      %s94 = sphi 0, %s92
      %s95 = sphi 0, %s94
      %s109 = sphi 0, %s95
      %s113 = sphi 0, %s113
      %s115 = sphi 0, %s113
      %s116 = sphi 0, %s115
      %s130 = sphi 0, %s116
      %s134 = sphi 0, %s134
      %s136 = sphi 0, %s134
      %s137 = sphi 0, %s136
      %s151 = sphi 0, %s137
      %s155 = sphi 0, %s155
      %s157 = sphi 0, %s155
      %s158 = sphi 0, %s157
      %s172 = sphi 0, %s158
      %s176 = sphi 0, %s176
      %s178 = sphi 0, %s176
      %s179 = sphi 0, %s178
      %s193 = sphi 0, %s179
      %s201 = sphi 0, %s203
      %s204 = sphi 0, %s201
      %s205 = sphi 0, %s204
      %s221 = sphi 0, %s205
    $region4: #{tpu_custom_call.1} parent=1 // loop_header_branch
      %26 = sbr.rel (%p24) target = $region8
    $region5: #{tpu_custom_call.1} parent=1 // loop_body
      %s28 = ssub.s32 %s23, 1
      %s29 = ssub.s32 %s23, 2
      %s36 = sadd.s32 1, %s31
      %p37 = scmp.ge.s32.totalorder %s36, 1
      %s38 = scalar_select %p37, 0, %s36
      %s39 = sadd.s32 1, %s30
      %s40 = scalar_select %p37, %s39, %s30
      %p41 = scmp.ge.s32.totalorder %s40, 2
      %s42 = scalar_select %p41, 0, %s40
      %s43 = ssub.s32 %s30, %s42
      %s44 = ssub.s32 %s31, %s38
      %s45 = sor.u32 %s43, %s44
      %p46 = scmp.eq.s32.totalorder %s45, 0
      %s48 = sadd.s32 %s47, 1
      %s49 = scalar_select %p46, %s47, %s48
      %p52 = pneg %p46
      %p53 = scmp.eq.s32.totalorder %s23, 1
      %p54 = por %p52, %p53
      %p55 = scmp.ne.s32.totalorder %s47, %s50
      %p56 = scmp.eq.s32.totalorder %s23, 0
      %p57 = por %p55, %p56
      %p58 = scmp.ne.s32.totalorder %s47, %s50
      %p59 = scmp.eq.s32.totalorder %s28, 1
      %p60 = por %p58, %p59
      %p61 = scmp.ne.s32.totalorder %s50, %s51
      %p62 = scmp.eq.s32.totalorder %s28, 0
      %p63 = por %p61, %p62
      %p64 = scmp.ne.s32.totalorder %s50, %s51
      %p65 = scmp.eq.s32.totalorder %s29, 1
      %p66 = por %p64, %p65
      %p68 = scmp.ne.s32.totalorder %s51, %s67
      %p69 = scmp.eq.s32.totalorder %s29, 0
      %p70 = por %p68, %p69
      %s72 = sadd.s32 %s71, 1
      %p75 = scmp.eq.s32.totalorder %s23, 1
      %p76 = scmp.ne.s32.totalorder %s71, %s73
      %p77 = scmp.eq.s32.totalorder %s23, 0
      %p78 = por %p76, %p77
      %p79 = scmp.ne.s32.totalorder %s71, %s73
      %p80 = scmp.eq.s32.totalorder %s28, 1
      %p81 = por %p79, %p80
      %p82 = scmp.ne.s32.totalorder %s73, %s74
      %p83 = scmp.eq.s32.totalorder %s28, 0
      %p84 = por %p82, %p83
      %p85 = scmp.ne.s32.totalorder %s73, %s74
      %p86 = scmp.eq.s32.totalorder %s29, 1
      %p87 = por %p85, %p86
      %p89 = scmp.ne.s32.totalorder %s74, %s88
      %p90 = scmp.eq.s32.totalorder %s29, 0
      %p91 = por %p89, %p90
      %s93 = sadd.s32 %s92, 1
      %p96 = scmp.eq.s32.totalorder %s23, 1
      %p97 = scmp.ne.s32.totalorder %s92, %s94
      %p98 = scmp.eq.s32.totalorder %s23, 0
      %p99 = por %p97, %p98
      %p100 = scmp.ne.s32.totalorder %s92, %s94
      %p101 = scmp.eq.s32.totalorder %s28, 1
      %p102 = por %p100, %p101
      %p103 = scmp.ne.s32.totalorder %s94, %s95
      %p104 = scmp.eq.s32.totalorder %s28, 0
      %p105 = por %p103, %p104
      %p106 = scmp.ne.s32.totalorder %s94, %s95
      %p107 = scmp.eq.s32.totalorder %s29, 1
      %p108 = por %p106, %p107
      %p110 = scmp.ne.s32.totalorder %s95, %s109
      %p111 = scmp.eq.s32.totalorder %s29, 0
      %p112 = por %p110, %p111
      %s114 = sadd.s32 %s113, 1
      %p117 = scmp.eq.s32.totalorder %s23, 1
      %p118 = scmp.ne.s32.totalorder %s113, %s115
      %p119 = scmp.eq.s32.totalorder %s23, 0
      %p120 = por %p118, %p119
      %p121 = scmp.ne.s32.totalorder %s113, %s115
      %p122 = scmp.eq.s32.totalorder %s28, 1
      %p123 = por %p121, %p122
      %p124 = scmp.ne.s32.totalorder %s115, %s116
      %p125 = scmp.eq.s32.totalorder %s28, 0
      %p126 = por %p124, %p125
      %p127 = scmp.ne.s32.totalorder %s115, %s116
      %p128 = scmp.eq.s32.totalorder %s29, 1
      %p129 = por %p127, %p128
      %p131 = scmp.ne.s32.totalorder %s116, %s130
      %p132 = scmp.eq.s32.totalorder %s29, 0
      %p133 = por %p131, %p132
      %s135 = sadd.s32 %s134, 1
      %p138 = scmp.eq.s32.totalorder %s23, 1
      %p139 = scmp.ne.s32.totalorder %s134, %s136
      %p140 = scmp.eq.s32.totalorder %s23, 0
      %p141 = por %p139, %p140
      %p142 = scmp.ne.s32.totalorder %s134, %s136
      %p143 = scmp.eq.s32.totalorder %s28, 1
      %p144 = por %p142, %p143
      %p145 = scmp.ne.s32.totalorder %s136, %s137
      %p146 = scmp.eq.s32.totalorder %s28, 0
      %p147 = por %p145, %p146
      %p148 = scmp.ne.s32.totalorder %s136, %s137
      %p149 = scmp.eq.s32.totalorder %s29, 1
      %p150 = por %p148, %p149
      %p152 = scmp.ne.s32.totalorder %s137, %s151
      %p153 = scmp.eq.s32.totalorder %s29, 0
      %p154 = por %p152, %p153
      %s156 = sadd.s32 %s155, 1
      %p159 = scmp.eq.s32.totalorder %s23, 1
      %p160 = scmp.ne.s32.totalorder %s155, %s157
      %p161 = scmp.eq.s32.totalorder %s23, 0
      %p162 = por %p160, %p161
      %p163 = scmp.ne.s32.totalorder %s155, %s157
      %p164 = scmp.eq.s32.totalorder %s28, 1
      %p165 = por %p163, %p164
      %p166 = scmp.ne.s32.totalorder %s157, %s158
      %p167 = scmp.eq.s32.totalorder %s28, 0
      %p168 = por %p166, %p167
      %p169 = scmp.ne.s32.totalorder %s157, %s158
      %p170 = scmp.eq.s32.totalorder %s29, 1
      %p171 = por %p169, %p170
      %p173 = scmp.ne.s32.totalorder %s158, %s172
      %p174 = scmp.eq.s32.totalorder %s29, 0
      %p175 = por %p173, %p174
      %s177 = sadd.s32 %s176, 1
      %p180 = scmp.eq.s32.totalorder %s23, 1
      %p181 = scmp.ne.s32.totalorder %s176, %s178
      %p182 = scmp.eq.s32.totalorder %s23, 0
      %p183 = por %p181, %p182
      %p184 = scmp.ne.s32.totalorder %s176, %s178
      %p185 = scmp.eq.s32.totalorder %s28, 1
      %p186 = por %p184, %p185
      %p187 = scmp.ne.s32.totalorder %s178, %s179
      %p188 = scmp.eq.s32.totalorder %s28, 0
      %p189 = por %p187, %p188
      %p190 = scmp.ne.s32.totalorder %s178, %s179
      %p191 = scmp.eq.s32.totalorder %s29, 1
      %p192 = por %p190, %p191
      %p194 = scmp.ne.s32.totalorder %s179, %s193
      %p195 = scmp.eq.s32.totalorder %s29, 0
      %p196 = por %p194, %p195
      %s197 = ssub.s32 %s30, %s42
      %s198 = ssub.s32 %s31, %s38
      %s199 = sor.u32 %s197, %s198
      %p200 = scmp.eq.s32.totalorder %s199, 0
      %s202 = sadd.s32 %s201, 1
      %s203 = scalar_select %p200, %s201, %s202
      %p206 = pneg %p200
      %p207 = scmp.eq.s32.totalorder %s23, 1
      %p208 = por %p206, %p207
      %p209 = scmp.ne.s32.totalorder %s201, %s204
      %p210 = scmp.eq.s32.totalorder %s23, 0
      %p211 = por %p209, %p210
      %p212 = scmp.ne.s32.totalorder %s201, %s204
      %p213 = scmp.eq.s32.totalorder %s28, 1
      %p214 = por %p212, %p213
      %p215 = scmp.ne.s32.totalorder %s204, %s205
      %p216 = scmp.eq.s32.totalorder %s28, 0
      %p217 = por %p215, %p216
      %p218 = scmp.ne.s32.totalorder %s204, %s205
      %p219 = scmp.eq.s32.totalorder %s29, 1
      %p220 = por %p218, %p219
      %p222 = scmp.ne.s32.totalorder %s205, %s221
      %p223 = scmp.eq.s32.totalorder %s29, 0
      %p224 = por %p222, %p223
      %p225 = scmp.le.s32.totalorder 1, %s23
      %p226 = scmp.lt.s32.totalorder %s23, 3
      %p227 = pnand %p225, %p226
      %p228 = pneg %p227
      // Predicated region
      $region9: #{tpu_custom_call.1} parent=5 // pred_check
        _
      $region10: #{tpu_custom_call.1} parent=5 // pred_check_branch
        %230 = sbr.rel (%p227) target = $region12
      $region11: #{tpu_custom_call.1} parent=5 // pred_region
        %s231 = ssub.s32 %s23, 1
        // Predicated region
        $region13: #{tpu_custom_call.1} parent=11 // pred_check
          %p232 = pneg %p84
        $region14: #{tpu_custom_call.1} parent=11 // pred_check_branch
          %234 = sbr.rel (%p232) target = $region16
        $region15: #{tpu_custom_call.1} parent=11 // pred_region
          %s236 = ssub.s32 16, 16
          %237 = vsyncadd [#allocation6], %s236
          %s239 = sshll.u32 %s1, 4
          %s240 = int_to_ptr.vmem [resolvable:$true] %s239
          %242 = dma.vmem_to_smem %s240, 16, [#allocation7], [#allocation6]
        $region16: #{tpu_custom_call.1} parent=11 // pred_fallthru
          _
        // Predicated region
        $region17: #{tpu_custom_call.1} parent=11 // pred_check
          %p243 = pneg %p105
        $region18: #{tpu_custom_call.1} parent=11 // pred_check_branch
          %245 = sbr.rel (%p243) target = $region20
        $region19: #{tpu_custom_call.1} parent=11 // pred_region
          %s247 = ssub.s32 32, 32
          %248 = vsyncadd [#allocation9], %s247
          %s250 = sshll.u32 %s2, 4
          %s251 = int_to_ptr.vmem [resolvable:$true] %s250
          %253 = dma.vmem_to_smem %s251, 32, [#allocation8], [#allocation9]
        $region20: #{tpu_custom_call.1} parent=11 // pred_fallthru
          _
        // Predicated region
        $region21: #{tpu_custom_call.1} parent=11 // pred_check
          %p254 = pneg %p126
        $region22: #{tpu_custom_call.1} parent=11 // pred_check_branch
          %256 = sbr.rel (%p254) target = $region24
        $region23: #{tpu_custom_call.1} parent=11 // pred_region
          %s258 = ssub.s32 16, 16
          %259 = vsyncadd [#allocation9], %s258
          %s261 = sshll.u32 %s3, 4
          %s262 = int_to_ptr.vmem [resolvable:$true] %s261
          %264 = dma.vmem_to_smem %s262, 16, [#allocation10], [#allocation9]
        $region24: #{tpu_custom_call.1} parent=11 // pred_fallthru
          _
        // Predicated region
        $region25: #{tpu_custom_call.1} parent=11 // pred_check
          %p265 = pneg %p147
        $region26: #{tpu_custom_call.1} parent=11 // pred_check_branch
          %267 = sbr.rel (%p265) target = $region28
        $region27: #{tpu_custom_call.1} parent=11 // pred_region
          %s269 = ssub.s32 16, 16
          %270 = vsyncadd [#allocation12], %s269
          %s272 = sshll.u32 %s4, 4
          %s273 = int_to_ptr.vmem [resolvable:$true] %s272
          %275 = dma.vmem_to_smem %s273, 16, [#allocation11], [#allocation12]
        $region28: #{tpu_custom_call.1} parent=11 // pred_fallthru
          _
        // Predicated region
        $region29: #{tpu_custom_call.1} parent=11 // pred_check
          %p276 = pneg %p168
        $region30: #{tpu_custom_call.1} parent=11 // pred_check_branch
          %278 = sbr.rel (%p276) target = $region32
        $region31: #{tpu_custom_call.1} parent=11 // pred_region
          %s280 = ssub.s32 16, 16
          %281 = vsyncadd [#allocation12], %s280
          %s283 = sshll.u32 %s5, 4
          %s284 = int_to_ptr.vmem [resolvable:$true] %s283
          %286 = dma.vmem_to_smem %s284, 16, [#allocation13], [#allocation12]
        $region32: #{tpu_custom_call.1} parent=11 // pred_fallthru
          _
        // Predicated region
        $region33: #{tpu_custom_call.1} parent=11 // pred_check
          %p287 = pneg %p189
        $region34: #{tpu_custom_call.1} parent=11 // pred_check_branch
          %289 = sbr.rel (%p287) target = $region36
        $region35: #{tpu_custom_call.1} parent=11 // pred_region
          %s291 = ssub.s32 16, 16
          %292 = vsyncadd [#allocation15], %s291
          %s294 = sshll.u32 %s6, 4
          %s295 = int_to_ptr.vmem [resolvable:$true] %s294
          %297 = dma.vmem_to_smem %s295, 16, [#allocation14], [#allocation15]
        $region36: #{tpu_custom_call.1} parent=11 // pred_fallthru
          _
      $region12: #{tpu_custom_call.1} parent=5 // pred_fallthru
        _
      %p298 = scmp.lt.s32.totalorder %s23, 2
      // Predicated region
      $region37: #{tpu_custom_call.1} parent=5 // pred_check
        %p299 = pneg %p298
      $region38: #{tpu_custom_call.1} parent=5 // pred_check_branch
        %301 = sbr.rel (%p299) target = $region40
      $region39: #{tpu_custom_call.1} parent=5 // pred_region
        // Predicated region
        $region41: #{tpu_custom_call.1} parent=39 // pred_check
          %p302 = pneg %p57
        $region42: #{tpu_custom_call.1} parent=39 // pred_check_branch
          %304 = sbr.rel (%p302) target = $region44
        $region43: #{tpu_custom_call.1} parent=39 // pred_region
          %s305 = sand.u32 %s47, 1
          %s306 = scalar_lea.sflag [#allocation4], %s305
          %s307 = sand.u32 %s47, 1
          %s308 = smul.addr %s307, 64
          %s309 = scalar_lea.vmem [#allocation3], %s308
          %s310 = smul.u32 2, %s31
          %s312 = ssub.s32 1024, 1024
          %313 = vsyncadd %s306, %s312
          %s314 = smul.addr %s30, 8
          %s315 = sadd.s32 %s310, %s314
          %s316 = smul.addr %s315, 128
          %s317 = scalar_lea.hbm %s0, %s316
          %s318 = sshll.u32 %s309, 4
          %s319 = int_to_ptr.vmem [resolvable:$true] %s318
          %324 = dma.hbm_to_vmem [thread:$0]  %s317, 1024, %s319, %s306, 128, 128, 8
        $region44: #{tpu_custom_call.1} parent=39 // pred_fallthru
          _
      $region40: #{tpu_custom_call.1} parent=5 // pred_fallthru
        _
      %p325 = scmp.le.s32.totalorder 1, %s23
      %p326 = scmp.lt.s32.totalorder %s23, 3
      %p327 = pnand %p325, %p326
      %p328 = pneg %p327
      // Predicated region
      $region45: #{tpu_custom_call.1} parent=5 // pred_check
        _
      $region46: #{tpu_custom_call.1} parent=5 // pred_check_branch
        %330 = sbr.rel (%p327) target = $region48
      $region47: #{tpu_custom_call.1} parent=5 // pred_region
        %s331 = ssub.s32 %s23, 1
        %s332 = sand.u32 %s50, 1
        %s333 = scalar_lea.sflag [#allocation4], %s332
        %s334 = sand.u32 %s50, 1
        %s335 = smul.addr %s334, 64
        %s336 = scalar_lea.vmem [#allocation3], %s335
        // Predicated region
        $region49: #{tpu_custom_call.1} parent=47 // pred_check
          %p337 = pneg %p63
        $region50: #{tpu_custom_call.1} parent=47 // pred_check_branch
          %339 = sbr.rel (%p337) target = $region52
        $region51: #{tpu_custom_call.1} parent=47 // pred_region
          %340 = dma.done %s333, 1024
        $region52: #{tpu_custom_call.1} parent=47 // pred_fallthru
          _
        // Predicated region
        $region53: #{tpu_custom_call.1} parent=47 // pred_check
          %p341 = pneg %p84
        $region54: #{tpu_custom_call.1} parent=47 // pred_check_branch
          %343 = sbr.rel (%p341) target = $region56
        $region55: #{tpu_custom_call.1} parent=47 // pred_region
          %344 = dma.done [#allocation6], 16
        $region56: #{tpu_custom_call.1} parent=47 // pred_fallthru
          _
        // Predicated region
        $region57: #{tpu_custom_call.1} parent=47 // pred_check
          %p345 = pneg %p105
        $region58: #{tpu_custom_call.1} parent=47 // pred_check_branch
          %347 = sbr.rel (%p345) target = $region60
        $region59: #{tpu_custom_call.1} parent=47 // pred_region
          %348 = dma.done [#allocation9], 32
        $region60: #{tpu_custom_call.1} parent=47 // pred_fallthru
          _
        // Predicated region
        $region61: #{tpu_custom_call.1} parent=47 // pred_check
          %p349 = pneg %p126
        $region62: #{tpu_custom_call.1} parent=47 // pred_check_branch
          %351 = sbr.rel (%p349) target = $region64
        $region63: #{tpu_custom_call.1} parent=47 // pred_region
          %352 = dma.done [#allocation9], 16
        $region64: #{tpu_custom_call.1} parent=47 // pred_fallthru
          _
        // Predicated region
        $region65: #{tpu_custom_call.1} parent=47 // pred_check
          %p353 = pneg %p147
        $region66: #{tpu_custom_call.1} parent=47 // pred_check_branch
          %355 = sbr.rel (%p353) target = $region68
        $region67: #{tpu_custom_call.1} parent=47 // pred_region
          %356 = dma.done [#allocation12], 16
        $region68: #{tpu_custom_call.1} parent=47 // pred_fallthru
          _
        // Predicated region
        $region69: #{tpu_custom_call.1} parent=47 // pred_check
          %p357 = pneg %p168
        $region70: #{tpu_custom_call.1} parent=47 // pred_check_branch
          %359 = sbr.rel (%p357) target = $region72
        $region71: #{tpu_custom_call.1} parent=47 // pred_region
          %360 = dma.done [#allocation12], 16
        $region72: #{tpu_custom_call.1} parent=47 // pred_fallthru
          _
        // Predicated region
        $region73: #{tpu_custom_call.1} parent=47 // pred_check
          %p361 = pneg %p189
        $region74: #{tpu_custom_call.1} parent=47 // pred_check_branch
          %363 = sbr.rel (%p361) target = $region76
        $region75: #{tpu_custom_call.1} parent=47 // pred_region
          %364 = dma.done [#allocation15], 16
        $region76: #{tpu_custom_call.1} parent=47 // pred_fallthru
          _
        %365 = sfence
        %s366 = sand.u32 %s50, 1
        %s367 = scalar_lea.sflag [#allocation4], %s366
        %s368 = sand.u32 %s50, 1
        %s369 = smul.addr %s368, 64
        %s370 = scalar_lea.vmem [#allocation3], %s369
        %p371 = pneg %p63
        %p372 = pneg %p60
        %p373 = pneg %p84
        %p374 = pneg %p81
        %p375 = pneg %p105
        %p376 = pneg %p102
        %p377 = pneg %p126
        %p378 = pneg %p123
        %p379 = pneg %p147
        %p380 = pneg %p144
        %p381 = pneg %p168
        %p382 = pneg %p165
        %p383 = pneg %p189
        %p384 = pneg %p186
        %p385 = pneg %p217
        %p386 = pneg %p214
        %s387 = sand.u32 %s204, 1
        %s388 = scalar_lea.sflag [#allocation5], %s387
        %s389 = sand.u32 %s204, 1
        %s390 = smul.addr %s389, 128
        %s391 = scalar_lea.vmem [#allocation16], %s390
        %s392 = smul.u32 2, %s33
        %s393 = smul.u32 2, %s33
        %v394 = vlaneseq
        %v395 = vand.u32 %v394, 127
        %v396 = vadd.s32 %v395, 4294967295
        %vm397 = vcmp.ge.s32.totalorder %v396, 0
        %vm398 = vcmp.lt.s32.totalorder %v396, 128
        %vm399 = vmand %vm397, %vm398
        %v400 = vadd.s32 %v395, 1
        %vm401 = vcmp.ge.s32.totalorder %v400, 0
        %vm402 = vcmp.lt.s32.totalorder %v400, 128
        %vm403 = vmand %vm401, %vm402
        %v404 = vld [vmem:[%s336] sm:$0xff]
        %v405 = vld [vmem:[%s336 + $0x8] sm:$0xff]
        %s406 = sld [smem:[#allocation11]]
        %v407 = vstv %s406
        %v408 = vmul.f32 %v404, %v407
        %v409 = vmul.f32 %v405, %v407
        %s410 = sld [smem:[#allocation13]]
        %v411 = vstv %s410
        %v412 = vadd.f32 %v408, %v411
        %v413 = vadd.f32 %v409, %v411
        %v414 = vmax.f32 %v412, 0.0
        %v415 = vmax.f32 %v413, 0.0
        %416 = vst [vmem:[#allocation2] sm:$0xff] %v414
        %417 = vst [vmem:[#allocation2 + $0x8] sm:$0xff] %v415
        %s418 = scalar_lea.vmem %s336, 16 [#allocation3]
        %v419 = vld [vmem:[%s418] sm:$0xff]
        %v420 = vld [vmem:[%s418 + $0x8] sm:$0xff]
        %s421 = sld [smem:[#allocation11 + $0x1]]
        %v422 = vstv %s421
        %v423 = vmul.f32 %v419, %v422
        %v424 = vmul.f32 %v420, %v422
        %s425 = sld [smem:[#allocation13 + $0x1]]
        %v426 = vstv %s425
        %v427 = vadd.f32 %v423, %v426
        %v428 = vadd.f32 %v424, %v426
        %v429 = vmax.f32 %v427, 0.0
        %v430 = vmax.f32 %v428, 0.0
        %s431 = scalar_lea.vmem [#allocation2], 16
        %432 = vst [vmem:[%s431] sm:$0xff] %v429
        %433 = vst [vmem:[%s431 + $0x8] sm:$0xff] %v430
        %s434 = scalar_lea.vmem %s336, 32 [#allocation3]
        %v435 = vld [vmem:[%s434] sm:$0xff]
        %v436 = vld [vmem:[%s434 + $0x8] sm:$0xff]
        %s437 = sld [smem:[#allocation11 + $0x2]]
        %v438 = vstv %s437
        %v439 = vmul.f32 %v435, %v438
        %v440 = vmul.f32 %v436, %v438
        %s441 = sld [smem:[#allocation13 + $0x2]]
        %v442 = vstv %s441
        %v443 = vadd.f32 %v439, %v442
        %v444 = vadd.f32 %v440, %v442
        %v445 = vmax.f32 %v443, 0.0
        %v446 = vmax.f32 %v444, 0.0
        %s447 = scalar_lea.vmem [#allocation2], 32
        %448 = vst [vmem:[%s447] sm:$0xff] %v445
        %449 = vst [vmem:[%s447 + $0x8] sm:$0xff] %v446
        %s450 = scalar_lea.vmem %s336, 48 [#allocation3]
        %v451 = vld [vmem:[%s450] sm:$0xff]
        %v452 = vld [vmem:[%s450 + $0x8] sm:$0xff]
        %s453 = sld [smem:[#allocation11 + $0x3]]
        %v454 = vstv %s453
        %v455 = vmul.f32 %v451, %v454
        %v456 = vmul.f32 %v452, %v454
        %s457 = sld [smem:[#allocation13 + $0x3]]
        %v458 = vstv %s457
        %v459 = vadd.f32 %v455, %v458
        %v460 = vadd.f32 %v456, %v458
        %v461 = vmax.f32 %v459, 0.0
        %v462 = vmax.f32 %v460, 0.0
        %s463 = scalar_lea.vmem [#allocation2], 48
        %464 = vst [vmem:[%s463] sm:$0xff] %v461
        %465 = vst [vmem:[%s463 + $0x8] sm:$0xff] %v462
        %v466 = vld [vmem:[%s336] sm:$0xff]
        %v467 = vld [vmem:[%s336 + $0x8] sm:$0xff]
        %v468 = vld [vmem:[%s418] sm:$0xff]
        %v469 = vld [vmem:[%s418 + $0x8] sm:$0xff]
        %v470 = vld [vmem:[%s434] sm:$0xff]
        %v471 = vld [vmem:[%s434 + $0x8] sm:$0xff]
        %v472 = vld [vmem:[%s450] sm:$0xff]
        %v473 = vld [vmem:[%s450 + $0x8] sm:$0xff]
        %s474 = sld [smem:[#allocation10]]
        %v475 = vstv %s474
        %v476 = vmul.f32 %v475, %v466
        %v477 = vmul.f32 %v475, %v467
        %s478 = sld [smem:[#allocation10 + $0x8]]
        %v479 = vstv %s478
        %v480 = vmul.f32 %v479, %v468
        %v481 = vmul.f32 %v479, %v469
        %v482 = vadd.f32 %v476, %v480
        %v483 = vadd.f32 %v477, %v481
        %s484 = sld [smem:[#allocation10 + $0x10]]
        %v485 = vstv %s484
        %v486 = vmul.f32 %v485, %v470
        %v487 = vmul.f32 %v485, %v471
        %v488 = vadd.f32 %v482, %v486
        %v489 = vadd.f32 %v483, %v487
        %s490 = sld [smem:[#allocation10 + $0x18]]
        %v491 = vstv %s490
        %v492 = vmul.f32 %v491, %v472
        %v493 = vmul.f32 %v491, %v473
        %v494 = vadd.f32 %v488, %v492
        %v495 = vadd.f32 %v489, %v493
        %s496 = sld [smem:[#allocation10 + $0x1]]
        %v497 = vstv %s496
        %v498 = vmul.f32 %v497, %v466
        %v499 = vmul.f32 %v497, %v467
        %s500 = sld [smem:[#allocation10 + $0x9]]
        %v501 = vstv %s500
        %v502 = vmul.f32 %v501, %v468
        %v503 = vmul.f32 %v501, %v469
        %v504 = vadd.f32 %v498, %v502
        %v505 = vadd.f32 %v499, %v503
        %s506 = sld [smem:[#allocation10 + $0x11]]
        %v507 = vstv %s506
        %v508 = vmul.f32 %v507, %v470
        %v509 = vmul.f32 %v507, %v471
        %v510 = vadd.f32 %v504, %v508
        %v511 = vadd.f32 %v505, %v509
        %s512 = sld [smem:[#allocation10 + $0x19]]
        %v513 = vstv %s512
        %v514 = vmul.f32 %v513, %v472
        %v515 = vmul.f32 %v513, %v473
        %v516 = vadd.f32 %v510, %v514
        %v517 = vadd.f32 %v511, %v515
        %s518 = sld [smem:[#allocation10 + $0x2]]
        %v519 = vstv %s518
        %v520 = vmul.f32 %v519, %v466
        %v521 = vmul.f32 %v519, %v467
        %s522 = sld [smem:[#allocation10 + $0xa]]
        %v523 = vstv %s522
        %v524 = vmul.f32 %v523, %v468
        %v525 = vmul.f32 %v523, %v469
        %v526 = vadd.f32 %v520, %v524
        %v527 = vadd.f32 %v521, %v525
        %s528 = sld [smem:[#allocation10 + $0x12]]
        %v529 = vstv %s528
        %v530 = vmul.f32 %v529, %v470
        %v531 = vmul.f32 %v529, %v471
        %v532 = vadd.f32 %v526, %v530
        %v533 = vadd.f32 %v527, %v531
        %s534 = sld [smem:[#allocation10 + $0x1a]]
        %v535 = vstv %s534
        %v536 = vmul.f32 %v535, %v472
        %v537 = vmul.f32 %v535, %v473
        %v538 = vadd.f32 %v532, %v536
        %v539 = vadd.f32 %v533, %v537
        %s540 = sld [smem:[#allocation10 + $0x3]]
        %v541 = vstv %s540
        %v542 = vmul.f32 %v541, %v466
        %v543 = vmul.f32 %v541, %v467
        %s544 = sld [smem:[#allocation10 + $0xb]]
        %v545 = vstv %s544
        %v546 = vmul.f32 %v545, %v468
        %v547 = vmul.f32 %v545, %v469
        %v548 = vadd.f32 %v542, %v546
        %v549 = vadd.f32 %v543, %v547
        %s550 = sld [smem:[#allocation10 + $0x13]]
        %v551 = vstv %s550
        %v552 = vmul.f32 %v551, %v470
        %v553 = vmul.f32 %v551, %v471
        %v554 = vadd.f32 %v548, %v552
        %v555 = vadd.f32 %v549, %v553
        %s556 = sld [smem:[#allocation10 + $0x1b]]
        %v557 = vstv %s556
        %v558 = vmul.f32 %v557, %v472
        %v559 = vmul.f32 %v557, %v473
        %v560 = vadd.f32 %v554, %v558
        %v561 = vadd.f32 %v555, %v559
        %s562 = sld [smem:[#allocation10 + $0x4]]
        %v563 = vstv %s562
        %v564 = vmul.f32 %v563, %v466
        %v565 = vmul.f32 %v563, %v467
        %s566 = sld [smem:[#allocation10 + $0xc]]
        %v567 = vstv %s566
        %v568 = vmul.f32 %v567, %v468
        %v569 = vmul.f32 %v567, %v469
        %v570 = vadd.f32 %v564, %v568
        %v571 = vadd.f32 %v565, %v569
        %s572 = sld [smem:[#allocation10 + $0x14]]
        %v573 = vstv %s572
        %v574 = vmul.f32 %v573, %v470
        %v575 = vmul.f32 %v573, %v471
        %v576 = vadd.f32 %v570, %v574
        %v577 = vadd.f32 %v571, %v575
        %s578 = sld [smem:[#allocation10 + $0x1c]]
        %v579 = vstv %s578
        %v580 = vmul.f32 %v579, %v472
        %v581 = vmul.f32 %v579, %v473
        %v582 = vadd.f32 %v576, %v580
        %v583 = vadd.f32 %v577, %v581
        %s584 = sld [smem:[#allocation10 + $0x5]]
        %v585 = vstv %s584
        %v586 = vmul.f32 %v585, %v466
        %v587 = vmul.f32 %v585, %v467
        %s588 = sld [smem:[#allocation10 + $0xd]]
        %v589 = vstv %s588
        %v590 = vmul.f32 %v589, %v468
        %v591 = vmul.f32 %v589, %v469
        %v592 = vadd.f32 %v586, %v590
        %v593 = vadd.f32 %v587, %v591
        %s594 = sld [smem:[#allocation10 + $0x15]]
        %v595 = vstv %s594
        %v596 = vmul.f32 %v595, %v470
        %v597 = vmul.f32 %v595, %v471
        %v598 = vadd.f32 %v592, %v596
        %v599 = vadd.f32 %v593, %v597
        %s600 = sld [smem:[#allocation10 + $0x1d]]
        %v601 = vstv %s600
        %v602 = vmul.f32 %v601, %v472
        %v603 = vmul.f32 %v601, %v473
        %v604 = vadd.f32 %v598, %v602
        %v605 = vadd.f32 %v599, %v603
        %s606 = sld [smem:[#allocation10 + $0x6]]
        %v607 = vstv %s606
        %v608 = vmul.f32 %v607, %v466
        %v609 = vmul.f32 %v607, %v467
        %s610 = sld [smem:[#allocation10 + $0xe]]
        %v611 = vstv %s610
        %v612 = vmul.f32 %v611, %v468
        %v613 = vmul.f32 %v611, %v469
        %v614 = vadd.f32 %v608, %v612
        %v615 = vadd.f32 %v609, %v613
        %s616 = sld [smem:[#allocation10 + $0x16]]
        %v617 = vstv %s616
        %v618 = vmul.f32 %v617, %v470
        %v619 = vmul.f32 %v617, %v471
        %v620 = vadd.f32 %v614, %v618
        %v621 = vadd.f32 %v615, %v619
        %s622 = sld [smem:[#allocation10 + $0x1e]]
        %v623 = vstv %s622
        %v624 = vmul.f32 %v623, %v472
        %v625 = vmul.f32 %v623, %v473
        %v626 = vadd.f32 %v620, %v624
        %v627 = vadd.f32 %v621, %v625
        %s628 = sld [smem:[#allocation10 + $0x7]]
        %v629 = vstv %s628
        %v630 = vmul.f32 %v629, %v466
        %v631 = vmul.f32 %v629, %v467
        %s632 = sld [smem:[#allocation10 + $0xf]]
        %v633 = vstv %s632
        %v634 = vmul.f32 %v633, %v468
        %v635 = vmul.f32 %v633, %v469
        %v636 = vadd.f32 %v630, %v634
        %v637 = vadd.f32 %v631, %v635
        %s638 = sld [smem:[#allocation10 + $0x17]]
        %v639 = vstv %s638
        %v640 = vmul.f32 %v639, %v470
        %v641 = vmul.f32 %v639, %v471
        %v642 = vadd.f32 %v636, %v640
        %v643 = vadd.f32 %v637, %v641
        %s644 = sld [smem:[#allocation10 + $0x1f]]
        %v645 = vstv %s644
        %v646 = vmul.f32 %v645, %v472
        %v647 = vmul.f32 %v645, %v473
        %v648 = vadd.f32 %v642, %v646
        %v649 = vadd.f32 %v643, %v647
        %v650 = vld [vmem:[#allocation2] sm:$0xff]
        %v651 = vld [vmem:[#allocation2 + $0x8] sm:$0xff]
        %s652 = sld [smem:[#allocation7]]
        %653 = vrot.lane.b32.xlu0 %v650, 1
        %v654 = vpop.permute.xlu0 %653
        %655 = vrot.lane.b32.xlu0 %v651, 1
        %v656 = vpop.permute.xlu0 %655
        %v657 = vsel %vm399, %v654, 0.0
        %v658 = vsel %vm399, %v656, 0.0
        %v659 = vstv %s652
        %v660 = vmul.f32 %v659, %v657
        %v661 = vmul.f32 %v659, %v658
        %s662 = sld [smem:[#allocation7 + $0x20]]
        %v663 = vstv %s662
        %v664 = vmul.f32 %v663, %v650
        %v665 = vmul.f32 %v663, %v651
        %v666 = vadd.f32 %v660, %v664
        %v667 = vadd.f32 %v661, %v665
        %s668 = sld [smem:[#allocation7 + $0x40]]
        %669 = vrot.lane.b32.xlu0 %v650, 127
        %v670 = vpop.permute.xlu0 %669
        %671 = vrot.lane.b32.xlu0 %v651, 127
        %v672 = vpop.permute.xlu0 %671
        %v673 = vsel %vm403, %v670, 0.0
        %v674 = vsel %vm403, %v672, 0.0
        %v675 = vstv %s668
        %v676 = vmul.f32 %v675, %v673
        %v677 = vmul.f32 %v675, %v674
        %v678 = vadd.f32 %v666, %v676
        %v679 = vadd.f32 %v667, %v677
        %v680 = vld [vmem:[%s431] sm:$0xff]
        %v681 = vld [vmem:[%s431 + $0x8] sm:$0xff]
        %s682 = sld [smem:[#allocation7 + $0x8]]
        %683 = vrot.lane.b32.xlu0 %v680, 1
        %v684 = vpop.permute.xlu0 %683
        %685 = vrot.lane.b32.xlu0 %v681, 1
        %v686 = vpop.permute.xlu0 %685
        %v687 = vsel %vm399, %v684, 0.0
        %v688 = vsel %vm399, %v686, 0.0
        %v689 = vstv %s682
        %v690 = vmul.f32 %v689, %v687
        %v691 = vmul.f32 %v689, %v688
        %v692 = vadd.f32 %v678, %v690
        %v693 = vadd.f32 %v679, %v691
        %s694 = sld [smem:[#allocation7 + $0x28]]
        %v695 = vstv %s694
        %v696 = vmul.f32 %v695, %v680
        %v697 = vmul.f32 %v695, %v681
        %v698 = vadd.f32 %v692, %v696
        %v699 = vadd.f32 %v693, %v697
        %s700 = sld [smem:[#allocation7 + $0x48]]
        %701 = vrot.lane.b32.xlu0 %v680, 127
        %v702 = vpop.permute.xlu0 %701
        %703 = vrot.lane.b32.xlu0 %v681, 127
        %v704 = vpop.permute.xlu0 %703
        %v705 = vsel %vm403, %v702, 0.0
        %v706 = vsel %vm403, %v704, 0.0
        %v707 = vstv %s700
        %v708 = vmul.f32 %v707, %v705
        %v709 = vmul.f32 %v707, %v706
        %v710 = vadd.f32 %v698, %v708
        %v711 = vadd.f32 %v699, %v709
        %v712 = vld [vmem:[%s447] sm:$0xff]
        %v713 = vld [vmem:[%s447 + $0x8] sm:$0xff]
        %s714 = sld [smem:[#allocation7 + $0x10]]
        %715 = vrot.lane.b32.xlu0 %v712, 1
        %v716 = vpop.permute.xlu0 %715
        %717 = vrot.lane.b32.xlu0 %v713, 1
        %v718 = vpop.permute.xlu0 %717
        %v719 = vsel %vm399, %v716, 0.0
        %v720 = vsel %vm399, %v718, 0.0
        %v721 = vstv %s714
        %v722 = vmul.f32 %v721, %v719
        %v723 = vmul.f32 %v721, %v720
        %v724 = vadd.f32 %v710, %v722
        %v725 = vadd.f32 %v711, %v723
        %s726 = sld [smem:[#allocation7 + $0x30]]
        %v727 = vstv %s726
        %v728 = vmul.f32 %v727, %v712
        %v729 = vmul.f32 %v727, %v713
        %v730 = vadd.f32 %v724, %v728
        %v731 = vadd.f32 %v725, %v729
        %s732 = sld [smem:[#allocation7 + $0x50]]
        %733 = vrot.lane.b32.xlu0 %v712, 127
        %v734 = vpop.permute.xlu0 %733
        %735 = vrot.lane.b32.xlu0 %v713, 127
        %v736 = vpop.permute.xlu0 %735
        %v737 = vsel %vm403, %v734, 0.0
        %v738 = vsel %vm403, %v736, 0.0
        %v739 = vstv %s732
        %v740 = vmul.f32 %v739, %v737
        %v741 = vmul.f32 %v739, %v738
        %v742 = vadd.f32 %v730, %v740
        %v743 = vadd.f32 %v731, %v741
        %v744 = vld [vmem:[%s463] sm:$0xff]
        %v745 = vld [vmem:[%s463 + $0x8] sm:$0xff]
        %s746 = sld [smem:[#allocation7 + $0x18]]
        %747 = vrot.lane.b32.xlu0 %v744, 1
        %v748 = vpop.permute.xlu0 %747
        %749 = vrot.lane.b32.xlu0 %v745, 1
        %v750 = vpop.permute.xlu0 %749
        %v751 = vsel %vm399, %v748, 0.0
        %v752 = vsel %vm399, %v750, 0.0
        %v753 = vstv %s746
        %v754 = vmul.f32 %v753, %v751
        %v755 = vmul.f32 %v753, %v752
        %v756 = vadd.f32 %v742, %v754
        %v757 = vadd.f32 %v743, %v755
        %s758 = sld [smem:[#allocation7 + $0x38]]
        %v759 = vstv %s758
        %v760 = vmul.f32 %v759, %v744
        %v761 = vmul.f32 %v759, %v745
        %v762 = vadd.f32 %v756, %v760
        %v763 = vadd.f32 %v757, %v761
        %s764 = sld [smem:[#allocation7 + $0x58]]
        %765 = vrot.lane.b32.xlu0 %v744, 127
        %v766 = vpop.permute.xlu0 %765
        %767 = vrot.lane.b32.xlu0 %v745, 127
        %v768 = vpop.permute.xlu0 %767
        %v769 = vsel %vm403, %v766, 0.0
        %v770 = vsel %vm403, %v768, 0.0
        %v771 = vstv %s764
        %v772 = vmul.f32 %v771, %v769
        %v773 = vmul.f32 %v771, %v770
        %v774 = vadd.f32 %v762, %v772
        %v775 = vadd.f32 %v763, %v773
        %s776 = sld [smem:[#allocation14]]
        %v777 = vstv %s776
        %v778 = vadd.f32 %v774, %v777
        %v779 = vadd.f32 %v775, %v777
        %v780 = vmax.f32 %v778, 0.0
        %v781 = vmax.f32 %v779, 0.0
        %782 = vrot.lane.b32.xlu0 %v780, 1
        %v783 = vpop.permute.xlu0 %782
        %784 = vrot.lane.b32.xlu0 %v781, 1
        %v785 = vpop.permute.xlu0 %784
        %v786 = vsel %vm399, %v783, 0.0
        %v787 = vsel %vm399, %v785, 0.0
        %788 = vrot.lane.b32.xlu0 %v780, 127
        %v789 = vpop.permute.xlu0 %788
        %790 = vrot.lane.b32.xlu0 %v781, 127
        %v791 = vpop.permute.xlu0 %790
        %v792 = vsel %vm403, %v789, 0.0
        %v793 = vsel %vm403, %v791, 0.0
        %s794 = sld [smem:[#allocation8]]
        %v795 = vstv %s794
        %v796 = vmul.f32 %v795, %v786
        %v797 = vmul.f32 %v795, %v787
        %v798 = vadd.f32 %v494, %v796
        %v799 = vadd.f32 %v495, %v797
        %s800 = sld [smem:[#allocation8 + $0x40]]
        %v801 = vstv %s800
        %v802 = vmul.f32 %v801, %v780
        %v803 = vmul.f32 %v801, %v781
        %v804 = vadd.f32 %v798, %v802
        %v805 = vadd.f32 %v799, %v803
        %s806 = sld [smem:[#allocation8 + $0x80]]
        %v807 = vstv %s806
        %v808 = vmul.f32 %v807, %v792
        %v809 = vmul.f32 %v807, %v793
        %v810 = vadd.f32 %v804, %v808
        %v811 = vadd.f32 %v805, %v809
        %s812 = sld [smem:[#allocation8 + $0x1]]
        %v813 = vstv %s812
        %v814 = vmul.f32 %v813, %v786
        %v815 = vmul.f32 %v813, %v787
        %v816 = vadd.f32 %v516, %v814
        %v817 = vadd.f32 %v517, %v815
        %s818 = sld [smem:[#allocation8 + $0x41]]
        %v819 = vstv %s818
        %v820 = vmul.f32 %v819, %v780
        %v821 = vmul.f32 %v819, %v781
        %v822 = vadd.f32 %v816, %v820
        %v823 = vadd.f32 %v817, %v821
        %s824 = sld [smem:[#allocation8 + $0x81]]
        %v825 = vstv %s824
        %v826 = vmul.f32 %v825, %v792
        %v827 = vmul.f32 %v825, %v793
        %v828 = vadd.f32 %v822, %v826
        %v829 = vadd.f32 %v823, %v827
        %s830 = sld [smem:[#allocation8 + $0x2]]
        %v831 = vstv %s830
        %v832 = vmul.f32 %v831, %v786
        %v833 = vmul.f32 %v831, %v787
        %v834 = vadd.f32 %v538, %v832
        %v835 = vadd.f32 %v539, %v833
        %s836 = sld [smem:[#allocation8 + $0x42]]
        %v837 = vstv %s836
        %v838 = vmul.f32 %v837, %v780
        %v839 = vmul.f32 %v837, %v781
        %v840 = vadd.f32 %v834, %v838
        %v841 = vadd.f32 %v835, %v839
        %s842 = sld [smem:[#allocation8 + $0x82]]
        %v843 = vstv %s842
        %v844 = vmul.f32 %v843, %v792
        %v845 = vmul.f32 %v843, %v793
        %v846 = vadd.f32 %v840, %v844
        %v847 = vadd.f32 %v841, %v845
        %s848 = sld [smem:[#allocation8 + $0x3]]
        %v849 = vstv %s848
        %v850 = vmul.f32 %v849, %v786
        %v851 = vmul.f32 %v849, %v787
        %v852 = vadd.f32 %v560, %v850
        %v853 = vadd.f32 %v561, %v851
        %s854 = sld [smem:[#allocation8 + $0x43]]
        %v855 = vstv %s854
        %v856 = vmul.f32 %v855, %v780
        %v857 = vmul.f32 %v855, %v781
        %v858 = vadd.f32 %v852, %v856
        %v859 = vadd.f32 %v853, %v857
        %s860 = sld [smem:[#allocation8 + $0x83]]
        %v861 = vstv %s860
        %v862 = vmul.f32 %v861, %v792
        %v863 = vmul.f32 %v861, %v793
        %v864 = vadd.f32 %v858, %v862
        %v865 = vadd.f32 %v859, %v863
        %s866 = sld [smem:[#allocation8 + $0x4]]
        %v867 = vstv %s866
        %v868 = vmul.f32 %v867, %v786
        %v869 = vmul.f32 %v867, %v787
        %v870 = vadd.f32 %v582, %v868
        %v871 = vadd.f32 %v583, %v869
        %s872 = sld [smem:[#allocation8 + $0x44]]
        %v873 = vstv %s872
        %v874 = vmul.f32 %v873, %v780
        %v875 = vmul.f32 %v873, %v781
        %v876 = vadd.f32 %v870, %v874
        %v877 = vadd.f32 %v871, %v875
        %s878 = sld [smem:[#allocation8 + $0x84]]
        %v879 = vstv %s878
        %v880 = vmul.f32 %v879, %v792
        %v881 = vmul.f32 %v879, %v793
        %v882 = vadd.f32 %v876, %v880
        %v883 = vadd.f32 %v877, %v881
        %s884 = sld [smem:[#allocation8 + $0x5]]
        %v885 = vstv %s884
        %v886 = vmul.f32 %v885, %v786
        %v887 = vmul.f32 %v885, %v787
        %v888 = vadd.f32 %v604, %v886
        %v889 = vadd.f32 %v605, %v887
        %s890 = sld [smem:[#allocation8 + $0x45]]
        %v891 = vstv %s890
        %v892 = vmul.f32 %v891, %v780
        %v893 = vmul.f32 %v891, %v781
        %v894 = vadd.f32 %v888, %v892
        %v895 = vadd.f32 %v889, %v893
        %s896 = sld [smem:[#allocation8 + $0x85]]
        %v897 = vstv %s896
        %v898 = vmul.f32 %v897, %v792
        %v899 = vmul.f32 %v897, %v793
        %v900 = vadd.f32 %v894, %v898
        %v901 = vadd.f32 %v895, %v899
        %s902 = sld [smem:[#allocation8 + $0x6]]
        %v903 = vstv %s902
        %v904 = vmul.f32 %v903, %v786
        %v905 = vmul.f32 %v903, %v787
        %v906 = vadd.f32 %v626, %v904
        %v907 = vadd.f32 %v627, %v905
        %s908 = sld [smem:[#allocation8 + $0x46]]
        %v909 = vstv %s908
        %v910 = vmul.f32 %v909, %v780
        %v911 = vmul.f32 %v909, %v781
        %v912 = vadd.f32 %v906, %v910
        %v913 = vadd.f32 %v907, %v911
        %s914 = sld [smem:[#allocation8 + $0x86]]
        %v915 = vstv %s914
        %v916 = vmul.f32 %v915, %v792
        %v917 = vmul.f32 %v915, %v793
        %v918 = vadd.f32 %v912, %v916
        %v919 = vadd.f32 %v913, %v917
        %s920 = sld [smem:[#allocation8 + $0x7]]
        %v921 = vstv %s920
        %v922 = vmul.f32 %v921, %v786
        %v923 = vmul.f32 %v921, %v787
        %v924 = vadd.f32 %v648, %v922
        %v925 = vadd.f32 %v649, %v923
        %s926 = sld [smem:[#allocation8 + $0x47]]
        %v927 = vstv %s926
        %v928 = vmul.f32 %v927, %v780
        %v929 = vmul.f32 %v927, %v781
        %v930 = vadd.f32 %v924, %v928
        %v931 = vadd.f32 %v925, %v929
        %s932 = sld [smem:[#allocation8 + $0x87]]
        %v933 = vstv %s932
        %v934 = vmul.f32 %v933, %v792
        %v935 = vmul.f32 %v933, %v793
        %v936 = vadd.f32 %v930, %v934
        %v937 = vadd.f32 %v931, %v935
        %s938 = sld [smem:[#allocation7 + $0x1]]
        %v939 = vstv %s938
        %v940 = vmul.f32 %v939, %v657
        %v941 = vmul.f32 %v939, %v658
        %s942 = sld [smem:[#allocation7 + $0x21]]
        %v943 = vstv %s942
        %v944 = vmul.f32 %v943, %v650
        %v945 = vmul.f32 %v943, %v651
        %v946 = vadd.f32 %v940, %v944
        %v947 = vadd.f32 %v941, %v945
        %s948 = sld [smem:[#allocation7 + $0x41]]
        %v949 = vstv %s948
        %v950 = vmul.f32 %v949, %v673
        %v951 = vmul.f32 %v949, %v674
        %v952 = vadd.f32 %v946, %v950
        %v953 = vadd.f32 %v947, %v951
        %s954 = sld [smem:[#allocation7 + $0x9]]
        %v955 = vstv %s954
        %v956 = vmul.f32 %v955, %v687
        %v957 = vmul.f32 %v955, %v688
        %v958 = vadd.f32 %v952, %v956
        %v959 = vadd.f32 %v953, %v957
        %s960 = sld [smem:[#allocation7 + $0x29]]
        %v961 = vstv %s960
        %v962 = vmul.f32 %v961, %v680
        %v963 = vmul.f32 %v961, %v681
        %v964 = vadd.f32 %v958, %v962
        %v965 = vadd.f32 %v959, %v963
        %s966 = sld [smem:[#allocation7 + $0x49]]
        %v967 = vstv %s966
        %v968 = vmul.f32 %v967, %v705
        %v969 = vmul.f32 %v967, %v706
        %v970 = vadd.f32 %v964, %v968
        %v971 = vadd.f32 %v965, %v969
        %s972 = sld [smem:[#allocation7 + $0x11]]
        %v973 = vstv %s972
        %v974 = vmul.f32 %v973, %v719
        %v975 = vmul.f32 %v973, %v720
        %v976 = vadd.f32 %v970, %v974
        %v977 = vadd.f32 %v971, %v975
        %s978 = sld [smem:[#allocation7 + $0x31]]
        %v979 = vstv %s978
        %v980 = vmul.f32 %v979, %v712
        %v981 = vmul.f32 %v979, %v713
        %v982 = vadd.f32 %v976, %v980
        %v983 = vadd.f32 %v977, %v981
        %s984 = sld [smem:[#allocation7 + $0x51]]
        %v985 = vstv %s984
        %v986 = vmul.f32 %v985, %v737
        %v987 = vmul.f32 %v985, %v738
        %v988 = vadd.f32 %v982, %v986
        %v989 = vadd.f32 %v983, %v987
        %s990 = sld [smem:[#allocation7 + $0x19]]
        %v991 = vstv %s990
        %v992 = vmul.f32 %v991, %v751
        %v993 = vmul.f32 %v991, %v752
        %v994 = vadd.f32 %v988, %v992
        %v995 = vadd.f32 %v989, %v993
        %s996 = sld [smem:[#allocation7 + $0x39]]
        %v997 = vstv %s996
        %v998 = vmul.f32 %v997, %v744
        %v999 = vmul.f32 %v997, %v745
        %v1000 = vadd.f32 %v994, %v998
        %v1001 = vadd.f32 %v995, %v999
        %s1002 = sld [smem:[#allocation7 + $0x59]]
        %v1003 = vstv %s1002
        %v1004 = vmul.f32 %v1003, %v769
        %v1005 = vmul.f32 %v1003, %v770
        %v1006 = vadd.f32 %v1000, %v1004
        %v1007 = vadd.f32 %v1001, %v1005
        %s1008 = sld [smem:[#allocation14 + $0x1]]
        %v1009 = vstv %s1008
        %v1010 = vadd.f32 %v1006, %v1009
        %v1011 = vadd.f32 %v1007, %v1009
        %v1012 = vmax.f32 %v1010, 0.0
        %v1013 = vmax.f32 %v1011, 0.0
        %1014 = vrot.lane.b32.xlu0 %v1012, 1
        %v1015 = vpop.permute.xlu0 %1014
        %1016 = vrot.lane.b32.xlu0 %v1013, 1
        %v1017 = vpop.permute.xlu0 %1016
        %v1018 = vsel %vm399, %v1015, 0.0
        %v1019 = vsel %vm399, %v1017, 0.0
        %1020 = vrot.lane.b32.xlu0 %v1012, 127
        %v1021 = vpop.permute.xlu0 %1020
        %1022 = vrot.lane.b32.xlu0 %v1013, 127
        %v1023 = vpop.permute.xlu0 %1022
        %v1024 = vsel %vm403, %v1021, 0.0
        %v1025 = vsel %vm403, %v1023, 0.0
        %s1026 = sld [smem:[#allocation8 + $0x8]]
        %v1027 = vstv %s1026
        %v1028 = vmul.f32 %v1027, %v1018
        %v1029 = vmul.f32 %v1027, %v1019
        %v1030 = vadd.f32 %v810, %v1028
        %v1031 = vadd.f32 %v811, %v1029
        %s1032 = sld [smem:[#allocation8 + $0x48]]
        %v1033 = vstv %s1032
        %v1034 = vmul.f32 %v1033, %v1012
        %v1035 = vmul.f32 %v1033, %v1013
        %v1036 = vadd.f32 %v1030, %v1034
        %v1037 = vadd.f32 %v1031, %v1035
        %s1038 = sld [smem:[#allocation8 + $0x88]]
        %v1039 = vstv %s1038
        %v1040 = vmul.f32 %v1039, %v1024
        %v1041 = vmul.f32 %v1039, %v1025
        %v1042 = vadd.f32 %v1036, %v1040
        %v1043 = vadd.f32 %v1037, %v1041
        %s1044 = sld [smem:[#allocation8 + $0x9]]
        %v1045 = vstv %s1044
        %v1046 = vmul.f32 %v1045, %v1018
        %v1047 = vmul.f32 %v1045, %v1019
        %v1048 = vadd.f32 %v828, %v1046
        %v1049 = vadd.f32 %v829, %v1047
        %s1050 = sld [smem:[#allocation8 + $0x49]]
        %v1051 = vstv %s1050
        %v1052 = vmul.f32 %v1051, %v1012
        %v1053 = vmul.f32 %v1051, %v1013
        %v1054 = vadd.f32 %v1048, %v1052
        %v1055 = vadd.f32 %v1049, %v1053
        %s1056 = sld [smem:[#allocation8 + $0x89]]
        %v1057 = vstv %s1056
        %v1058 = vmul.f32 %v1057, %v1024
        %v1059 = vmul.f32 %v1057, %v1025
        %v1060 = vadd.f32 %v1054, %v1058
        %v1061 = vadd.f32 %v1055, %v1059
        %s1062 = sld [smem:[#allocation8 + $0xa]]
        %v1063 = vstv %s1062
        %v1064 = vmul.f32 %v1063, %v1018
        %v1065 = vmul.f32 %v1063, %v1019
        %v1066 = vadd.f32 %v846, %v1064
        %v1067 = vadd.f32 %v847, %v1065
        %s1068 = sld [smem:[#allocation8 + $0x4a]]
        %v1069 = vstv %s1068
        %v1070 = vmul.f32 %v1069, %v1012
        %v1071 = vmul.f32 %v1069, %v1013
        %v1072 = vadd.f32 %v1066, %v1070
        %v1073 = vadd.f32 %v1067, %v1071
        %s1074 = sld [smem:[#allocation8 + $0x8a]]
        %v1075 = vstv %s1074
        %v1076 = vmul.f32 %v1075, %v1024
        %v1077 = vmul.f32 %v1075, %v1025
        %v1078 = vadd.f32 %v1072, %v1076
        %v1079 = vadd.f32 %v1073, %v1077
        %s1080 = sld [smem:[#allocation8 + $0xb]]
        %v1081 = vstv %s1080
        %v1082 = vmul.f32 %v1081, %v1018
        %v1083 = vmul.f32 %v1081, %v1019
        %v1084 = vadd.f32 %v864, %v1082
        %v1085 = vadd.f32 %v865, %v1083
        %s1086 = sld [smem:[#allocation8 + $0x4b]]
        %v1087 = vstv %s1086
        %v1088 = vmul.f32 %v1087, %v1012
        %v1089 = vmul.f32 %v1087, %v1013
        %v1090 = vadd.f32 %v1084, %v1088
        %v1091 = vadd.f32 %v1085, %v1089
        %s1092 = sld [smem:[#allocation8 + $0x8b]]
        %v1093 = vstv %s1092
        %v1094 = vmul.f32 %v1093, %v1024
        %v1095 = vmul.f32 %v1093, %v1025
        %v1096 = vadd.f32 %v1090, %v1094
        %v1097 = vadd.f32 %v1091, %v1095
        %s1098 = sld [smem:[#allocation8 + $0xc]]
        %v1099 = vstv %s1098
        %v1100 = vmul.f32 %v1099, %v1018
        %v1101 = vmul.f32 %v1099, %v1019
        %v1102 = vadd.f32 %v882, %v1100
        %v1103 = vadd.f32 %v883, %v1101
        %s1104 = sld [smem:[#allocation8 + $0x4c]]
        %v1105 = vstv %s1104
        %v1106 = vmul.f32 %v1105, %v1012
        %v1107 = vmul.f32 %v1105, %v1013
        %v1108 = vadd.f32 %v1102, %v1106
        %v1109 = vadd.f32 %v1103, %v1107
        %s1110 = sld [smem:[#allocation8 + $0x8c]]
        %v1111 = vstv %s1110
        %v1112 = vmul.f32 %v1111, %v1024
        %v1113 = vmul.f32 %v1111, %v1025
        %v1114 = vadd.f32 %v1108, %v1112
        %v1115 = vadd.f32 %v1109, %v1113
        %s1116 = sld [smem:[#allocation8 + $0xd]]
        %v1117 = vstv %s1116
        %v1118 = vmul.f32 %v1117, %v1018
        %v1119 = vmul.f32 %v1117, %v1019
        %v1120 = vadd.f32 %v900, %v1118
        %v1121 = vadd.f32 %v901, %v1119
        %s1122 = sld [smem:[#allocation8 + $0x4d]]
        %v1123 = vstv %s1122
        %v1124 = vmul.f32 %v1123, %v1012
        %v1125 = vmul.f32 %v1123, %v1013
        %v1126 = vadd.f32 %v1120, %v1124
        %v1127 = vadd.f32 %v1121, %v1125
        %s1128 = sld [smem:[#allocation8 + $0x8d]]
        %v1129 = vstv %s1128
        %v1130 = vmul.f32 %v1129, %v1024
        %v1131 = vmul.f32 %v1129, %v1025
        %v1132 = vadd.f32 %v1126, %v1130
        %v1133 = vadd.f32 %v1127, %v1131
        %s1134 = sld [smem:[#allocation8 + $0xe]]
        %v1135 = vstv %s1134
        %v1136 = vmul.f32 %v1135, %v1018
        %v1137 = vmul.f32 %v1135, %v1019
        %v1138 = vadd.f32 %v918, %v1136
        %v1139 = vadd.f32 %v919, %v1137
        %s1140 = sld [smem:[#allocation8 + $0x4e]]
        %v1141 = vstv %s1140
        %v1142 = vmul.f32 %v1141, %v1012
        %v1143 = vmul.f32 %v1141, %v1013
        %v1144 = vadd.f32 %v1138, %v1142
        %v1145 = vadd.f32 %v1139, %v1143
        %s1146 = sld [smem:[#allocation8 + $0x8e]]
        %v1147 = vstv %s1146
        %v1148 = vmul.f32 %v1147, %v1024
        %v1149 = vmul.f32 %v1147, %v1025
        %v1150 = vadd.f32 %v1144, %v1148
        %v1151 = vadd.f32 %v1145, %v1149
        %s1152 = sld [smem:[#allocation8 + $0xf]]
        %v1153 = vstv %s1152
        %v1154 = vmul.f32 %v1153, %v1018
        %v1155 = vmul.f32 %v1153, %v1019
        %v1156 = vadd.f32 %v936, %v1154
        %v1157 = vadd.f32 %v937, %v1155
        %s1158 = sld [smem:[#allocation8 + $0x4f]]
        %v1159 = vstv %s1158
        %v1160 = vmul.f32 %v1159, %v1012
        %v1161 = vmul.f32 %v1159, %v1013
        %v1162 = vadd.f32 %v1156, %v1160
        %v1163 = vadd.f32 %v1157, %v1161
        %s1164 = sld [smem:[#allocation8 + $0x8f]]
        %v1165 = vstv %s1164
        %v1166 = vmul.f32 %v1165, %v1024
        %v1167 = vmul.f32 %v1165, %v1025
        %v1168 = vadd.f32 %v1162, %v1166
        %v1169 = vadd.f32 %v1163, %v1167
        %s1170 = sld [smem:[#allocation7 + $0x2]]
        %v1171 = vstv %s1170
        %v1172 = vmul.f32 %v1171, %v657
        %v1173 = vmul.f32 %v1171, %v658
        %s1174 = sld [smem:[#allocation7 + $0x22]]
        %v1175 = vstv %s1174
        %v1176 = vmul.f32 %v1175, %v650
        %v1177 = vmul.f32 %v1175, %v651
        %v1178 = vadd.f32 %v1172, %v1176
        %v1179 = vadd.f32 %v1173, %v1177
        %s1180 = sld [smem:[#allocation7 + $0x42]]
        %v1181 = vstv %s1180
        %v1182 = vmul.f32 %v1181, %v673
        %v1183 = vmul.f32 %v1181, %v674
        %v1184 = vadd.f32 %v1178, %v1182
        %v1185 = vadd.f32 %v1179, %v1183
        %s1186 = sld [smem:[#allocation7 + $0xa]]
        %v1187 = vstv %s1186
        %v1188 = vmul.f32 %v1187, %v687
        %v1189 = vmul.f32 %v1187, %v688
        %v1190 = vadd.f32 %v1184, %v1188
        %v1191 = vadd.f32 %v1185, %v1189
        %s1192 = sld [smem:[#allocation7 + $0x2a]]
        %v1193 = vstv %s1192
        %v1194 = vmul.f32 %v1193, %v680
        %v1195 = vmul.f32 %v1193, %v681
        %v1196 = vadd.f32 %v1190, %v1194
        %v1197 = vadd.f32 %v1191, %v1195
        %s1198 = sld [smem:[#allocation7 + $0x4a]]
        %v1199 = vstv %s1198
        %v1200 = vmul.f32 %v1199, %v705
        %v1201 = vmul.f32 %v1199, %v706
        %v1202 = vadd.f32 %v1196, %v1200
        %v1203 = vadd.f32 %v1197, %v1201
        %s1204 = sld [smem:[#allocation7 + $0x12]]
        %v1205 = vstv %s1204
        %v1206 = vmul.f32 %v1205, %v719
        %v1207 = vmul.f32 %v1205, %v720
        %v1208 = vadd.f32 %v1202, %v1206
        %v1209 = vadd.f32 %v1203, %v1207
        %s1210 = sld [smem:[#allocation7 + $0x32]]
        %v1211 = vstv %s1210
        %v1212 = vmul.f32 %v1211, %v712
        %v1213 = vmul.f32 %v1211, %v713
        %v1214 = vadd.f32 %v1208, %v1212
        %v1215 = vadd.f32 %v1209, %v1213
        %s1216 = sld [smem:[#allocation7 + $0x52]]
        %v1217 = vstv %s1216
        %v1218 = vmul.f32 %v1217, %v737
        %v1219 = vmul.f32 %v1217, %v738
        %v1220 = vadd.f32 %v1214, %v1218
        %v1221 = vadd.f32 %v1215, %v1219
        %s1222 = sld [smem:[#allocation7 + $0x1a]]
        %v1223 = vstv %s1222
        %v1224 = vmul.f32 %v1223, %v751
        %v1225 = vmul.f32 %v1223, %v752
        %v1226 = vadd.f32 %v1220, %v1224
        %v1227 = vadd.f32 %v1221, %v1225
        %s1228 = sld [smem:[#allocation7 + $0x3a]]
        %v1229 = vstv %s1228
        %v1230 = vmul.f32 %v1229, %v744
        %v1231 = vmul.f32 %v1229, %v745
        %v1232 = vadd.f32 %v1226, %v1230
        %v1233 = vadd.f32 %v1227, %v1231
        %s1234 = sld [smem:[#allocation7 + $0x5a]]
        %v1235 = vstv %s1234
        %v1236 = vmul.f32 %v1235, %v769
        %v1237 = vmul.f32 %v1235, %v770
        %v1238 = vadd.f32 %v1232, %v1236
        %v1239 = vadd.f32 %v1233, %v1237
        %s1240 = sld [smem:[#allocation14 + $0x2]]
        %v1241 = vstv %s1240
        %v1242 = vadd.f32 %v1238, %v1241
        %v1243 = vadd.f32 %v1239, %v1241
        %v1244 = vmax.f32 %v1242, 0.0
        %v1245 = vmax.f32 %v1243, 0.0
        %1246 = vrot.lane.b32.xlu0 %v1244, 1
        %v1247 = vpop.permute.xlu0 %1246
        %1248 = vrot.lane.b32.xlu0 %v1245, 1
        %v1249 = vpop.permute.xlu0 %1248
        %v1250 = vsel %vm399, %v1247, 0.0
        %v1251 = vsel %vm399, %v1249, 0.0
        %1252 = vrot.lane.b32.xlu0 %v1244, 127
        %v1253 = vpop.permute.xlu0 %1252
        %1254 = vrot.lane.b32.xlu0 %v1245, 127
        %v1255 = vpop.permute.xlu0 %1254
        %v1256 = vsel %vm403, %v1253, 0.0
        %v1257 = vsel %vm403, %v1255, 0.0
        %s1258 = sld [smem:[#allocation8 + $0x10]]
        %v1259 = vstv %s1258
        %v1260 = vmul.f32 %v1259, %v1250
        %v1261 = vmul.f32 %v1259, %v1251
        %v1262 = vadd.f32 %v1042, %v1260
        %v1263 = vadd.f32 %v1043, %v1261
        %s1264 = sld [smem:[#allocation8 + $0x50]]
        %v1265 = vstv %s1264
        %v1266 = vmul.f32 %v1265, %v1244
        %v1267 = vmul.f32 %v1265, %v1245
        %v1268 = vadd.f32 %v1262, %v1266
        %v1269 = vadd.f32 %v1263, %v1267
        %s1270 = sld [smem:[#allocation8 + $0x90]]
        %v1271 = vstv %s1270
        %v1272 = vmul.f32 %v1271, %v1256
        %v1273 = vmul.f32 %v1271, %v1257
        %v1274 = vadd.f32 %v1268, %v1272
        %v1275 = vadd.f32 %v1269, %v1273
        %s1276 = sld [smem:[#allocation8 + $0x11]]
        %v1277 = vstv %s1276
        %v1278 = vmul.f32 %v1277, %v1250
        %v1279 = vmul.f32 %v1277, %v1251
        %v1280 = vadd.f32 %v1060, %v1278
        %v1281 = vadd.f32 %v1061, %v1279
        %s1282 = sld [smem:[#allocation8 + $0x51]]
        %v1283 = vstv %s1282
        %v1284 = vmul.f32 %v1283, %v1244
        %v1285 = vmul.f32 %v1283, %v1245
        %v1286 = vadd.f32 %v1280, %v1284
        %v1287 = vadd.f32 %v1281, %v1285
        %s1288 = sld [smem:[#allocation8 + $0x91]]
        %v1289 = vstv %s1288
        %v1290 = vmul.f32 %v1289, %v1256
        %v1291 = vmul.f32 %v1289, %v1257
        %v1292 = vadd.f32 %v1286, %v1290
        %v1293 = vadd.f32 %v1287, %v1291
        %s1294 = sld [smem:[#allocation8 + $0x12]]
        %v1295 = vstv %s1294
        %v1296 = vmul.f32 %v1295, %v1250
        %v1297 = vmul.f32 %v1295, %v1251
        %v1298 = vadd.f32 %v1078, %v1296
        %v1299 = vadd.f32 %v1079, %v1297
        %s1300 = sld [smem:[#allocation8 + $0x52]]
        %v1301 = vstv %s1300
        %v1302 = vmul.f32 %v1301, %v1244
        %v1303 = vmul.f32 %v1301, %v1245
        %v1304 = vadd.f32 %v1298, %v1302
        %v1305 = vadd.f32 %v1299, %v1303
        %s1306 = sld [smem:[#allocation8 + $0x92]]
        %v1307 = vstv %s1306
        %v1308 = vmul.f32 %v1307, %v1256
        %v1309 = vmul.f32 %v1307, %v1257
        %v1310 = vadd.f32 %v1304, %v1308
        %v1311 = vadd.f32 %v1305, %v1309
        %s1312 = sld [smem:[#allocation8 + $0x13]]
        %v1313 = vstv %s1312
        %v1314 = vmul.f32 %v1313, %v1250
        %v1315 = vmul.f32 %v1313, %v1251
        %v1316 = vadd.f32 %v1096, %v1314
        %v1317 = vadd.f32 %v1097, %v1315
        %s1318 = sld [smem:[#allocation8 + $0x53]]
        %v1319 = vstv %s1318
        %v1320 = vmul.f32 %v1319, %v1244
        %v1321 = vmul.f32 %v1319, %v1245
        %v1322 = vadd.f32 %v1316, %v1320
        %v1323 = vadd.f32 %v1317, %v1321
        %s1324 = sld [smem:[#allocation8 + $0x93]]
        %v1325 = vstv %s1324
        %v1326 = vmul.f32 %v1325, %v1256
        %v1327 = vmul.f32 %v1325, %v1257
        %v1328 = vadd.f32 %v1322, %v1326
        %v1329 = vadd.f32 %v1323, %v1327
        %s1330 = sld [smem:[#allocation8 + $0x14]]
        %v1331 = vstv %s1330
        %v1332 = vmul.f32 %v1331, %v1250
        %v1333 = vmul.f32 %v1331, %v1251
        %v1334 = vadd.f32 %v1114, %v1332
        %v1335 = vadd.f32 %v1115, %v1333
        %s1336 = sld [smem:[#allocation8 + $0x54]]
        %v1337 = vstv %s1336
        %v1338 = vmul.f32 %v1337, %v1244
        %v1339 = vmul.f32 %v1337, %v1245
        %v1340 = vadd.f32 %v1334, %v1338
        %v1341 = vadd.f32 %v1335, %v1339
        %s1342 = sld [smem:[#allocation8 + $0x94]]
        %v1343 = vstv %s1342
        %v1344 = vmul.f32 %v1343, %v1256
        %v1345 = vmul.f32 %v1343, %v1257
        %v1346 = vadd.f32 %v1340, %v1344
        %v1347 = vadd.f32 %v1341, %v1345
        %s1348 = sld [smem:[#allocation8 + $0x15]]
        %v1349 = vstv %s1348
        %v1350 = vmul.f32 %v1349, %v1250
        %v1351 = vmul.f32 %v1349, %v1251
        %v1352 = vadd.f32 %v1132, %v1350
        %v1353 = vadd.f32 %v1133, %v1351
        %s1354 = sld [smem:[#allocation8 + $0x55]]
        %v1355 = vstv %s1354
        %v1356 = vmul.f32 %v1355, %v1244
        %v1357 = vmul.f32 %v1355, %v1245
        %v1358 = vadd.f32 %v1352, %v1356
        %v1359 = vadd.f32 %v1353, %v1357
        %s1360 = sld [smem:[#allocation8 + $0x95]]
        %v1361 = vstv %s1360
        %v1362 = vmul.f32 %v1361, %v1256
        %v1363 = vmul.f32 %v1361, %v1257
        %v1364 = vadd.f32 %v1358, %v1362
        %v1365 = vadd.f32 %v1359, %v1363
        %s1366 = sld [smem:[#allocation8 + $0x16]]
        %v1367 = vstv %s1366
        %v1368 = vmul.f32 %v1367, %v1250
        %v1369 = vmul.f32 %v1367, %v1251
        %v1370 = vadd.f32 %v1150, %v1368
        %v1371 = vadd.f32 %v1151, %v1369
        %s1372 = sld [smem:[#allocation8 + $0x56]]
        %v1373 = vstv %s1372
        %v1374 = vmul.f32 %v1373, %v1244
        %v1375 = vmul.f32 %v1373, %v1245
        %v1376 = vadd.f32 %v1370, %v1374
        %v1377 = vadd.f32 %v1371, %v1375
        %s1378 = sld [smem:[#allocation8 + $0x96]]
        %v1379 = vstv %s1378
        %v1380 = vmul.f32 %v1379, %v1256
        %v1381 = vmul.f32 %v1379, %v1257
        %v1382 = vadd.f32 %v1376, %v1380
        %v1383 = vadd.f32 %v1377, %v1381
        %s1384 = sld [smem:[#allocation8 + $0x17]]
        %v1385 = vstv %s1384
        %v1386 = vmul.f32 %v1385, %v1250
        %v1387 = vmul.f32 %v1385, %v1251
        %v1388 = vadd.f32 %v1168, %v1386
        %v1389 = vadd.f32 %v1169, %v1387
        %s1390 = sld [smem:[#allocation8 + $0x57]]
        %v1391 = vstv %s1390
        %v1392 = vmul.f32 %v1391, %v1244
        %v1393 = vmul.f32 %v1391, %v1245
        %v1394 = vadd.f32 %v1388, %v1392
        %v1395 = vadd.f32 %v1389, %v1393
        %s1396 = sld [smem:[#allocation8 + $0x97]]
        %v1397 = vstv %s1396
        %v1398 = vmul.f32 %v1397, %v1256
        %v1399 = vmul.f32 %v1397, %v1257
        %v1400 = vadd.f32 %v1394, %v1398
        %v1401 = vadd.f32 %v1395, %v1399
        %s1402 = sld [smem:[#allocation7 + $0x3]]
        %v1403 = vstv %s1402
        %v1404 = vmul.f32 %v1403, %v657
        %v1405 = vmul.f32 %v1403, %v658
        %s1406 = sld [smem:[#allocation7 + $0x23]]
        %v1407 = vstv %s1406
        %v1408 = vmul.f32 %v1407, %v650
        %v1409 = vmul.f32 %v1407, %v651
        %v1410 = vadd.f32 %v1404, %v1408
        %v1411 = vadd.f32 %v1405, %v1409
        %s1412 = sld [smem:[#allocation7 + $0x43]]
        %v1413 = vstv %s1412
        %v1414 = vmul.f32 %v1413, %v673
        %v1415 = vmul.f32 %v1413, %v674
        %v1416 = vadd.f32 %v1410, %v1414
        %v1417 = vadd.f32 %v1411, %v1415
        %s1418 = sld [smem:[#allocation7 + $0xb]]
        %v1419 = vstv %s1418
        %v1420 = vmul.f32 %v1419, %v687
        %v1421 = vmul.f32 %v1419, %v688
        %v1422 = vadd.f32 %v1416, %v1420
        %v1423 = vadd.f32 %v1417, %v1421
        %s1424 = sld [smem:[#allocation7 + $0x2b]]
        %v1425 = vstv %s1424
        %v1426 = vmul.f32 %v1425, %v680
        %v1427 = vmul.f32 %v1425, %v681
        %v1428 = vadd.f32 %v1422, %v1426
        %v1429 = vadd.f32 %v1423, %v1427
        %s1430 = sld [smem:[#allocation7 + $0x4b]]
        %v1431 = vstv %s1430
        %v1432 = vmul.f32 %v1431, %v705
        %v1433 = vmul.f32 %v1431, %v706
        %v1434 = vadd.f32 %v1428, %v1432
        %v1435 = vadd.f32 %v1429, %v1433
        %s1436 = sld [smem:[#allocation7 + $0x13]]
        %v1437 = vstv %s1436
        %v1438 = vmul.f32 %v1437, %v719
        %v1439 = vmul.f32 %v1437, %v720
        %v1440 = vadd.f32 %v1434, %v1438
        %v1441 = vadd.f32 %v1435, %v1439
        %s1442 = sld [smem:[#allocation7 + $0x33]]
        %v1443 = vstv %s1442
        %v1444 = vmul.f32 %v1443, %v712
        %v1445 = vmul.f32 %v1443, %v713
        %v1446 = vadd.f32 %v1440, %v1444
        %v1447 = vadd.f32 %v1441, %v1445
        %s1448 = sld [smem:[#allocation7 + $0x53]]
        %v1449 = vstv %s1448
        %v1450 = vmul.f32 %v1449, %v737
        %v1451 = vmul.f32 %v1449, %v738
        %v1452 = vadd.f32 %v1446, %v1450
        %v1453 = vadd.f32 %v1447, %v1451
        %s1454 = sld [smem:[#allocation7 + $0x1b]]
        %v1455 = vstv %s1454
        %v1456 = vmul.f32 %v1455, %v751
        %v1457 = vmul.f32 %v1455, %v752
        %v1458 = vadd.f32 %v1452, %v1456
        %v1459 = vadd.f32 %v1453, %v1457
        %s1460 = sld [smem:[#allocation7 + $0x3b]]
        %v1461 = vstv %s1460
        %v1462 = vmul.f32 %v1461, %v744
        %v1463 = vmul.f32 %v1461, %v745
        %v1464 = vadd.f32 %v1458, %v1462
        %v1465 = vadd.f32 %v1459, %v1463
        %s1466 = sld [smem:[#allocation7 + $0x5b]]
        %v1467 = vstv %s1466
        %v1468 = vmul.f32 %v1467, %v769
        %v1469 = vmul.f32 %v1467, %v770
        %v1470 = vadd.f32 %v1464, %v1468
        %v1471 = vadd.f32 %v1465, %v1469
        %s1472 = sld [smem:[#allocation14 + $0x3]]
        %v1473 = vstv %s1472
        %v1474 = vadd.f32 %v1470, %v1473
        %v1475 = vadd.f32 %v1471, %v1473
        %v1476 = vmax.f32 %v1474, 0.0
        %v1477 = vmax.f32 %v1475, 0.0
        %1478 = vrot.lane.b32.xlu0 %v1476, 1
        %v1479 = vpop.permute.xlu0 %1478
        %1480 = vrot.lane.b32.xlu0 %v1477, 1
        %v1481 = vpop.permute.xlu0 %1480
        %v1482 = vsel %vm399, %v1479, 0.0
        %v1483 = vsel %vm399, %v1481, 0.0
        %1484 = vrot.lane.b32.xlu0 %v1476, 127
        %v1485 = vpop.permute.xlu0 %1484
        %1486 = vrot.lane.b32.xlu0 %v1477, 127
        %v1487 = vpop.permute.xlu0 %1486
        %v1488 = vsel %vm403, %v1485, 0.0
        %v1489 = vsel %vm403, %v1487, 0.0
        %s1490 = sld [smem:[#allocation8 + $0x18]]
        %v1491 = vstv %s1490
        %v1492 = vmul.f32 %v1491, %v1482
        %v1493 = vmul.f32 %v1491, %v1483
        %v1494 = vadd.f32 %v1274, %v1492
        %v1495 = vadd.f32 %v1275, %v1493
        %s1496 = sld [smem:[#allocation8 + $0x58]]
        %v1497 = vstv %s1496
        %v1498 = vmul.f32 %v1497, %v1476
        %v1499 = vmul.f32 %v1497, %v1477
        %v1500 = vadd.f32 %v1494, %v1498
        %v1501 = vadd.f32 %v1495, %v1499
        %s1502 = sld [smem:[#allocation8 + $0x98]]
        %v1503 = vstv %s1502
        %v1504 = vmul.f32 %v1503, %v1488
        %v1505 = vmul.f32 %v1503, %v1489
        %v1506 = vadd.f32 %v1500, %v1504
        %v1507 = vadd.f32 %v1501, %v1505
        %s1508 = sld [smem:[#allocation8 + $0x19]]
        %v1509 = vstv %s1508
        %v1510 = vmul.f32 %v1509, %v1482
        %v1511 = vmul.f32 %v1509, %v1483
        %v1512 = vadd.f32 %v1292, %v1510
        %v1513 = vadd.f32 %v1293, %v1511
        %s1514 = sld [smem:[#allocation8 + $0x59]]
        %v1515 = vstv %s1514
        %v1516 = vmul.f32 %v1515, %v1476
        %v1517 = vmul.f32 %v1515, %v1477
        %v1518 = vadd.f32 %v1512, %v1516
        %v1519 = vadd.f32 %v1513, %v1517
        %s1520 = sld [smem:[#allocation8 + $0x99]]
        %v1521 = vstv %s1520
        %v1522 = vmul.f32 %v1521, %v1488
        %v1523 = vmul.f32 %v1521, %v1489
        %v1524 = vadd.f32 %v1518, %v1522
        %v1525 = vadd.f32 %v1519, %v1523
        %s1526 = sld [smem:[#allocation8 + $0x1a]]
        %v1527 = vstv %s1526
        %v1528 = vmul.f32 %v1527, %v1482
        %v1529 = vmul.f32 %v1527, %v1483
        %v1530 = vadd.f32 %v1310, %v1528
        %v1531 = vadd.f32 %v1311, %v1529
        %s1532 = sld [smem:[#allocation8 + $0x5a]]
        %v1533 = vstv %s1532
        %v1534 = vmul.f32 %v1533, %v1476
        %v1535 = vmul.f32 %v1533, %v1477
        %v1536 = vadd.f32 %v1530, %v1534
        %v1537 = vadd.f32 %v1531, %v1535
        %s1538 = sld [smem:[#allocation8 + $0x9a]]
        %v1539 = vstv %s1538
        %v1540 = vmul.f32 %v1539, %v1488
        %v1541 = vmul.f32 %v1539, %v1489
        %v1542 = vadd.f32 %v1536, %v1540
        %v1543 = vadd.f32 %v1537, %v1541
        %s1544 = sld [smem:[#allocation8 + $0x1b]]
        %v1545 = vstv %s1544
        %v1546 = vmul.f32 %v1545, %v1482
        %v1547 = vmul.f32 %v1545, %v1483
        %v1548 = vadd.f32 %v1328, %v1546
        %v1549 = vadd.f32 %v1329, %v1547
        %s1550 = sld [smem:[#allocation8 + $0x5b]]
        %v1551 = vstv %s1550
        %v1552 = vmul.f32 %v1551, %v1476
        %v1553 = vmul.f32 %v1551, %v1477
        %v1554 = vadd.f32 %v1548, %v1552
        %v1555 = vadd.f32 %v1549, %v1553
        %s1556 = sld [smem:[#allocation8 + $0x9b]]
        %v1557 = vstv %s1556
        %v1558 = vmul.f32 %v1557, %v1488
        %v1559 = vmul.f32 %v1557, %v1489
        %v1560 = vadd.f32 %v1554, %v1558
        %v1561 = vadd.f32 %v1555, %v1559
        %s1562 = sld [smem:[#allocation8 + $0x1c]]
        %v1563 = vstv %s1562
        %v1564 = vmul.f32 %v1563, %v1482
        %v1565 = vmul.f32 %v1563, %v1483
        %v1566 = vadd.f32 %v1346, %v1564
        %v1567 = vadd.f32 %v1347, %v1565
        %s1568 = sld [smem:[#allocation8 + $0x5c]]
        %v1569 = vstv %s1568
        %v1570 = vmul.f32 %v1569, %v1476
        %v1571 = vmul.f32 %v1569, %v1477
        %v1572 = vadd.f32 %v1566, %v1570
        %v1573 = vadd.f32 %v1567, %v1571
        %s1574 = sld [smem:[#allocation8 + $0x9c]]
        %v1575 = vstv %s1574
        %v1576 = vmul.f32 %v1575, %v1488
        %v1577 = vmul.f32 %v1575, %v1489
        %v1578 = vadd.f32 %v1572, %v1576
        %v1579 = vadd.f32 %v1573, %v1577
        %s1580 = sld [smem:[#allocation8 + $0x1d]]
        %v1581 = vstv %s1580
        %v1582 = vmul.f32 %v1581, %v1482
        %v1583 = vmul.f32 %v1581, %v1483
        %v1584 = vadd.f32 %v1364, %v1582
        %v1585 = vadd.f32 %v1365, %v1583
        %s1586 = sld [smem:[#allocation8 + $0x5d]]
        %v1587 = vstv %s1586
        %v1588 = vmul.f32 %v1587, %v1476
        %v1589 = vmul.f32 %v1587, %v1477
        %v1590 = vadd.f32 %v1584, %v1588
        %v1591 = vadd.f32 %v1585, %v1589
        %s1592 = sld [smem:[#allocation8 + $0x9d]]
        %v1593 = vstv %s1592
        %v1594 = vmul.f32 %v1593, %v1488
        %v1595 = vmul.f32 %v1593, %v1489
        %v1596 = vadd.f32 %v1590, %v1594
        %v1597 = vadd.f32 %v1591, %v1595
        %s1598 = sld [smem:[#allocation8 + $0x1e]]
        %v1599 = vstv %s1598
        %v1600 = vmul.f32 %v1599, %v1482
        %v1601 = vmul.f32 %v1599, %v1483
        %v1602 = vadd.f32 %v1382, %v1600
        %v1603 = vadd.f32 %v1383, %v1601
        %s1604 = sld [smem:[#allocation8 + $0x5e]]
        %v1605 = vstv %s1604
        %v1606 = vmul.f32 %v1605, %v1476
        %v1607 = vmul.f32 %v1605, %v1477
        %v1608 = vadd.f32 %v1602, %v1606
        %v1609 = vadd.f32 %v1603, %v1607
        %s1610 = sld [smem:[#allocation8 + $0x9e]]
        %v1611 = vstv %s1610
        %v1612 = vmul.f32 %v1611, %v1488
        %v1613 = vmul.f32 %v1611, %v1489
        %v1614 = vadd.f32 %v1608, %v1612
        %v1615 = vadd.f32 %v1609, %v1613
        %s1616 = sld [smem:[#allocation8 + $0x1f]]
        %v1617 = vstv %s1616
        %v1618 = vmul.f32 %v1617, %v1482
        %v1619 = vmul.f32 %v1617, %v1483
        %v1620 = vadd.f32 %v1400, %v1618
        %v1621 = vadd.f32 %v1401, %v1619
        %s1622 = sld [smem:[#allocation8 + $0x5f]]
        %v1623 = vstv %s1622
        %v1624 = vmul.f32 %v1623, %v1476
        %v1625 = vmul.f32 %v1623, %v1477
        %v1626 = vadd.f32 %v1620, %v1624
        %v1627 = vadd.f32 %v1621, %v1625
        %s1628 = sld [smem:[#allocation8 + $0x9f]]
        %v1629 = vstv %s1628
        %v1630 = vmul.f32 %v1629, %v1488
        %v1631 = vmul.f32 %v1629, %v1489
        %v1632 = vadd.f32 %v1626, %v1630
        %v1633 = vadd.f32 %v1627, %v1631
        %s1634 = sld [smem:[#allocation7 + $0x4]]
        %v1635 = vstv %s1634
        %v1636 = vmul.f32 %v1635, %v657
        %v1637 = vmul.f32 %v1635, %v658
        %s1638 = sld [smem:[#allocation7 + $0x24]]
        %v1639 = vstv %s1638
        %v1640 = vmul.f32 %v1639, %v650
        %v1641 = vmul.f32 %v1639, %v651
        %v1642 = vadd.f32 %v1636, %v1640
        %v1643 = vadd.f32 %v1637, %v1641
        %s1644 = sld [smem:[#allocation7 + $0x44]]
        %v1645 = vstv %s1644
        %v1646 = vmul.f32 %v1645, %v673
        %v1647 = vmul.f32 %v1645, %v674
        %v1648 = vadd.f32 %v1642, %v1646
        %v1649 = vadd.f32 %v1643, %v1647
        %s1650 = sld [smem:[#allocation7 + $0xc]]
        %v1651 = vstv %s1650
        %v1652 = vmul.f32 %v1651, %v687
        %v1653 = vmul.f32 %v1651, %v688
        %v1654 = vadd.f32 %v1648, %v1652
        %v1655 = vadd.f32 %v1649, %v1653
        %s1656 = sld [smem:[#allocation7 + $0x2c]]
        %v1657 = vstv %s1656
        %v1658 = vmul.f32 %v1657, %v680
        %v1659 = vmul.f32 %v1657, %v681
        %v1660 = vadd.f32 %v1654, %v1658
        %v1661 = vadd.f32 %v1655, %v1659
        %s1662 = sld [smem:[#allocation7 + $0x4c]]
        %v1663 = vstv %s1662
        %v1664 = vmul.f32 %v1663, %v705
        %v1665 = vmul.f32 %v1663, %v706
        %v1666 = vadd.f32 %v1660, %v1664
        %v1667 = vadd.f32 %v1661, %v1665
        %s1668 = sld [smem:[#allocation7 + $0x14]]
        %v1669 = vstv %s1668
        %v1670 = vmul.f32 %v1669, %v719
        %v1671 = vmul.f32 %v1669, %v720
        %v1672 = vadd.f32 %v1666, %v1670
        %v1673 = vadd.f32 %v1667, %v1671
        %s1674 = sld [smem:[#allocation7 + $0x34]]
        %v1675 = vstv %s1674
        %v1676 = vmul.f32 %v1675, %v712
        %v1677 = vmul.f32 %v1675, %v713
        %v1678 = vadd.f32 %v1672, %v1676
        %v1679 = vadd.f32 %v1673, %v1677
        %s1680 = sld [smem:[#allocation7 + $0x54]]
        %v1681 = vstv %s1680
        %v1682 = vmul.f32 %v1681, %v737
        %v1683 = vmul.f32 %v1681, %v738
        %v1684 = vadd.f32 %v1678, %v1682
        %v1685 = vadd.f32 %v1679, %v1683
        %s1686 = sld [smem:[#allocation7 + $0x1c]]
        %v1687 = vstv %s1686
        %v1688 = vmul.f32 %v1687, %v751
        %v1689 = vmul.f32 %v1687, %v752
        %v1690 = vadd.f32 %v1684, %v1688
        %v1691 = vadd.f32 %v1685, %v1689
        %s1692 = sld [smem:[#allocation7 + $0x3c]]
        %v1693 = vstv %s1692
        %v1694 = vmul.f32 %v1693, %v744
        %v1695 = vmul.f32 %v1693, %v745
        %v1696 = vadd.f32 %v1690, %v1694
        %v1697 = vadd.f32 %v1691, %v1695
        %s1698 = sld [smem:[#allocation7 + $0x5c]]
        %v1699 = vstv %s1698
        %v1700 = vmul.f32 %v1699, %v769
        %v1701 = vmul.f32 %v1699, %v770
        %v1702 = vadd.f32 %v1696, %v1700
        %v1703 = vadd.f32 %v1697, %v1701
        %s1704 = sld [smem:[#allocation14 + $0x4]]
        %v1705 = vstv %s1704
        %v1706 = vadd.f32 %v1702, %v1705
        %v1707 = vadd.f32 %v1703, %v1705
        %v1708 = vmax.f32 %v1706, 0.0
        %v1709 = vmax.f32 %v1707, 0.0
        %1710 = vrot.lane.b32.xlu0 %v1708, 1
        %v1711 = vpop.permute.xlu0 %1710
        %1712 = vrot.lane.b32.xlu0 %v1709, 1
        %v1713 = vpop.permute.xlu0 %1712
        %v1714 = vsel %vm399, %v1711, 0.0
        %v1715 = vsel %vm399, %v1713, 0.0
        %1716 = vrot.lane.b32.xlu0 %v1708, 127
        %v1717 = vpop.permute.xlu0 %1716
        %1718 = vrot.lane.b32.xlu0 %v1709, 127
        %v1719 = vpop.permute.xlu0 %1718
        %v1720 = vsel %vm403, %v1717, 0.0
        %v1721 = vsel %vm403, %v1719, 0.0
        %s1722 = sld [smem:[#allocation8 + $0x20]]
        %v1723 = vstv %s1722
        %v1724 = vmul.f32 %v1723, %v1714
        %v1725 = vmul.f32 %v1723, %v1715
        %v1726 = vadd.f32 %v1506, %v1724
        %v1727 = vadd.f32 %v1507, %v1725
        %s1728 = sld [smem:[#allocation8 + $0x60]]
        %v1729 = vstv %s1728
        %v1730 = vmul.f32 %v1729, %v1708
        %v1731 = vmul.f32 %v1729, %v1709
        %v1732 = vadd.f32 %v1726, %v1730
        %v1733 = vadd.f32 %v1727, %v1731
        %s1734 = sld [smem:[#allocation8 + $0xa0]]
        %v1735 = vstv %s1734
        %v1736 = vmul.f32 %v1735, %v1720
        %v1737 = vmul.f32 %v1735, %v1721
        %v1738 = vadd.f32 %v1732, %v1736
        %v1739 = vadd.f32 %v1733, %v1737
        %s1740 = sld [smem:[#allocation8 + $0x21]]
        %v1741 = vstv %s1740
        %v1742 = vmul.f32 %v1741, %v1714
        %v1743 = vmul.f32 %v1741, %v1715
        %v1744 = vadd.f32 %v1524, %v1742
        %v1745 = vadd.f32 %v1525, %v1743
        %s1746 = sld [smem:[#allocation8 + $0x61]]
        %v1747 = vstv %s1746
        %v1748 = vmul.f32 %v1747, %v1708
        %v1749 = vmul.f32 %v1747, %v1709
        %v1750 = vadd.f32 %v1744, %v1748
        %v1751 = vadd.f32 %v1745, %v1749
        %s1752 = sld [smem:[#allocation8 + $0xa1]]
        %v1753 = vstv %s1752
        %v1754 = vmul.f32 %v1753, %v1720
        %v1755 = vmul.f32 %v1753, %v1721
        %v1756 = vadd.f32 %v1750, %v1754
        %v1757 = vadd.f32 %v1751, %v1755
        %s1758 = sld [smem:[#allocation8 + $0x22]]
        %v1759 = vstv %s1758
        %v1760 = vmul.f32 %v1759, %v1714
        %v1761 = vmul.f32 %v1759, %v1715
        %v1762 = vadd.f32 %v1542, %v1760
        %v1763 = vadd.f32 %v1543, %v1761
        %s1764 = sld [smem:[#allocation8 + $0x62]]
        %v1765 = vstv %s1764
        %v1766 = vmul.f32 %v1765, %v1708
        %v1767 = vmul.f32 %v1765, %v1709
        %v1768 = vadd.f32 %v1762, %v1766
        %v1769 = vadd.f32 %v1763, %v1767
        %s1770 = sld [smem:[#allocation8 + $0xa2]]
        %v1771 = vstv %s1770
        %v1772 = vmul.f32 %v1771, %v1720
        %v1773 = vmul.f32 %v1771, %v1721
        %v1774 = vadd.f32 %v1768, %v1772
        %v1775 = vadd.f32 %v1769, %v1773
        %s1776 = sld [smem:[#allocation8 + $0x23]]
        %v1777 = vstv %s1776
        %v1778 = vmul.f32 %v1777, %v1714
        %v1779 = vmul.f32 %v1777, %v1715
        %v1780 = vadd.f32 %v1560, %v1778
        %v1781 = vadd.f32 %v1561, %v1779
        %s1782 = sld [smem:[#allocation8 + $0x63]]
        %v1783 = vstv %s1782
        %v1784 = vmul.f32 %v1783, %v1708
        %v1785 = vmul.f32 %v1783, %v1709
        %v1786 = vadd.f32 %v1780, %v1784
        %v1787 = vadd.f32 %v1781, %v1785
        %s1788 = sld [smem:[#allocation8 + $0xa3]]
        %v1789 = vstv %s1788
        %v1790 = vmul.f32 %v1789, %v1720
        %v1791 = vmul.f32 %v1789, %v1721
        %v1792 = vadd.f32 %v1786, %v1790
        %v1793 = vadd.f32 %v1787, %v1791
        %s1794 = sld [smem:[#allocation8 + $0x24]]
        %v1795 = vstv %s1794
        %v1796 = vmul.f32 %v1795, %v1714
        %v1797 = vmul.f32 %v1795, %v1715
        %v1798 = vadd.f32 %v1578, %v1796
        %v1799 = vadd.f32 %v1579, %v1797
        %s1800 = sld [smem:[#allocation8 + $0x64]]
        %v1801 = vstv %s1800
        %v1802 = vmul.f32 %v1801, %v1708
        %v1803 = vmul.f32 %v1801, %v1709
        %v1804 = vadd.f32 %v1798, %v1802
        %v1805 = vadd.f32 %v1799, %v1803
        %s1806 = sld [smem:[#allocation8 + $0xa4]]
        %v1807 = vstv %s1806
        %v1808 = vmul.f32 %v1807, %v1720
        %v1809 = vmul.f32 %v1807, %v1721
        %v1810 = vadd.f32 %v1804, %v1808
        %v1811 = vadd.f32 %v1805, %v1809
        %s1812 = sld [smem:[#allocation8 + $0x25]]
        %v1813 = vstv %s1812
        %v1814 = vmul.f32 %v1813, %v1714
        %v1815 = vmul.f32 %v1813, %v1715
        %v1816 = vadd.f32 %v1596, %v1814
        %v1817 = vadd.f32 %v1597, %v1815
        %s1818 = sld [smem:[#allocation8 + $0x65]]
        %v1819 = vstv %s1818
        %v1820 = vmul.f32 %v1819, %v1708
        %v1821 = vmul.f32 %v1819, %v1709
        %v1822 = vadd.f32 %v1816, %v1820
        %v1823 = vadd.f32 %v1817, %v1821
        %s1824 = sld [smem:[#allocation8 + $0xa5]]
        %v1825 = vstv %s1824
        %v1826 = vmul.f32 %v1825, %v1720
        %v1827 = vmul.f32 %v1825, %v1721
        %v1828 = vadd.f32 %v1822, %v1826
        %v1829 = vadd.f32 %v1823, %v1827
        %s1830 = sld [smem:[#allocation8 + $0x26]]
        %v1831 = vstv %s1830
        %v1832 = vmul.f32 %v1831, %v1714
        %v1833 = vmul.f32 %v1831, %v1715
        %v1834 = vadd.f32 %v1614, %v1832
        %v1835 = vadd.f32 %v1615, %v1833
        %s1836 = sld [smem:[#allocation8 + $0x66]]
        %v1837 = vstv %s1836
        %v1838 = vmul.f32 %v1837, %v1708
        %v1839 = vmul.f32 %v1837, %v1709
        %v1840 = vadd.f32 %v1834, %v1838
        %v1841 = vadd.f32 %v1835, %v1839
        %s1842 = sld [smem:[#allocation8 + $0xa6]]
        %v1843 = vstv %s1842
        %v1844 = vmul.f32 %v1843, %v1720
        %v1845 = vmul.f32 %v1843, %v1721
        %v1846 = vadd.f32 %v1840, %v1844
        %v1847 = vadd.f32 %v1841, %v1845
        %s1848 = sld [smem:[#allocation8 + $0x27]]
        %v1849 = vstv %s1848
        %v1850 = vmul.f32 %v1849, %v1714
        %v1851 = vmul.f32 %v1849, %v1715
        %v1852 = vadd.f32 %v1632, %v1850
        %v1853 = vadd.f32 %v1633, %v1851
        %s1854 = sld [smem:[#allocation8 + $0x67]]
        %v1855 = vstv %s1854
        %v1856 = vmul.f32 %v1855, %v1708
        %v1857 = vmul.f32 %v1855, %v1709
        %v1858 = vadd.f32 %v1852, %v1856
        %v1859 = vadd.f32 %v1853, %v1857
        %s1860 = sld [smem:[#allocation8 + $0xa7]]
        %v1861 = vstv %s1860
        %v1862 = vmul.f32 %v1861, %v1720
        %v1863 = vmul.f32 %v1861, %v1721
        %v1864 = vadd.f32 %v1858, %v1862
        %v1865 = vadd.f32 %v1859, %v1863
        %s1866 = sld [smem:[#allocation7 + $0x5]]
        %v1867 = vstv %s1866
        %v1868 = vmul.f32 %v1867, %v657
        %v1869 = vmul.f32 %v1867, %v658
        %s1870 = sld [smem:[#allocation7 + $0x25]]
        %v1871 = vstv %s1870
        %v1872 = vmul.f32 %v1871, %v650
        %v1873 = vmul.f32 %v1871, %v651
        %v1874 = vadd.f32 %v1868, %v1872
        %v1875 = vadd.f32 %v1869, %v1873
        %s1876 = sld [smem:[#allocation7 + $0x45]]
        %v1877 = vstv %s1876
        %v1878 = vmul.f32 %v1877, %v673
        %v1879 = vmul.f32 %v1877, %v674
        %v1880 = vadd.f32 %v1874, %v1878
        %v1881 = vadd.f32 %v1875, %v1879
        %s1882 = sld [smem:[#allocation7 + $0xd]]
        %v1883 = vstv %s1882
        %v1884 = vmul.f32 %v1883, %v687
        %v1885 = vmul.f32 %v1883, %v688
        %v1886 = vadd.f32 %v1880, %v1884
        %v1887 = vadd.f32 %v1881, %v1885
        %s1888 = sld [smem:[#allocation7 + $0x2d]]
        %v1889 = vstv %s1888
        %v1890 = vmul.f32 %v1889, %v680
        %v1891 = vmul.f32 %v1889, %v681
        %v1892 = vadd.f32 %v1886, %v1890
        %v1893 = vadd.f32 %v1887, %v1891
        %s1894 = sld [smem:[#allocation7 + $0x4d]]
        %v1895 = vstv %s1894
        %v1896 = vmul.f32 %v1895, %v705
        %v1897 = vmul.f32 %v1895, %v706
        %v1898 = vadd.f32 %v1892, %v1896
        %v1899 = vadd.f32 %v1893, %v1897
        %s1900 = sld [smem:[#allocation7 + $0x15]]
        %v1901 = vstv %s1900
        %v1902 = vmul.f32 %v1901, %v719
        %v1903 = vmul.f32 %v1901, %v720
        %v1904 = vadd.f32 %v1898, %v1902
        %v1905 = vadd.f32 %v1899, %v1903
        %s1906 = sld [smem:[#allocation7 + $0x35]]
        %v1907 = vstv %s1906
        %v1908 = vmul.f32 %v1907, %v712
        %v1909 = vmul.f32 %v1907, %v713
        %v1910 = vadd.f32 %v1904, %v1908
        %v1911 = vadd.f32 %v1905, %v1909
        %s1912 = sld [smem:[#allocation7 + $0x55]]
        %v1913 = vstv %s1912
        %v1914 = vmul.f32 %v1913, %v737
        %v1915 = vmul.f32 %v1913, %v738
        %v1916 = vadd.f32 %v1910, %v1914
        %v1917 = vadd.f32 %v1911, %v1915
        %s1918 = sld [smem:[#allocation7 + $0x1d]]
        %v1919 = vstv %s1918
        %v1920 = vmul.f32 %v1919, %v751
        %v1921 = vmul.f32 %v1919, %v752
        %v1922 = vadd.f32 %v1916, %v1920
        %v1923 = vadd.f32 %v1917, %v1921
        %s1924 = sld [smem:[#allocation7 + $0x3d]]
        %v1925 = vstv %s1924
        %v1926 = vmul.f32 %v1925, %v744
        %v1927 = vmul.f32 %v1925, %v745
        %v1928 = vadd.f32 %v1922, %v1926
        %v1929 = vadd.f32 %v1923, %v1927
        %s1930 = sld [smem:[#allocation7 + $0x5d]]
        %v1931 = vstv %s1930
        %v1932 = vmul.f32 %v1931, %v769
        %v1933 = vmul.f32 %v1931, %v770
        %v1934 = vadd.f32 %v1928, %v1932
        %v1935 = vadd.f32 %v1929, %v1933
        %s1936 = sld [smem:[#allocation14 + $0x5]]
        %v1937 = vstv %s1936
        %v1938 = vadd.f32 %v1934, %v1937
        %v1939 = vadd.f32 %v1935, %v1937
        %v1940 = vmax.f32 %v1938, 0.0
        %v1941 = vmax.f32 %v1939, 0.0
        %1942 = vrot.lane.b32.xlu0 %v1940, 1
        %v1943 = vpop.permute.xlu0 %1942
        %1944 = vrot.lane.b32.xlu0 %v1941, 1
        %v1945 = vpop.permute.xlu0 %1944
        %v1946 = vsel %vm399, %v1943, 0.0
        %v1947 = vsel %vm399, %v1945, 0.0
        %1948 = vrot.lane.b32.xlu0 %v1940, 127
        %v1949 = vpop.permute.xlu0 %1948
        %1950 = vrot.lane.b32.xlu0 %v1941, 127
        %v1951 = vpop.permute.xlu0 %1950
        %v1952 = vsel %vm403, %v1949, 0.0
        %v1953 = vsel %vm403, %v1951, 0.0
        %s1954 = sld [smem:[#allocation8 + $0x28]]
        %v1955 = vstv %s1954
        %v1956 = vmul.f32 %v1955, %v1946
        %v1957 = vmul.f32 %v1955, %v1947
        %v1958 = vadd.f32 %v1738, %v1956
        %v1959 = vadd.f32 %v1739, %v1957
        %s1960 = sld [smem:[#allocation8 + $0x68]]
        %v1961 = vstv %s1960
        %v1962 = vmul.f32 %v1961, %v1940
        %v1963 = vmul.f32 %v1961, %v1941
        %v1964 = vadd.f32 %v1958, %v1962
        %v1965 = vadd.f32 %v1959, %v1963
        %s1966 = sld [smem:[#allocation8 + $0xa8]]
        %v1967 = vstv %s1966
        %v1968 = vmul.f32 %v1967, %v1952
        %v1969 = vmul.f32 %v1967, %v1953
        %v1970 = vadd.f32 %v1964, %v1968
        %v1971 = vadd.f32 %v1965, %v1969
        %s1972 = sld [smem:[#allocation8 + $0x29]]
        %v1973 = vstv %s1972
        %v1974 = vmul.f32 %v1973, %v1946
        %v1975 = vmul.f32 %v1973, %v1947
        %v1976 = vadd.f32 %v1756, %v1974
        %v1977 = vadd.f32 %v1757, %v1975
        %s1978 = sld [smem:[#allocation8 + $0x69]]
        %v1979 = vstv %s1978
        %v1980 = vmul.f32 %v1979, %v1940
        %v1981 = vmul.f32 %v1979, %v1941
        %v1982 = vadd.f32 %v1976, %v1980
        %v1983 = vadd.f32 %v1977, %v1981
        %s1984 = sld [smem:[#allocation8 + $0xa9]]
        %v1985 = vstv %s1984
        %v1986 = vmul.f32 %v1985, %v1952
        %v1987 = vmul.f32 %v1985, %v1953
        %v1988 = vadd.f32 %v1982, %v1986
        %v1989 = vadd.f32 %v1983, %v1987
        %s1990 = sld [smem:[#allocation8 + $0x2a]]
        %v1991 = vstv %s1990
        %v1992 = vmul.f32 %v1991, %v1946
        %v1993 = vmul.f32 %v1991, %v1947
        %v1994 = vadd.f32 %v1774, %v1992
        %v1995 = vadd.f32 %v1775, %v1993
        %s1996 = sld [smem:[#allocation8 + $0x6a]]
        %v1997 = vstv %s1996
        %v1998 = vmul.f32 %v1997, %v1940
        %v1999 = vmul.f32 %v1997, %v1941
        %v2000 = vadd.f32 %v1994, %v1998
        %v2001 = vadd.f32 %v1995, %v1999
        %s2002 = sld [smem:[#allocation8 + $0xaa]]
        %v2003 = vstv %s2002
        %v2004 = vmul.f32 %v2003, %v1952
        %v2005 = vmul.f32 %v2003, %v1953
        %v2006 = vadd.f32 %v2000, %v2004
        %v2007 = vadd.f32 %v2001, %v2005
        %s2008 = sld [smem:[#allocation8 + $0x2b]]
        %v2009 = vstv %s2008
        %v2010 = vmul.f32 %v2009, %v1946
        %v2011 = vmul.f32 %v2009, %v1947
        %v2012 = vadd.f32 %v1792, %v2010
        %v2013 = vadd.f32 %v1793, %v2011
        %s2014 = sld [smem:[#allocation8 + $0x6b]]
        %v2015 = vstv %s2014
        %v2016 = vmul.f32 %v2015, %v1940
        %v2017 = vmul.f32 %v2015, %v1941
        %v2018 = vadd.f32 %v2012, %v2016
        %v2019 = vadd.f32 %v2013, %v2017
        %s2020 = sld [smem:[#allocation8 + $0xab]]
        %v2021 = vstv %s2020
        %v2022 = vmul.f32 %v2021, %v1952
        %v2023 = vmul.f32 %v2021, %v1953
        %v2024 = vadd.f32 %v2018, %v2022
        %v2025 = vadd.f32 %v2019, %v2023
        %s2026 = sld [smem:[#allocation8 + $0x2c]]
        %v2027 = vstv %s2026
        %v2028 = vmul.f32 %v2027, %v1946
        %v2029 = vmul.f32 %v2027, %v1947
        %v2030 = vadd.f32 %v1810, %v2028
        %v2031 = vadd.f32 %v1811, %v2029
        %s2032 = sld [smem:[#allocation8 + $0x6c]]
        %v2033 = vstv %s2032
        %v2034 = vmul.f32 %v2033, %v1940
        %v2035 = vmul.f32 %v2033, %v1941
        %v2036 = vadd.f32 %v2030, %v2034
        %v2037 = vadd.f32 %v2031, %v2035
        %s2038 = sld [smem:[#allocation8 + $0xac]]
        %v2039 = vstv %s2038
        %v2040 = vmul.f32 %v2039, %v1952
        %v2041 = vmul.f32 %v2039, %v1953
        %v2042 = vadd.f32 %v2036, %v2040
        %v2043 = vadd.f32 %v2037, %v2041
        %s2044 = sld [smem:[#allocation8 + $0x2d]]
        %v2045 = vstv %s2044
        %v2046 = vmul.f32 %v2045, %v1946
        %v2047 = vmul.f32 %v2045, %v1947
        %v2048 = vadd.f32 %v1828, %v2046
        %v2049 = vadd.f32 %v1829, %v2047
        %s2050 = sld [smem:[#allocation8 + $0x6d]]
        %v2051 = vstv %s2050
        %v2052 = vmul.f32 %v2051, %v1940
        %v2053 = vmul.f32 %v2051, %v1941
        %v2054 = vadd.f32 %v2048, %v2052
        %v2055 = vadd.f32 %v2049, %v2053
        %s2056 = sld [smem:[#allocation8 + $0xad]]
        %v2057 = vstv %s2056
        %v2058 = vmul.f32 %v2057, %v1952
        %v2059 = vmul.f32 %v2057, %v1953
        %v2060 = vadd.f32 %v2054, %v2058
        %v2061 = vadd.f32 %v2055, %v2059
        %s2062 = sld [smem:[#allocation8 + $0x2e]]
        %v2063 = vstv %s2062
        %v2064 = vmul.f32 %v2063, %v1946
        %v2065 = vmul.f32 %v2063, %v1947
        %v2066 = vadd.f32 %v1846, %v2064
        %v2067 = vadd.f32 %v1847, %v2065
        %s2068 = sld [smem:[#allocation8 + $0x6e]]
        %v2069 = vstv %s2068
        %v2070 = vmul.f32 %v2069, %v1940
        %v2071 = vmul.f32 %v2069, %v1941
        %v2072 = vadd.f32 %v2066, %v2070
        %v2073 = vadd.f32 %v2067, %v2071
        %s2074 = sld [smem:[#allocation8 + $0xae]]
        %v2075 = vstv %s2074
        %v2076 = vmul.f32 %v2075, %v1952
        %v2077 = vmul.f32 %v2075, %v1953
        %v2078 = vadd.f32 %v2072, %v2076
        %v2079 = vadd.f32 %v2073, %v2077
        %s2080 = sld [smem:[#allocation8 + $0x2f]]
        %v2081 = vstv %s2080
        %v2082 = vmul.f32 %v2081, %v1946
        %v2083 = vmul.f32 %v2081, %v1947
        %v2084 = vadd.f32 %v1864, %v2082
        %v2085 = vadd.f32 %v1865, %v2083
        %s2086 = sld [smem:[#allocation8 + $0x6f]]
        %v2087 = vstv %s2086
        %v2088 = vmul.f32 %v2087, %v1940
        %v2089 = vmul.f32 %v2087, %v1941
        %v2090 = vadd.f32 %v2084, %v2088
        %v2091 = vadd.f32 %v2085, %v2089
        %s2092 = sld [smem:[#allocation8 + $0xaf]]
        %v2093 = vstv %s2092
        %v2094 = vmul.f32 %v2093, %v1952
        %v2095 = vmul.f32 %v2093, %v1953
        %v2096 = vadd.f32 %v2090, %v2094
        %v2097 = vadd.f32 %v2091, %v2095
        %s2098 = sld [smem:[#allocation7 + $0x6]]
        %v2099 = vstv %s2098
        %v2100 = vmul.f32 %v2099, %v657
        %v2101 = vmul.f32 %v2099, %v658
        %s2102 = sld [smem:[#allocation7 + $0x26]]
        %v2103 = vstv %s2102
        %v2104 = vmul.f32 %v2103, %v650
        %v2105 = vmul.f32 %v2103, %v651
        %v2106 = vadd.f32 %v2100, %v2104
        %v2107 = vadd.f32 %v2101, %v2105
        %s2108 = sld [smem:[#allocation7 + $0x46]]
        %v2109 = vstv %s2108
        %v2110 = vmul.f32 %v2109, %v673
        %v2111 = vmul.f32 %v2109, %v674
        %v2112 = vadd.f32 %v2106, %v2110
        %v2113 = vadd.f32 %v2107, %v2111
        %s2114 = sld [smem:[#allocation7 + $0xe]]
        %v2115 = vstv %s2114
        %v2116 = vmul.f32 %v2115, %v687
        %v2117 = vmul.f32 %v2115, %v688
        %v2118 = vadd.f32 %v2112, %v2116
        %v2119 = vadd.f32 %v2113, %v2117
        %s2120 = sld [smem:[#allocation7 + $0x2e]]
        %v2121 = vstv %s2120
        %v2122 = vmul.f32 %v2121, %v680
        %v2123 = vmul.f32 %v2121, %v681
        %v2124 = vadd.f32 %v2118, %v2122
        %v2125 = vadd.f32 %v2119, %v2123
        %s2126 = sld [smem:[#allocation7 + $0x4e]]
        %v2127 = vstv %s2126
        %v2128 = vmul.f32 %v2127, %v705
        %v2129 = vmul.f32 %v2127, %v706
        %v2130 = vadd.f32 %v2124, %v2128
        %v2131 = vadd.f32 %v2125, %v2129
        %s2132 = sld [smem:[#allocation7 + $0x16]]
        %v2133 = vstv %s2132
        %v2134 = vmul.f32 %v2133, %v719
        %v2135 = vmul.f32 %v2133, %v720
        %v2136 = vadd.f32 %v2130, %v2134
        %v2137 = vadd.f32 %v2131, %v2135
        %s2138 = sld [smem:[#allocation7 + $0x36]]
        %v2139 = vstv %s2138
        %v2140 = vmul.f32 %v2139, %v712
        %v2141 = vmul.f32 %v2139, %v713
        %v2142 = vadd.f32 %v2136, %v2140
        %v2143 = vadd.f32 %v2137, %v2141
        %s2144 = sld [smem:[#allocation7 + $0x56]]
        %v2145 = vstv %s2144
        %v2146 = vmul.f32 %v2145, %v737
        %v2147 = vmul.f32 %v2145, %v738
        %v2148 = vadd.f32 %v2142, %v2146
        %v2149 = vadd.f32 %v2143, %v2147
        %s2150 = sld [smem:[#allocation7 + $0x1e]]
        %v2151 = vstv %s2150
        %v2152 = vmul.f32 %v2151, %v751
        %v2153 = vmul.f32 %v2151, %v752
        %v2154 = vadd.f32 %v2148, %v2152
        %v2155 = vadd.f32 %v2149, %v2153
        %s2156 = sld [smem:[#allocation7 + $0x3e]]
        %v2157 = vstv %s2156
        %v2158 = vmul.f32 %v2157, %v744
        %v2159 = vmul.f32 %v2157, %v745
        %v2160 = vadd.f32 %v2154, %v2158
        %v2161 = vadd.f32 %v2155, %v2159
        %s2162 = sld [smem:[#allocation7 + $0x5e]]
        %v2163 = vstv %s2162
        %v2164 = vmul.f32 %v2163, %v769
        %v2165 = vmul.f32 %v2163, %v770
        %v2166 = vadd.f32 %v2160, %v2164
        %v2167 = vadd.f32 %v2161, %v2165
        %s2168 = sld [smem:[#allocation14 + $0x6]]
        %v2169 = vstv %s2168
        %v2170 = vadd.f32 %v2166, %v2169
        %v2171 = vadd.f32 %v2167, %v2169
        %v2172 = vmax.f32 %v2170, 0.0
        %v2173 = vmax.f32 %v2171, 0.0
        %2174 = vrot.lane.b32.xlu0 %v2172, 1
        %v2175 = vpop.permute.xlu0 %2174
        %2176 = vrot.lane.b32.xlu0 %v2173, 1
        %v2177 = vpop.permute.xlu0 %2176
        %v2178 = vsel %vm399, %v2175, 0.0
        %v2179 = vsel %vm399, %v2177, 0.0
        %2180 = vrot.lane.b32.xlu0 %v2172, 127
        %v2181 = vpop.permute.xlu0 %2180
        %2182 = vrot.lane.b32.xlu0 %v2173, 127
        %v2183 = vpop.permute.xlu0 %2182
        %v2184 = vsel %vm403, %v2181, 0.0
        %v2185 = vsel %vm403, %v2183, 0.0
        %s2186 = sld [smem:[#allocation8 + $0x30]]
        %v2187 = vstv %s2186
        %v2188 = vmul.f32 %v2187, %v2178
        %v2189 = vmul.f32 %v2187, %v2179
        %v2190 = vadd.f32 %v1970, %v2188
        %v2191 = vadd.f32 %v1971, %v2189
        %s2192 = sld [smem:[#allocation8 + $0x70]]
        %v2193 = vstv %s2192
        %v2194 = vmul.f32 %v2193, %v2172
        %v2195 = vmul.f32 %v2193, %v2173
        %v2196 = vadd.f32 %v2190, %v2194
        %v2197 = vadd.f32 %v2191, %v2195
        %s2198 = sld [smem:[#allocation8 + $0xb0]]
        %v2199 = vstv %s2198
        %v2200 = vmul.f32 %v2199, %v2184
        %v2201 = vmul.f32 %v2199, %v2185
        %v2202 = vadd.f32 %v2196, %v2200
        %v2203 = vadd.f32 %v2197, %v2201
        %s2204 = sld [smem:[#allocation8 + $0x31]]
        %v2205 = vstv %s2204
        %v2206 = vmul.f32 %v2205, %v2178
        %v2207 = vmul.f32 %v2205, %v2179
        %v2208 = vadd.f32 %v1988, %v2206
        %v2209 = vadd.f32 %v1989, %v2207
        %s2210 = sld [smem:[#allocation8 + $0x71]]
        %v2211 = vstv %s2210
        %v2212 = vmul.f32 %v2211, %v2172
        %v2213 = vmul.f32 %v2211, %v2173
        %v2214 = vadd.f32 %v2208, %v2212
        %v2215 = vadd.f32 %v2209, %v2213
        %s2216 = sld [smem:[#allocation8 + $0xb1]]
        %v2217 = vstv %s2216
        %v2218 = vmul.f32 %v2217, %v2184
        %v2219 = vmul.f32 %v2217, %v2185
        %v2220 = vadd.f32 %v2214, %v2218
        %v2221 = vadd.f32 %v2215, %v2219
        %s2222 = sld [smem:[#allocation8 + $0x32]]
        %v2223 = vstv %s2222
        %v2224 = vmul.f32 %v2223, %v2178
        %v2225 = vmul.f32 %v2223, %v2179
        %v2226 = vadd.f32 %v2006, %v2224
        %v2227 = vadd.f32 %v2007, %v2225
        %s2228 = sld [smem:[#allocation8 + $0x72]]
        %v2229 = vstv %s2228
        %v2230 = vmul.f32 %v2229, %v2172
        %v2231 = vmul.f32 %v2229, %v2173
        %v2232 = vadd.f32 %v2226, %v2230
        %v2233 = vadd.f32 %v2227, %v2231
        %s2234 = sld [smem:[#allocation8 + $0xb2]]
        %v2235 = vstv %s2234
        %v2236 = vmul.f32 %v2235, %v2184
        %v2237 = vmul.f32 %v2235, %v2185
        %v2238 = vadd.f32 %v2232, %v2236
        %v2239 = vadd.f32 %v2233, %v2237
        %s2240 = sld [smem:[#allocation8 + $0x33]]
        %v2241 = vstv %s2240
        %v2242 = vmul.f32 %v2241, %v2178
        %v2243 = vmul.f32 %v2241, %v2179
        %v2244 = vadd.f32 %v2024, %v2242
        %v2245 = vadd.f32 %v2025, %v2243
        %s2246 = sld [smem:[#allocation8 + $0x73]]
        %v2247 = vstv %s2246
        %v2248 = vmul.f32 %v2247, %v2172
        %v2249 = vmul.f32 %v2247, %v2173
        %v2250 = vadd.f32 %v2244, %v2248
        %v2251 = vadd.f32 %v2245, %v2249
        %s2252 = sld [smem:[#allocation8 + $0xb3]]
        %v2253 = vstv %s2252
        %v2254 = vmul.f32 %v2253, %v2184
        %v2255 = vmul.f32 %v2253, %v2185
        %v2256 = vadd.f32 %v2250, %v2254
        %v2257 = vadd.f32 %v2251, %v2255
        %s2258 = sld [smem:[#allocation8 + $0x34]]
        %v2259 = vstv %s2258
        %v2260 = vmul.f32 %v2259, %v2178
        %v2261 = vmul.f32 %v2259, %v2179
        %v2262 = vadd.f32 %v2042, %v2260
        %v2263 = vadd.f32 %v2043, %v2261
        %s2264 = sld [smem:[#allocation8 + $0x74]]
        %v2265 = vstv %s2264
        %v2266 = vmul.f32 %v2265, %v2172
        %v2267 = vmul.f32 %v2265, %v2173
        %v2268 = vadd.f32 %v2262, %v2266
        %v2269 = vadd.f32 %v2263, %v2267
        %s2270 = sld [smem:[#allocation8 + $0xb4]]
        %v2271 = vstv %s2270
        %v2272 = vmul.f32 %v2271, %v2184
        %v2273 = vmul.f32 %v2271, %v2185
        %v2274 = vadd.f32 %v2268, %v2272
        %v2275 = vadd.f32 %v2269, %v2273
        %s2276 = sld [smem:[#allocation8 + $0x35]]
        %v2277 = vstv %s2276
        %v2278 = vmul.f32 %v2277, %v2178
        %v2279 = vmul.f32 %v2277, %v2179
        %v2280 = vadd.f32 %v2060, %v2278
        %v2281 = vadd.f32 %v2061, %v2279
        %s2282 = sld [smem:[#allocation8 + $0x75]]
        %v2283 = vstv %s2282
        %v2284 = vmul.f32 %v2283, %v2172
        %v2285 = vmul.f32 %v2283, %v2173
        %v2286 = vadd.f32 %v2280, %v2284
        %v2287 = vadd.f32 %v2281, %v2285
        %s2288 = sld [smem:[#allocation8 + $0xb5]]
        %v2289 = vstv %s2288
        %v2290 = vmul.f32 %v2289, %v2184
        %v2291 = vmul.f32 %v2289, %v2185
        %v2292 = vadd.f32 %v2286, %v2290
        %v2293 = vadd.f32 %v2287, %v2291
        %s2294 = sld [smem:[#allocation8 + $0x36]]
        %v2295 = vstv %s2294
        %v2296 = vmul.f32 %v2295, %v2178
        %v2297 = vmul.f32 %v2295, %v2179
        %v2298 = vadd.f32 %v2078, %v2296
        %v2299 = vadd.f32 %v2079, %v2297
        %s2300 = sld [smem:[#allocation8 + $0x76]]
        %v2301 = vstv %s2300
        %v2302 = vmul.f32 %v2301, %v2172
        %v2303 = vmul.f32 %v2301, %v2173
        %v2304 = vadd.f32 %v2298, %v2302
        %v2305 = vadd.f32 %v2299, %v2303
        %s2306 = sld [smem:[#allocation8 + $0xb6]]
        %v2307 = vstv %s2306
        %v2308 = vmul.f32 %v2307, %v2184
        %v2309 = vmul.f32 %v2307, %v2185
        %v2310 = vadd.f32 %v2304, %v2308
        %v2311 = vadd.f32 %v2305, %v2309
        %s2312 = sld [smem:[#allocation8 + $0x37]]
        %v2313 = vstv %s2312
        %v2314 = vmul.f32 %v2313, %v2178
        %v2315 = vmul.f32 %v2313, %v2179
        %v2316 = vadd.f32 %v2096, %v2314
        %v2317 = vadd.f32 %v2097, %v2315
        %s2318 = sld [smem:[#allocation8 + $0x77]]
        %v2319 = vstv %s2318
        %v2320 = vmul.f32 %v2319, %v2172
        %v2321 = vmul.f32 %v2319, %v2173
        %v2322 = vadd.f32 %v2316, %v2320
        %v2323 = vadd.f32 %v2317, %v2321
        %s2324 = sld [smem:[#allocation8 + $0xb7]]
        %v2325 = vstv %s2324
        %v2326 = vmul.f32 %v2325, %v2184
        %v2327 = vmul.f32 %v2325, %v2185
        %v2328 = vadd.f32 %v2322, %v2326
        %v2329 = vadd.f32 %v2323, %v2327
        %s2330 = sld [smem:[#allocation7 + $0x7]]
        %v2331 = vstv %s2330
        %v2332 = vmul.f32 %v2331, %v657
        %v2333 = vmul.f32 %v2331, %v658
        %s2334 = sld [smem:[#allocation7 + $0x27]]
        %v2335 = vstv %s2334
        %v2336 = vmul.f32 %v2335, %v650
        %v2337 = vmul.f32 %v2335, %v651
        %v2338 = vadd.f32 %v2332, %v2336
        %v2339 = vadd.f32 %v2333, %v2337
        %s2340 = sld [smem:[#allocation7 + $0x47]]
        %v2341 = vstv %s2340
        %v2342 = vmul.f32 %v2341, %v673
        %v2343 = vmul.f32 %v2341, %v674
        %v2344 = vadd.f32 %v2338, %v2342
        %v2345 = vadd.f32 %v2339, %v2343
        %s2346 = sld [smem:[#allocation7 + $0xf]]
        %v2347 = vstv %s2346
        %v2348 = vmul.f32 %v2347, %v687
        %v2349 = vmul.f32 %v2347, %v688
        %v2350 = vadd.f32 %v2344, %v2348
        %v2351 = vadd.f32 %v2345, %v2349
        %s2352 = sld [smem:[#allocation7 + $0x2f]]
        %v2353 = vstv %s2352
        %v2354 = vmul.f32 %v2353, %v680
        %v2355 = vmul.f32 %v2353, %v681
        %v2356 = vadd.f32 %v2350, %v2354
        %v2357 = vadd.f32 %v2351, %v2355
        %s2358 = sld [smem:[#allocation7 + $0x4f]]
        %v2359 = vstv %s2358
        %v2360 = vmul.f32 %v2359, %v705
        %v2361 = vmul.f32 %v2359, %v706
        %v2362 = vadd.f32 %v2356, %v2360
        %v2363 = vadd.f32 %v2357, %v2361
        %s2364 = sld [smem:[#allocation7 + $0x17]]
        %v2365 = vstv %s2364
        %v2366 = vmul.f32 %v2365, %v719
        %v2367 = vmul.f32 %v2365, %v720
        %v2368 = vadd.f32 %v2362, %v2366
        %v2369 = vadd.f32 %v2363, %v2367
        %s2370 = sld [smem:[#allocation7 + $0x37]]
        %v2371 = vstv %s2370
        %v2372 = vmul.f32 %v2371, %v712
        %v2373 = vmul.f32 %v2371, %v713
        %v2374 = vadd.f32 %v2368, %v2372
        %v2375 = vadd.f32 %v2369, %v2373
        %s2376 = sld [smem:[#allocation7 + $0x57]]
        %v2377 = vstv %s2376
        %v2378 = vmul.f32 %v2377, %v737
        %v2379 = vmul.f32 %v2377, %v738
        %v2380 = vadd.f32 %v2374, %v2378
        %v2381 = vadd.f32 %v2375, %v2379
        %s2382 = sld [smem:[#allocation7 + $0x1f]]
        %v2383 = vstv %s2382
        %v2384 = vmul.f32 %v2383, %v751
        %v2385 = vmul.f32 %v2383, %v752
        %v2386 = vadd.f32 %v2380, %v2384
        %v2387 = vadd.f32 %v2381, %v2385
        %s2388 = sld [smem:[#allocation7 + $0x3f]]
        %v2389 = vstv %s2388
        %v2390 = vmul.f32 %v2389, %v744
        %v2391 = vmul.f32 %v2389, %v745
        %v2392 = vadd.f32 %v2386, %v2390
        %v2393 = vadd.f32 %v2387, %v2391
        %s2394 = sld [smem:[#allocation7 + $0x5f]]
        %v2395 = vstv %s2394
        %v2396 = vmul.f32 %v2395, %v769
        %v2397 = vmul.f32 %v2395, %v770
        %v2398 = vadd.f32 %v2392, %v2396
        %v2399 = vadd.f32 %v2393, %v2397
        %s2400 = sld [smem:[#allocation14 + $0x7]]
        %v2401 = vstv %s2400
        %v2402 = vadd.f32 %v2398, %v2401
        %v2403 = vadd.f32 %v2399, %v2401
        %v2404 = vmax.f32 %v2402, 0.0
        %v2405 = vmax.f32 %v2403, 0.0
        %2406 = vrot.lane.b32.xlu0 %v2404, 1
        %v2407 = vpop.permute.xlu0 %2406
        %2408 = vrot.lane.b32.xlu0 %v2405, 1
        %v2409 = vpop.permute.xlu0 %2408
        %v2410 = vsel %vm399, %v2407, 0.0
        %v2411 = vsel %vm399, %v2409, 0.0
        %2412 = vrot.lane.b32.xlu0 %v2404, 127
        %v2413 = vpop.permute.xlu0 %2412
        %2414 = vrot.lane.b32.xlu0 %v2405, 127
        %v2415 = vpop.permute.xlu0 %2414
        %v2416 = vsel %vm403, %v2413, 0.0
        %v2417 = vsel %vm403, %v2415, 0.0
        %s2418 = sld [smem:[#allocation8 + $0x38]]
        %v2419 = vstv %s2418
        %v2420 = vmul.f32 %v2419, %v2410
        %v2421 = vmul.f32 %v2419, %v2411
        %v2422 = vadd.f32 %v2202, %v2420
        %v2423 = vadd.f32 %v2203, %v2421
        %s2424 = sld [smem:[#allocation8 + $0x78]]
        %v2425 = vstv %s2424
        %v2426 = vmul.f32 %v2425, %v2404
        %v2427 = vmul.f32 %v2425, %v2405
        %v2428 = vadd.f32 %v2422, %v2426
        %v2429 = vadd.f32 %v2423, %v2427
        %s2430 = sld [smem:[#allocation8 + $0xb8]]
        %v2431 = vstv %s2430
        %v2432 = vmul.f32 %v2431, %v2416
        %v2433 = vmul.f32 %v2431, %v2417
        %v2434 = vadd.f32 %v2428, %v2432
        %v2435 = vadd.f32 %v2429, %v2433
        %s2436 = sld [smem:[#allocation8 + $0x39]]
        %v2437 = vstv %s2436
        %v2438 = vmul.f32 %v2437, %v2410
        %v2439 = vmul.f32 %v2437, %v2411
        %v2440 = vadd.f32 %v2220, %v2438
        %v2441 = vadd.f32 %v2221, %v2439
        %s2442 = sld [smem:[#allocation8 + $0x79]]
        %v2443 = vstv %s2442
        %v2444 = vmul.f32 %v2443, %v2404
        %v2445 = vmul.f32 %v2443, %v2405
        %v2446 = vadd.f32 %v2440, %v2444
        %v2447 = vadd.f32 %v2441, %v2445
        %s2448 = sld [smem:[#allocation8 + $0xb9]]
        %v2449 = vstv %s2448
        %v2450 = vmul.f32 %v2449, %v2416
        %v2451 = vmul.f32 %v2449, %v2417
        %v2452 = vadd.f32 %v2446, %v2450
        %v2453 = vadd.f32 %v2447, %v2451
        %s2454 = sld [smem:[#allocation8 + $0x3a]]
        %v2455 = vstv %s2454
        %v2456 = vmul.f32 %v2455, %v2410
        %v2457 = vmul.f32 %v2455, %v2411
        %v2458 = vadd.f32 %v2238, %v2456
        %v2459 = vadd.f32 %v2239, %v2457
        %s2460 = sld [smem:[#allocation8 + $0x7a]]
        %v2461 = vstv %s2460
        %v2462 = vmul.f32 %v2461, %v2404
        %v2463 = vmul.f32 %v2461, %v2405
        %v2464 = vadd.f32 %v2458, %v2462
        %v2465 = vadd.f32 %v2459, %v2463
        %s2466 = sld [smem:[#allocation8 + $0xba]]
        %v2467 = vstv %s2466
        %v2468 = vmul.f32 %v2467, %v2416
        %v2469 = vmul.f32 %v2467, %v2417
        %v2470 = vadd.f32 %v2464, %v2468
        %v2471 = vadd.f32 %v2465, %v2469
        %s2472 = sld [smem:[#allocation8 + $0x3b]]
        %v2473 = vstv %s2472
        %v2474 = vmul.f32 %v2473, %v2410
        %v2475 = vmul.f32 %v2473, %v2411
        %v2476 = vadd.f32 %v2256, %v2474
        %v2477 = vadd.f32 %v2257, %v2475
        %s2478 = sld [smem:[#allocation8 + $0x7b]]
        %v2479 = vstv %s2478
        %v2480 = vmul.f32 %v2479, %v2404
        %v2481 = vmul.f32 %v2479, %v2405
        %v2482 = vadd.f32 %v2476, %v2480
        %v2483 = vadd.f32 %v2477, %v2481
        %s2484 = sld [smem:[#allocation8 + $0xbb]]
        %v2485 = vstv %s2484
        %v2486 = vmul.f32 %v2485, %v2416
        %v2487 = vmul.f32 %v2485, %v2417
        %v2488 = vadd.f32 %v2482, %v2486
        %v2489 = vadd.f32 %v2483, %v2487
        %s2490 = sld [smem:[#allocation8 + $0x3c]]
        %v2491 = vstv %s2490
        %v2492 = vmul.f32 %v2491, %v2410
        %v2493 = vmul.f32 %v2491, %v2411
        %v2494 = vadd.f32 %v2274, %v2492
        %v2495 = vadd.f32 %v2275, %v2493
        %s2496 = sld [smem:[#allocation8 + $0x7c]]
        %v2497 = vstv %s2496
        %v2498 = vmul.f32 %v2497, %v2404
        %v2499 = vmul.f32 %v2497, %v2405
        %v2500 = vadd.f32 %v2494, %v2498
        %v2501 = vadd.f32 %v2495, %v2499
        %s2502 = sld [smem:[#allocation8 + $0xbc]]
        %v2503 = vstv %s2502
        %v2504 = vmul.f32 %v2503, %v2416
        %v2505 = vmul.f32 %v2503, %v2417
        %v2506 = vadd.f32 %v2500, %v2504
        %v2507 = vadd.f32 %v2501, %v2505
        %s2508 = sld [smem:[#allocation8 + $0x3d]]
        %v2509 = vstv %s2508
        %v2510 = vmul.f32 %v2509, %v2410
        %v2511 = vmul.f32 %v2509, %v2411
        %v2512 = vadd.f32 %v2292, %v2510
        %v2513 = vadd.f32 %v2293, %v2511
        %s2514 = sld [smem:[#allocation8 + $0x7d]]
        %v2515 = vstv %s2514
        %v2516 = vmul.f32 %v2515, %v2404
        %v2517 = vmul.f32 %v2515, %v2405
        %v2518 = vadd.f32 %v2512, %v2516
        %v2519 = vadd.f32 %v2513, %v2517
        %s2520 = sld [smem:[#allocation8 + $0xbd]]
        %v2521 = vstv %s2520
        %v2522 = vmul.f32 %v2521, %v2416
        %v2523 = vmul.f32 %v2521, %v2417
        %v2524 = vadd.f32 %v2518, %v2522
        %v2525 = vadd.f32 %v2519, %v2523
        %s2526 = sld [smem:[#allocation8 + $0x3e]]
        %v2527 = vstv %s2526
        %v2528 = vmul.f32 %v2527, %v2410
        %v2529 = vmul.f32 %v2527, %v2411
        %v2530 = vadd.f32 %v2310, %v2528
        %v2531 = vadd.f32 %v2311, %v2529
        %s2532 = sld [smem:[#allocation8 + $0x7e]]
        %v2533 = vstv %s2532
        %v2534 = vmul.f32 %v2533, %v2404
        %v2535 = vmul.f32 %v2533, %v2405
        %v2536 = vadd.f32 %v2530, %v2534
        %v2537 = vadd.f32 %v2531, %v2535
        %s2538 = sld [smem:[#allocation8 + $0xbe]]
        %v2539 = vstv %s2538
        %v2540 = vmul.f32 %v2539, %v2416
        %v2541 = vmul.f32 %v2539, %v2417
        %v2542 = vadd.f32 %v2536, %v2540
        %v2543 = vadd.f32 %v2537, %v2541
        %s2544 = sld [smem:[#allocation8 + $0x3f]]
        %v2545 = vstv %s2544
        %v2546 = vmul.f32 %v2545, %v2410
        %v2547 = vmul.f32 %v2545, %v2411
        %v2548 = vadd.f32 %v2328, %v2546
        %v2549 = vadd.f32 %v2329, %v2547
        %s2550 = sld [smem:[#allocation8 + $0x7f]]
        %v2551 = vstv %s2550
        %v2552 = vmul.f32 %v2551, %v2404
        %v2553 = vmul.f32 %v2551, %v2405
        %v2554 = vadd.f32 %v2548, %v2552
        %v2555 = vadd.f32 %v2549, %v2553
        %s2556 = sld [smem:[#allocation8 + $0xbf]]
        %v2557 = vstv %s2556
        %v2558 = vmul.f32 %v2557, %v2416
        %v2559 = vmul.f32 %v2557, %v2417
        %v2560 = vadd.f32 %v2554, %v2558
        %v2561 = vadd.f32 %v2555, %v2559
        %2562 = vst [vmem:[%s391] sm:$0xff] %v2434
        %2563 = vst [vmem:[%s391 + $0x8] sm:$0xff] %v2435
        %s2564 = scalar_lea.vmem %s391, 16 [#allocation16]
        %2565 = vst [vmem:[%s2564] sm:$0xff] %v2452
        %2566 = vst [vmem:[%s2564 + $0x8] sm:$0xff] %v2453
        %s2567 = scalar_lea.vmem %s391, 32 [#allocation16]
        %2568 = vst [vmem:[%s2567] sm:$0xff] %v2470
        %2569 = vst [vmem:[%s2567 + $0x8] sm:$0xff] %v2471
        %s2570 = scalar_lea.vmem %s391, 48 [#allocation16]
        %2571 = vst [vmem:[%s2570] sm:$0xff] %v2488
        %2572 = vst [vmem:[%s2570 + $0x8] sm:$0xff] %v2489
        %s2573 = scalar_lea.vmem %s391, 64 [#allocation16]
        %2574 = vst [vmem:[%s2573] sm:$0xff] %v2506
        %2575 = vst [vmem:[%s2573 + $0x8] sm:$0xff] %v2507
        %s2576 = scalar_lea.vmem %s391, 80 [#allocation16]
        %2577 = vst [vmem:[%s2576] sm:$0xff] %v2524
        %2578 = vst [vmem:[%s2576 + $0x8] sm:$0xff] %v2525
        %s2579 = scalar_lea.vmem %s391, 96 [#allocation16]
        %2580 = vst [vmem:[%s2579] sm:$0xff] %v2542
        %2581 = vst [vmem:[%s2579 + $0x8] sm:$0xff] %v2543
        %s2582 = scalar_lea.vmem %s391, 112 [#allocation16]
        %2583 = vst [vmem:[%s2582] sm:$0xff] %v2560
        %2584 = vst [vmem:[%s2582 + $0x8] sm:$0xff] %v2561
        %s2585 = sand.u32 %s204, 1
        %s2586 = scalar_lea.sflag [#allocation5], %s2585
        %s2587 = sand.u32 %s204, 1
        %s2588 = smul.addr %s2587, 128
        %s2589 = scalar_lea.vmem [#allocation16], %s2588
        // Predicated region
        $region77: #{tpu_custom_call.1} parent=47 // pred_check
          %p2590 = pneg %p214
        $region78: #{tpu_custom_call.1} parent=47 // pred_check_branch
          %2592 = sbr.rel (%p2590) target = $region80
        $region79: #{tpu_custom_call.1} parent=47 // pred_region
          %s2593 = smul.u32 2, %s33
          %s2595 = ssub.s32 2048, 2048
          %2596 = vsyncadd %s2586, %s2595
          %s2597 = smul.addr %s32, 16
          %s2598 = sadd.s32 %s2593, %s2597
          %s2599 = smul.addr %s2598, 128
          %s2600 = scalar_lea.hbm %s7, %s2599
          %s2601 = sshll.u32 %s2589, 4
          %s2602 = int_to_ptr.vmem [resolvable:$true] %s2601
          %2607 = dma.vmem_to_hbm [thread:$0]  %s2602, 2048, %s2600, %s2586, 128, 128, 8
        $region80: #{tpu_custom_call.1} parent=47 // pred_fallthru
          _
      $region48: #{tpu_custom_call.1} parent=5 // pred_fallthru
        _
      %p2608 = scmp.le.s32.totalorder 2, %s23
      // Predicated region
      $region81: #{tpu_custom_call.1} parent=5 // pred_check
        %p2609 = pneg %p2608
      $region82: #{tpu_custom_call.1} parent=5 // pred_check_branch
        %2611 = sbr.rel (%p2609) target = $region84
      $region83: #{tpu_custom_call.1} parent=5 // pred_region
        %s2612 = ssub.s32 %s23, 2
        // Predicated region
        $region85: #{tpu_custom_call.1} parent=83 // pred_check
          %p2613 = pneg %p220
        $region86: #{tpu_custom_call.1} parent=83 // pred_check_branch
          %2615 = sbr.rel (%p2613) target = $region88
        $region87: #{tpu_custom_call.1} parent=83 // pred_region
          %s2616 = sand.u32 %s205, 1
          %s2617 = scalar_lea.sflag [#allocation5], %s2616
          %s2618 = sand.u32 %s205, 1
          %s2619 = smul.addr %s2618, 128
          %s2620 = scalar_lea.vmem [#allocation16], %s2619
          %2621 = dma.done %s2617, 2048
        $region88: #{tpu_custom_call.1} parent=83 // pred_fallthru
          _
      $region84: #{tpu_custom_call.1} parent=5 // pred_fallthru
        _
    $region6: #{tpu_custom_call.1} parent=1 // loop_footer
      %s27 = sadd.s32 1, %s23
    $region7: #{tpu_custom_call.1} parent=1 // loop_footer_branch
      %22 = sbr.rel target = $region3
    $region8: #{tpu_custom_call.1} parent=1 // loop_exit
      _
    %2622 = vsyncpa [#allocation4], 1
    %s2623 = scalar_lea.sflag [#allocation4], 1
    %2624 = vsyncpa %s2623, 1
    %2625 = vsyncpa [#allocation5], 1
    %s2626 = scalar_lea.sflag [#allocation5], 1
    %2627 = vsyncpa %s2626, 1
    %2628 = vsyncpa [#allocation6], 1
    %s2629 = scalar_lea.sflag [#allocation6], 1
    %2630 = vsyncpa %s2629, 1
    %2631 = vsyncpa [#allocation9], 1
    %2632 = vsyncpa [#allocation12], 1
    %2633 = vsyncpa [#allocation15], 1

</llo_original>
